<compile_context>
chip_gen: v5e
topology: v5e:2x2
jax: 0.10.0
libtpu: 0.0.40
codegen_flags: <defaults>
</compile_context>

<pallas_src>
import math
from functools import partial

import jax
import jax.numpy as jnp
from jax import lax
from jax.experimental import pallas as pl
from jax.experimental.pallas import tpu as pltpu
from jax.scipy.linalg import block_diag

# ----------------------------- model hyper-params -----------------------------
D_MODEL = 32
N_LAYER = 2
D_STATE = 16          # Mamba default
D_CONV = 4            # Mamba default
EXPAND = 2            # Mamba default
D_INNER = EXPAND * D_MODEL          # 64
D_FUSED = 2 * D_INNER               # 128 = [fwd || bwd] -> full 128-lane vreg
DT_RANK = math.ceil(D_MODEL / 16)   # 2
EPS = 1e-5

# fused x_proj/dt_proj output layout: [dt_full(128) | B(32) | C(32) | pad(64)]
XP_B_LO = D_FUSED
XP_B_HI = D_FUSED + 2 * D_STATE
XP_C_HI = D_FUSED + 4 * D_STATE
XP_OUT = 256

BATCH = 2
SEQ = 8


# ----------------------------- in-kernel helpers ------------------------------
def _layer_norm(x, w, b, eps):
    mu = jnp.mean(x, axis=-1, keepdims=True)
    xc = x - mu
    var = jnp.mean(xc * xc, axis=-1, keepdims=True)
    return xc * lax.rsqrt(var + eps) * w + b


def _softplus(x):
    return jnp.maximum(x, 0.0) + jnp.log1p(jnp.exp(-jnp.abs(x)))


def _silu(x):
    # x * sigmoid(x); approx reciprocal rides the EUP slot instead of the f32 divide.
    return x * pl.reciprocal(1.0 + jnp.exp(-x), approx=True)


# ----------------------------- fused whole-model kernel -----------------------
def mixer_model_kernel(emb_ref, pos_ref,
                       ln_w_ref, ln_b_ref, w_in_ref,
                       conv_w_ref, conv_b_ref,
                       xp_w_ref, dt_b_ref,
                       A_ref, D_ref, w_out_ref,
                       nf_w_ref, nf_b_ref,
                       out_ref, y_buf):
    NB, L, D = emb_ref.shape
    BL = NB * L

    hidden = (emb_ref[...].astype(jnp.float32)
              + pos_ref[...].astype(jnp.float32)).reshape(BL, D)
    residual = jnp.zeros_like(hidden)

    # Hoisted constants (built once, reused by every layer / tap).
    t_ids = lax.broadcasted_iota(jnp.int32, (NB, L, D_FUSED), 1).reshape(BL, D_FUSED)
    lane_ids = lax.broadcasted_iota(jnp.int32, (BL, D_FUSED), 1)
    fwd_lane = lane_ids < D_INNER

    def _rev_time(x):
        # per-batch time reversal via static sublane slices (no (L,L) matmul, no lax.rev)
        C = x.shape[-1]
        x3 = x.reshape(NB, L, C)
        parts = [x3[:, L - 1 - t:L - t, :] for t in range(L)]
        return jnp.concatenate(parts, axis=1).reshape(BL, C)

    for l in range(N_LAYER):
        # residual = hidden + residual ; hidden = LayerNorm(residual)
        residual = hidden + residual
        xn = _layer_norm(residual, ln_w_ref[l], ln_b_ref[l], EPS)                # (BL, D)

        # fused in_proj -> [x | z] ; x2 = [x || time-reversed x]   (BL, 128)
        xz = jnp.dot(xn, w_in_ref[l], preferred_element_type=jnp.float32)        # (BL, 128)
        x = xz[:, :D_INNER]
        z = xz[:, D_INNER:]
        x2 = jnp.concatenate([x, _rev_time(x)], axis=-1)                         # (BL, 128)

        # Depthwise causal conv for both halves at once (backward half already reversed
        # in time, so the same causal shift applies).  pltpu.roll (XLU) + boundary mask.
        cw = conv_w_ref[l]                                                       # (K, 128)
        xc = x2 * cw[D_CONV - 1:D_CONV, :] + conv_b_ref[l]
        for j in range(1, D_CONV):
            xs = jnp.where(t_ids >= j, pltpu.roll(x2, shift=j, axis=0), 0.0)
            xc = xc + xs * cw[D_CONV - 1 - j:D_CONV - j, :]
        u = _silu(xc)                                                            # (BL, 128)

        # Fused x_proj + dt_proj (one matmul): [dt_pre(128) | B(32) | C(32) | pad]
        xbc = jnp.dot(u, xp_w_ref[l], preferred_element_type=jnp.float32)        # (BL, 256)
        dt = _softplus(xbc[:, :D_FUSED] + dt_b_ref[l])                           # (BL, 128)
        Bm = xbc[:, XP_B_LO:XP_B_HI]                                             # (BL, 2S)
        Cm = xbc[:, XP_B_HI:XP_C_HI]                                             # (BL, 2S)

        A_l = A_ref[l]                     # (S, 128) = -exp(A_log), host-precomputed
        dtu = dt * u

        dt3 = dt.reshape(NB, L, D_FUSED)
        dtu3 = dtu.reshape(NB, L, D_FUSED)
        Bm3 = Bm.reshape(NB, L, 2 * D_STATE)
        Cm3 = Cm.reshape(NB, L, 2 * D_STATE)

        # Selective scan, fully unrolled (L static).  Per-timestep B/C expansion (no
        # (L,S,128) temporaries); y rows go straight into a VMEM scratch buffer.
        h = jnp.zeros((NB, D_STATE, D_FUSED), jnp.float32)
        for t in range(L):
            dA = jnp.exp(dt3[:, t:t + 1, :] * A_l)                               # (NB,S,128)
            Bsel = jnp.concatenate(
                [jnp.broadcast_to(Bm3[:, t, :D_STATE][:, :, None],
                                  (NB, D_STATE, D_INNER)),
                 jnp.broadcast_to(Bm3[:, t, D_STATE:][:, :, None],
                                  (NB, D_STATE, D_INNER))], axis=2)              # (NB,S,128)
            Csel = jnp.concatenate(
                [jnp.broadcast_to(Cm3[:, t, :D_STATE][:, :, None],
                                  (NB, D_STATE, D_INNER)),
                 jnp.broadcast_to(Cm3[:, t, D_STATE:][:, :, None],
                                  (NB, D_STATE, D_INNER))], axis=2)              # (NB,S,128)
            h = dA * h + dtu3[:, t:t + 1, :] * Bsel
            y_buf[:, t:t + 1, :] = jnp.sum(Csel * h, axis=1, keepdims=True)      # (NB,1,128)

        y = y_buf[...].reshape(BL, D_FUSED) + u * D_ref[l]                       # (BL, 128)

        # Un-reverse backward half via one sublane flip + lane select (no 64-lane slice
        # of y); gate with lane-duplicated SiLU(z); one full-lane out_proj matmul against
        # vertically stacked [W_out; W_out] sums the two directions.
        y_fix = jnp.where(fwd_lane, y, _rev_time(y))                             # (BL, 128)
        sz = _silu(z)
        z2 = jnp.concatenate([sz, sz], axis=-1)                                  # (BL, 128)
        hidden = jnp.dot(y_fix * z2, w_out_ref[l],
                         preferred_element_type=jnp.float32)                     # (BL, D)

    # final: residual = hidden + residual ; out = LayerNorm_f(residual)
    residual = hidden + residual
    out = _layer_norm(residual, nf_w_ref[...], nf_b_ref[...], EPS)
    out_ref[...] = out.reshape(NB, L, D).astype(out_ref.dtype)


# ----------------------------- cost estimate -----------------------------------
def _cost_estimate(params, B, L, D):
    param_bytes = sum(int(v.size) * v.dtype.itemsize
                      for v in jax.tree_util.tree_leaves(params))
    act_bytes = 3 * B * L * D * 4
    flops_layer = (
        2 * L * D * D_FUSED                      # fused in_proj
        + 2 * L * D_FUSED * D_CONV               # depthwise conv
        + 2 * L * D_FUSED * XP_OUT               # fused x_proj + dt_proj
        + 8 * L * D_STATE * D_FUSED              # selective scan
        + 2 * L * D_FUSED * D                    # stacked out_proj
        + 16 * L * D_FUSED)                      # elementwise misc
    trans_layer = 4 * L * D_FUSED + L * D_STATE * D_FUSED
    return pl.CostEstimate(
        flops=int(B * (N_LAYER * flops_layer + 8 * L * D)),
        transcendentals=int(B * N_LAYER * trans_layer),
        bytes_accessed=int(param_bytes + act_bytes))


# ----------------------------- wrapper -----------------------------------------
_STACKED_NAMES = ("ln_w", "ln_b", "w_in", "conv_w", "conv_b",
                  "xp_w", "dt_b", "A_neg", "D", "w_out2")


def _batch_block(batch):
    # v7x has 2 TensorCores/chip: keep batch as a parallel grid axis there.
    # Single-TC chips (v5e / v6e): fold the whole batch into one grid step.
    try:
        kind = jax.devices()[0].device_kind.lower()
    except Exception:
        kind = ""
    multi_tc = any(s in kind for s in ("v7", "7x"))
    return 1 if multi_tc else batch


@partial(jax.jit, static_argnames=("nb",))
def _mixer_forward(embedding_tokens, pos, params, *, nb):
    B, L, D = embedding_tokens.shape
    p = params
    bmap = lambda i: (i, 0, 0)
    c3 = lambda i: (0, 0, 0)
    c2 = lambda i: (0, 0)

    stacked = [p[n] for n in _STACKED_NAMES]
    in_specs = ([pl.BlockSpec((nb, L, D), bmap), pl.BlockSpec((nb, L, D), bmap)]
                + [pl.BlockSpec(a.shape, c3) for a in stacked]
                + [pl.BlockSpec(p["norm_f_w"].shape, c2),
                   pl.BlockSpec(p["norm_f_b"].shape, c2)])

    return pl.pallas_call(
        mixer_model_kernel,
        grid=(B // nb,),
        in_specs=in_specs,
        out_specs=pl.BlockSpec((nb, L, D), bmap),
        out_shape=jax.ShapeDtypeStruct((B, L, D), jnp.float32),
        scratch_shapes=[pltpu.VMEM((nb, L, D_FUSED), jnp.float32)],
        compiler_params=pltpu.CompilerParams(dimension_semantics=("parallel",)),
        cost_estimate=_cost_estimate(params, B, L, D),
    )(embedding_tokens, pos, *stacked, p["norm_f_w"], p["norm_f_b"])


def mixer_model_forward(embedding_tokens, pos, params):
    nb = _batch_block(embedding_tokens.shape[0])
    return _mixer_forward(embedding_tokens, pos, params, nb=nb)


# ----------------------------- parameter init (deterministic) ------------------
def init_params(key, d_model, n_layer):
    def xproj_split(k):
        w = jax.random.normal(k, (DT_RANK + 2 * D_STATE, D_INNER), jnp.float32) * 0.02
        wt = w.T                                   # (Din, R + 2S)
        return (wt[:, :DT_RANK], wt[:, DT_RANK:DT_RANK + D_STATE],
                wt[:, DT_RANK + D_STATE:])

    def dt_bias(k):
        # standard Mamba dt init: softplus^{-1}(dt) with dt in [1e-3, 1e-1]
        dt = jnp.exp(jax.random.uniform(k, (D_INNER,), jnp.float32)
                     * (math.log(0.1) - math.log(1e-3)) + math.log(1e-3))
        dt = jnp.clip(dt, 1e-4, None)
        return dt + jnp.log(-jnp.expm1(-dt))

    keys = jax.random.split(key, n_layer)
    per_layer = []
    for i in range(n_layer):
        k = jax.random.split(keys[i], 12)
        w_in = jax.random.normal(k[0], (2 * D_INNER, d_model), jnp.float32) * 0.02
        conv_f = jax.random.normal(k[1], (D_INNER, 1, D_CONV), jnp.float32) / math.sqrt(D_CONV)
        conv_bwd = jax.random.normal(k[2], (D_INNER, 1, D_CONV), jnp.float32) / math.sqrt(D_CONV)
        conv_bias = jax.random.normal(k[3], (2, D_INNER), jnp.float32) * 0.1

        xp_dt0, xp_B0, xp_C0 = xproj_split(k[4])
        xp_dt1, xp_B1, xp_C1 = xproj_split(k[5])

        dt_std = DT_RANK ** -0.5
        dtp_w0 = jax.random.uniform(k[6], (D_INNER, DT_RANK), jnp.float32, -dt_std, dt_std).T
        dtp_w1 = jax.random.uniform(k[7], (D_INNER, DT_RANK), jnp.float32, -dt_std, dt_std).T

        # Fuse x_proj(dt) @ dt_proj on the host (exact: no nonlinearity in between), then
        # pack one (128, 256) weight: [dt_full(128) | B(32) | C(32) | zero pad(64)].
        dt_full = block_diag(xp_dt0 @ dtp_w0, xp_dt1 @ dtp_w1)                  # (128,128)
        xp_B = block_diag(xp_B0, xp_B1)                                         # (128, 32)
        xp_C = block_diag(xp_C0, xp_C1)                                         # (128, 32)
        xp_w = jnp.concatenate(
            [dt_full, xp_B, xp_C,
             jnp.zeros((D_FUSED, XP_OUT - XP_C_HI), jnp.float32)], axis=1)       # (128,256)

        # A = -exp(A_log) precomputed on host; standard init A[:, n] = n+1 (shared fwd/bwd)
        A_neg = -jnp.broadcast_to(
            jnp.arange(1, D_STATE + 1, dtype=jnp.float32)[:, None], (D_STATE, D_FUSED))

        w_out = (jax.random.normal(k[10], (d_model, D_INNER), jnp.float32)
                 * 0.02 / math.sqrt(n_layer)).T           # (Din, D); rescaled as _init_weights

        per_layer.append(dict(
            ln_w=jnp.ones((1, d_model), jnp.float32),
            ln_b=jnp.zeros((1, d_model), jnp.float32),
            w_in=w_in.T,                                                        # (D, 128) [x|z]
            conv_w=jnp.concatenate([conv_f[:, 0, :].T, conv_bwd[:, 0, :].T], axis=1),  # (K,128)
            conv_b=jnp.concatenate([conv_bias[0], conv_bias[1]])[None, :],      # (1, 128)
            xp_w=xp_w,                                                          # (128, 256)
            dt_b=jnp.concatenate([dt_bias(k[8]), dt_bias(k[9])])[None, :],      # (1, 128)
            A_neg=A_neg,                                                        # (S, 128)
            D=jnp.ones((1, D_FUSED), jnp.float32),                              # (1, 128)
            w_out2=jnp.concatenate([w_out, w_out], axis=0),                     # (128, D) stacked
        ))

    params = {name: jnp.stack([lyr[name] for lyr in per_layer], axis=0)
              for name in per_layer[0]}
    params["norm_f_w"] = jnp.ones((1, d_model), jnp.float32)
    params["norm_f_b"] = jnp.zeros((1, d_model), jnp.float32)
    return params


if __name__ == "__main__":
    key = jax.random.PRNGKey(0)
    kx, kpos, kp = jax.random.split(key, 3)
    x = jax.random.normal(kx, (BATCH, SEQ, D_MODEL), jnp.float32)
    pos = jax.random.normal(kpos, (BATCH, SEQ, D_MODEL), jnp.float32) * 0.02
    params = init_params(kp, D_MODEL, N_LAYER)

    out = mixer_model_forward(x, pos, params)
    jax.block_until_ready(out)
    assert out.shape == (BATCH, SEQ, D_MODEL) and bool(jnp.all(jnp.isfinite(out)))
    print("KERNEL_OK")
</pallas_src>

<mosaic_0001>
module attributes {stable_mosaic.version = 11 : i64} {
  func.func @mixer_model_kernel(%arg0: i32, %arg1: memref<2x8x32xf32, #tpu.memory_space<vmem>>, %arg2: memref<2x8x32xf32, #tpu.memory_space<vmem>>, %arg3: memref<2x1x32xf32, #tpu.memory_space<vmem>>, %arg4: memref<2x1x32xf32, #tpu.memory_space<vmem>>, %arg5: memref<2x32x128xf32, #tpu.memory_space<vmem>>, %arg6: memref<2x4x128xf32, #tpu.memory_space<vmem>>, %arg7: memref<2x1x128xf32, #tpu.memory_space<vmem>>, %arg8: memref<2x128x256xf32, #tpu.memory_space<vmem>>, %arg9: memref<2x1x128xf32, #tpu.memory_space<vmem>>, %arg10: memref<2x16x128xf32, #tpu.memory_space<vmem>>, %arg11: memref<2x1x128xf32, #tpu.memory_space<vmem>>, %arg12: memref<2x128x32xf32, #tpu.memory_space<vmem>>, %arg13: memref<1x32xf32, #tpu.memory_space<vmem>>, %arg14: memref<1x32xf32, #tpu.memory_space<vmem>>, %arg15: memref<2x8x32xf32, #tpu.memory_space<vmem>>, %arg16: memref<2x8x128xf32, #tpu.memory_space<vmem>>) attributes {dimension_semantics = [#tpu.dimension_semantics<parallel>], iteration_bounds = array<i64: 1>, scalar_prefetch = 0 : i64, scratch_operands = 1 : i64, tpu.core_type = #tpu.core_type<tc>, window_params = [{transform_indices = @transform_0, window_bounds = array<i64: 2, 8, 32>}, {transform_indices = @transform_1, window_bounds = array<i64: 2, 8, 32>}, {pipeline_mode = #tpu.pipeline_mode<synchronous>, transform_indices = @transform_2, window_bounds = array<i64: 2, 1, 32>}, {pipeline_mode = #tpu.pipeline_mode<synchronous>, transform_indices = @transform_3, window_bounds = array<i64: 2, 1, 32>}, {pipeline_mode = #tpu.pipeline_mode<synchronous>, transform_indices = @transform_4, window_bounds = array<i64: 2, 32, 128>}, {pipeline_mode = #tpu.pipeline_mode<synchronous>, transform_indices = @transform_5, window_bounds = array<i64: 2, 4, 128>}, {pipeline_mode = #tpu.pipeline_mode<synchronous>, transform_indices = @transform_6, window_bounds = array<i64: 2, 1, 128>}, {pipeline_mode = #tpu.pipeline_mode<synchronous>, transform_indices = @transform_7, window_bounds = array<i64: 2, 128, 256>}, {pipeline_mode = #tpu.pipeline_mode<synchronous>, transform_indices = @transform_8, window_bounds = array<i64: 2, 1, 128>}, {pipeline_mode = #tpu.pipeline_mode<synchronous>, transform_indices = @transform_9, window_bounds = array<i64: 2, 16, 128>}, {pipeline_mode = #tpu.pipeline_mode<synchronous>, transform_indices = @transform_10, window_bounds = array<i64: 2, 1, 128>}, {pipeline_mode = #tpu.pipeline_mode<synchronous>, transform_indices = @transform_11, window_bounds = array<i64: 2, 128, 32>}, {pipeline_mode = #tpu.pipeline_mode<synchronous>, transform_indices = @transform_12, window_bounds = array<i64: 1, 32>}, {pipeline_mode = #tpu.pipeline_mode<synchronous>, transform_indices = @transform_13, window_bounds = array<i64: 1, 32>}, {transform_indices = @transform_14, window_bounds = array<i64: 2, 8, 32>}]} {
    %c0 = arith.constant 0 : index
    %c0_0 = arith.constant 0 : index
    %c0_1 = arith.constant 0 : index
    %0 = vector.load %arg1[%c0, %c0_0, %c0_1] : memref<2x8x32xf32, #tpu.memory_space<vmem>>, vector<2x8x32xf32>
    %c0_2 = arith.constant 0 : index
    %c0_3 = arith.constant 0 : index
    %c0_4 = arith.constant 0 : index
    %1 = vector.load %arg2[%c0_2, %c0_3, %c0_4] : memref<2x8x32xf32, #tpu.memory_space<vmem>>, vector<2x8x32xf32>
    %2 = arith.addf %0, %1 : vector<2x8x32xf32>
    %3 = vector.shape_cast %2 : vector<2x8x32xf32> to vector<16x32xf32>
    %cst = arith.constant 0.000000e+00 : f32
    %4 = vector.broadcast %cst : f32 to vector<16x32xf32>
    %5 = tpu.iota {dimensions = array<i32: 1>} : vector<2x8x128xi32>
    %6 = vector.shape_cast %5 : vector<2x8x128xi32> to vector<16x128xi32>
    %7 = tpu.iota {dimensions = array<i32: 1>} : vector<16x128xi32>
    %c64_i32 = arith.constant 64 : i32
    %8 = vector.broadcast %c64_i32 : i32 to vector<16x128xi32>
    %9 = arith.cmpi slt, %7, %8 : vector<16x128xi32>
    %10 = arith.addf %3, %4 : vector<16x32xf32>
    %c0_5 = arith.constant 0 : index
    %c0_6 = arith.constant 0 : index
    %c0_7 = arith.constant 0 : index
    %11 = vector.load %arg3[%c0_5, %c0_6, %c0_7] : memref<2x1x32xf32, #tpu.memory_space<vmem>>, vector<1x1x32xf32>
    %12 = vector.shape_cast %11 : vector<1x1x32xf32> to vector<1x32xf32>
    %c0_8 = arith.constant 0 : index
    %c0_9 = arith.constant 0 : index
    %c0_10 = arith.constant 0 : index
    %13 = vector.load %arg4[%c0_8, %c0_9, %c0_10] : memref<2x1x32xf32, #tpu.memory_space<vmem>>, vector<1x1x32xf32>
    %14 = vector.shape_cast %13 : vector<1x1x32xf32> to vector<1x32xf32>
    %cst_11 = arith.constant dense<0.000000e+00> : vector<16xf32>
    %15 = vector.multi_reduction <add>, %10, %cst_11 [1] : vector<16x32xf32> to vector<16xf32>
    %16 = vector.shape_cast %15 : vector<16xf32> to vector<16x1xf32>
    %cst_12 = arith.constant 3.200000e+01 : f32
    %17 = vector.broadcast %cst_12 : f32 to vector<16x1xf32>
    %18 = arith.divf %16, %17 : vector<16x1xf32>
    %19 = vector.broadcast %18 : vector<16x1xf32> to vector<16x32xf32>
    %20 = arith.subf %10, %19 : vector<16x32xf32>
    %21 = arith.mulf %20, %20 : vector<16x32xf32>
    %cst_13 = arith.constant dense<0.000000e+00> : vector<16xf32>
    %22 = vector.multi_reduction <add>, %21, %cst_13 [1] : vector<16x32xf32> to vector<16xf32>
    %23 = vector.shape_cast %22 : vector<16xf32> to vector<16x1xf32>
    %cst_14 = arith.constant 3.200000e+01 : f32
    %24 = vector.broadcast %cst_14 : f32 to vector<16x1xf32>
    %25 = arith.divf %23, %24 : vector<16x1xf32>
    %cst_15 = arith.constant 9.99999974E-6 : f32
    %26 = vector.broadcast %cst_15 : f32 to vector<16x1xf32>
    %27 = arith.addf %25, %26 : vector<16x1xf32>
    %28 = math.rsqrt %27 : vector<16x1xf32>
    %29 = vector.broadcast %28 : vector<16x1xf32> to vector<16x32xf32>
    %30 = arith.mulf %20, %29 : vector<16x32xf32>
    %31 = vector.broadcast %12 : vector<1x32xf32> to vector<16x32xf32>
    %32 = arith.mulf %30, %31 : vector<16x32xf32>
    %33 = vector.broadcast %14 : vector<1x32xf32> to vector<16x32xf32>
    %34 = arith.addf %32, %33 : vector<16x32xf32>
    %c0_16 = arith.constant 0 : index
    %c0_17 = arith.constant 0 : index
    %c0_18 = arith.constant 0 : index
    %35 = vector.load %arg5[%c0_16, %c0_17, %c0_18] : memref<2x32x128xf32, #tpu.memory_space<vmem>>, vector<1x32x128xf32>
    %36 = vector.shape_cast %35 : vector<1x32x128xf32> to vector<32x128xf32>
    %cst_19 = arith.constant dense<0.000000e+00> : vector<16x128xf32>
    %37 = tpu.matmul %34, %36, %cst_19 {dimension_numbers = #tpu.dot_dimension_numbers<[1], [0], [0], [1], [0, 0, 1, 1], [], []>} : vector<16x32xf32>, vector<32x128xf32>, vector<16x128xf32> -> vector<16x128xf32>
    %38 = vector.extract_strided_slice %37 {offsets = [0, 0], sizes = [16, 64], strides = [1, 1]} : vector<16x128xf32> to vector<16x64xf32>
    %39 = vector.extract_strided_slice %37 {offsets = [0, 64], sizes = [16, 64], strides = [1, 1]} : vector<16x128xf32> to vector<16x64xf32>
    %40 = vector.shape_cast %38 : vector<16x64xf32> to vector<2x8x64xf32>
    %41 = vector.extract_strided_slice %40 {offsets = [0, 7, 0], sizes = [2, 1, 64], strides = [1, 1, 1]} : vector<2x8x64xf32> to vector<2x1x64xf32>
    %42 = vector.extract_strided_slice %40 {offsets = [0, 6, 0], sizes = [2, 1, 64], strides = [1, 1, 1]} : vector<2x8x64xf32> to vector<2x1x64xf32>
    %43 = vector.extract_strided_slice %40 {offsets = [0, 5, 0], sizes = [2, 1, 64], strides = [1, 1, 1]} : vector<2x8x64xf32> to vector<2x1x64xf32>
    %44 = vector.extract_strided_slice %40 {offsets = [0, 4, 0], sizes = [2, 1, 64], strides = [1, 1, 1]} : vector<2x8x64xf32> to vector<2x1x64xf32>
    %45 = vector.extract_strided_slice %40 {offsets = [0, 3, 0], sizes = [2, 1, 64], strides = [1, 1, 1]} : vector<2x8x64xf32> to vector<2x1x64xf32>
    %46 = vector.extract_strided_slice %40 {offsets = [0, 2, 0], sizes = [2, 1, 64], strides = [1, 1, 1]} : vector<2x8x64xf32> to vector<2x1x64xf32>
    %47 = vector.extract_strided_slice %40 {offsets = [0, 1, 0], sizes = [2, 1, 64], strides = [1, 1, 1]} : vector<2x8x64xf32> to vector<2x1x64xf32>
    %48 = vector.extract_strided_slice %40 {offsets = [0, 0, 0], sizes = [2, 1, 64], strides = [1, 1, 1]} : vector<2x8x64xf32> to vector<2x1x64xf32>
    %49 = tpu.concatenate %41, %42, %43, %44, %45, %46, %47, %48 in 1 : vector<2x1x64xf32>, vector<2x1x64xf32>, vector<2x1x64xf32>, vector<2x1x64xf32>, vector<2x1x64xf32>, vector<2x1x64xf32>, vector<2x1x64xf32>, vector<2x1x64xf32> -> vector<2x8x64xf32>
    %50 = vector.shape_cast %49 : vector<2x8x64xf32> to vector<16x64xf32>
    %51 = tpu.concatenate %38, %50 in 1 : vector<16x64xf32>, vector<16x64xf32> -> vector<16x128xf32>
    %c0_20 = arith.constant 0 : index
    %c0_21 = arith.constant 0 : index
    %c0_22 = arith.constant 0 : index
    %52 = vector.load %arg6[%c0_20, %c0_21, %c0_22] : memref<2x4x128xf32, #tpu.memory_space<vmem>>, vector<1x4x128xf32>
    %53 = vector.shape_cast %52 : vector<1x4x128xf32> to vector<4x128xf32>
    %54 = vector.extract_strided_slice %53 {offsets = [3, 0], sizes = [1, 128], strides = [1, 1]} : vector<4x128xf32> to vector<1x128xf32>
    %55 = vector.broadcast %54 : vector<1x128xf32> to vector<16x128xf32>
    %56 = arith.mulf %51, %55 : vector<16x128xf32>
    %c0_23 = arith.constant 0 : index
    %c0_24 = arith.constant 0 : index
    %c0_25 = arith.constant 0 : index
    %57 = vector.load %arg7[%c0_23, %c0_24, %c0_25] : memref<2x1x128xf32, #tpu.memory_space<vmem>>, vector<1x1x128xf32>
    %58 = vector.shape_cast %57 : vector<1x1x128xf32> to vector<1x128xf32>
    %59 = vector.broadcast %58 : vector<1x128xf32> to vector<16x128xf32>
    %60 = arith.addf %56, %59 : vector<16x128xf32>
    %c1_i32 = arith.constant 1 : i32
    %61 = vector.broadcast %c1_i32 : i32 to vector<16x128xi32>
    %62 = arith.cmpi sge, %6, %61 : vector<16x128xi32>
    %c1_i32_26 = arith.constant 1 : i32
    %63 = tpu.dynamic_rotate %51 by %c1_i32_26 dim 0 : vector<16x128xf32>, i32 -> vector<16x128xf32>
    %cst_27 = arith.constant 0.000000e+00 : f32
    %64 = vector.broadcast %cst_27 : f32 to vector<16x128xf32>
    %65 = arith.select %62, %63, %64 : vector<16x128xi1>, vector<16x128xf32>
    %66 = vector.extract_strided_slice %53 {offsets = [2, 0], sizes = [1, 128], strides = [1, 1]} : vector<4x128xf32> to vector<1x128xf32>
    %67 = vector.broadcast %66 : vector<1x128xf32> to vector<16x128xf32>
    %68 = arith.mulf %65, %67 : vector<16x128xf32>
    %69 = arith.addf %60, %68 : vector<16x128xf32>
    %c2_i32 = arith.constant 2 : i32
    %70 = vector.broadcast %c2_i32 : i32 to vector<16x128xi32>
    %71 = arith.cmpi sge, %6, %70 : vector<16x128xi32>
    %c2_i32_28 = arith.constant 2 : i32
    %72 = tpu.dynamic_rotate %51 by %c2_i32_28 dim 0 : vector<16x128xf32>, i32 -> vector<16x128xf32>
    %cst_29 = arith.constant 0.000000e+00 : f32
    %73 = vector.broadcast %cst_29 : f32 to vector<16x128xf32>
    %74 = arith.select %71, %72, %73 : vector<16x128xi1>, vector<16x128xf32>
    %75 = vector.extract_strided_slice %53 {offsets = [1, 0], sizes = [1, 128], strides = [1, 1]} : vector<4x128xf32> to vector<1x128xf32>
    %76 = vector.broadcast %75 : vector<1x128xf32> to vector<16x128xf32>
    %77 = arith.mulf %74, %76 : vector<16x128xf32>
    %78 = arith.addf %69, %77 : vector<16x128xf32>
    %c3_i32 = arith.constant 3 : i32
    %79 = vector.broadcast %c3_i32 : i32 to vector<16x128xi32>
    %80 = arith.cmpi sge, %6, %79 : vector<16x128xi32>
    %c3_i32_30 = arith.constant 3 : i32
    %81 = tpu.dynamic_rotate %51 by %c3_i32_30 dim 0 : vector<16x128xf32>, i32 -> vector<16x128xf32>
    %cst_31 = arith.constant 0.000000e+00 : f32
    %82 = vector.broadcast %cst_31 : f32 to vector<16x128xf32>
    %83 = arith.select %80, %81, %82 : vector<16x128xi1>, vector<16x128xf32>
    %84 = vector.extract_strided_slice %53 {offsets = [0, 0], sizes = [1, 128], strides = [1, 1]} : vector<4x128xf32> to vector<1x128xf32>
    %85 = vector.broadcast %84 : vector<1x128xf32> to vector<16x128xf32>
    %86 = arith.mulf %83, %85 : vector<16x128xf32>
    %87 = arith.addf %78, %86 : vector<16x128xf32>
    %cst_32 = arith.constant 0.000000e+00 : f32
    %88 = vector.broadcast %cst_32 : f32 to vector<16x128xf32>
    %89 = arith.subf %88, %87 : vector<16x128xf32>
    %90 = math.exp %89 : vector<16x128xf32>
    %cst_33 = arith.constant 1.000000e+00 : f32
    %91 = vector.broadcast %cst_33 : f32 to vector<16x128xf32>
    %92 = arith.addf %91, %90 : vector<16x128xf32>
    %93 = tpu.reciprocal %92 {approx = true} : vector<16x128xf32> -> vector<16x128xf32>
    %94 = arith.mulf %87, %93 : vector<16x128xf32>
    %c0_34 = arith.constant 0 : index
    %c0_35 = arith.constant 0 : index
    %c0_36 = arith.constant 0 : index
    %95 = vector.load %arg8[%c0_34, %c0_35, %c0_36] : memref<2x128x256xf32, #tpu.memory_space<vmem>>, vector<1x128x256xf32>
    %96 = vector.shape_cast %95 : vector<1x128x256xf32> to vector<128x256xf32>
    %cst_37 = arith.constant dense<0.000000e+00> : vector<16x256xf32>
    %97 = tpu.matmul %94, %96, %cst_37 {dimension_numbers = #tpu.dot_dimension_numbers<[1], [0], [0], [1], [0, 0, 1, 1], [], []>} : vector<16x128xf32>, vector<128x256xf32>, vector<16x256xf32> -> vector<16x256xf32>
    %98 = vector.extract_strided_slice %97 {offsets = [0, 0], sizes = [16, 128], strides = [1, 1]} : vector<16x256xf32> to vector<16x128xf32>
    %c0_38 = arith.constant 0 : index
    %c0_39 = arith.constant 0 : index
    %c0_40 = arith.constant 0 : index
    %99 = vector.load %arg9[%c0_38, %c0_39, %c0_40] : memref<2x1x128xf32, #tpu.memory_space<vmem>>, vector<1x1x128xf32>
    %100 = vector.shape_cast %99 : vector<1x1x128xf32> to vector<1x128xf32>
    %101 = vector.broadcast %100 : vector<1x128xf32> to vector<16x128xf32>
    %102 = arith.addf %98, %101 : vector<16x128xf32>
    %cst_41 = arith.constant 0.000000e+00 : f32
    %103 = vector.broadcast %cst_41 : f32 to vector<16x128xf32>
    %104 = arith.maximumf %102, %103 : vector<16x128xf32>
    %105 = math.absf %102 : vector<16x128xf32>
    %cst_42 = arith.constant 0.000000e+00 : f32
    %106 = vector.broadcast %cst_42 : f32 to vector<16x128xf32>
    %107 = arith.subf %106, %105 : vector<16x128xf32>
    %108 = math.exp %107 : vector<16x128xf32>
    %109 = math.log1p %108 : vector<16x128xf32>
    %110 = arith.addf %104, %109 : vector<16x128xf32>
    %111 = vector.extract_strided_slice %97 {offsets = [0, 128], sizes = [16, 32], strides = [1, 1]} : vector<16x256xf32> to vector<16x32xf32>
    %112 = vector.extract_strided_slice %97 {offsets = [0, 160], sizes = [16, 32], strides = [1, 1]} : vector<16x256xf32> to vector<16x32xf32>
    %c0_43 = arith.constant 0 : index
    %c0_44 = arith.constant 0 : index
    %c0_45 = arith.constant 0 : index
    %113 = vector.load %arg10[%c0_43, %c0_44, %c0_45] : memref<2x16x128xf32, #tpu.memory_space<vmem>>, vector<1x16x128xf32>
    %114 = vector.shape_cast %113 : vector<1x16x128xf32> to vector<16x128xf32>
    %115 = arith.mulf %110, %94 : vector<16x128xf32>
    %116 = vector.shape_cast %110 : vector<16x128xf32> to vector<2x8x128xf32>
    %117 = vector.shape_cast %115 : vector<16x128xf32> to vector<2x8x128xf32>
    %118 = vector.shape_cast %111 : vector<16x32xf32> to vector<2x8x32xf32>
    %119 = vector.shape_cast %112 : vector<16x32xf32> to vector<2x8x32xf32>
    %cst_46 = arith.constant 0.000000e+00 : f32
    %120 = vector.broadcast %cst_46 : f32 to vector<2x16x128xf32>
    %121 = vector.extract_strided_slice %116 {offsets = [0, 0, 0], sizes = [2, 1, 128], strides = [1, 1, 1]} : vector<2x8x128xf32> to vector<2x1x128xf32>
    %122 = vector.shape_cast %114 : vector<16x128xf32> to vector<1x16x128xf32>
    %123 = vector.broadcast %121 : vector<2x1x128xf32> to vector<2x16x128xf32>
    %124 = vector.broadcast %122 : vector<1x16x128xf32> to vector<2x16x128xf32>
    %125 = arith.mulf %123, %124 : vector<2x16x128xf32>
    %126 = math.exp %125 : vector<2x16x128xf32>
    %127 = vector.extract_strided_slice %118 {offsets = [0, 0, 0], sizes = [2, 1, 16], strides = [1, 1, 1]} : vector<2x8x32xf32> to vector<2x1x16xf32>
    %128 = vector.shape_cast %127 : vector<2x1x16xf32> to vector<2x16xf32>
    %129 = vector.shape_cast %128 : vector<2x16xf32> to vector<2x16x1xf32>
    %130 = vector.shape_cast %129 : vector<2x16x1xf32> to vector<2x16x1xf32>
    %131 = vector.broadcast %130 : vector<2x16x1xf32> to vector<2x16x64xf32>
    %132 = vector.extract_strided_slice %118 {offsets = [0, 0, 16], sizes = [2, 1, 16], strides = [1, 1, 1]} : vector<2x8x32xf32> to vector<2x1x16xf32>
    %133 = vector.shape_cast %132 : vector<2x1x16xf32> to vector<2x16xf32>
    %134 = vector.shape_cast %133 : vector<2x16xf32> to vector<2x16x1xf32>
    %135 = vector.shape_cast %134 : vector<2x16x1xf32> to vector<2x16x1xf32>
    %136 = vector.broadcast %135 : vector<2x16x1xf32> to vector<2x16x64xf32>
    %137 = tpu.concatenate %131, %136 in 2 : vector<2x16x64xf32>, vector<2x16x64xf32> -> vector<2x16x128xf32>
    %138 = vector.extract_strided_slice %119 {offsets = [0, 0, 0], sizes = [2, 1, 16], strides = [1, 1, 1]} : vector<2x8x32xf32> to vector<2x1x16xf32>
    %139 = vector.shape_cast %138 : vector<2x1x16xf32> to vector<2x16xf32>
    %140 = vector.shape_cast %139 : vector<2x16xf32> to vector<2x16x1xf32>
    %141 = vector.shape_cast %140 : vector<2x16x1xf32> to vector<2x16x1xf32>
    %142 = vector.broadcast %141 : vector<2x16x1xf32> to vector<2x16x64xf32>
    %143 = vector.extract_strided_slice %119 {offsets = [0, 0, 16], sizes = [2, 1, 16], strides = [1, 1, 1]} : vector<2x8x32xf32> to vector<2x1x16xf32>
    %144 = vector.shape_cast %143 : vector<2x1x16xf32> to vector<2x16xf32>
    %145 = vector.shape_cast %144 : vector<2x16xf32> to vector<2x16x1xf32>
    %146 = vector.shape_cast %145 : vector<2x16x1xf32> to vector<2x16x1xf32>
    %147 = vector.broadcast %146 : vector<2x16x1xf32> to vector<2x16x64xf32>
    %148 = tpu.concatenate %142, %147 in 2 : vector<2x16x64xf32>, vector<2x16x64xf32> -> vector<2x16x128xf32>
    %149 = arith.mulf %126, %120 : vector<2x16x128xf32>
    %150 = vector.extract_strided_slice %117 {offsets = [0, 0, 0], sizes = [2, 1, 128], strides = [1, 1, 1]} : vector<2x8x128xf32> to vector<2x1x128xf32>
    %151 = vector.broadcast %150 : vector<2x1x128xf32> to vector<2x16x128xf32>
    %152 = arith.mulf %151, %137 : vector<2x16x128xf32>
    %153 = arith.addf %149, %152 : vector<2x16x128xf32>
    %154 = arith.mulf %148, %153 : vector<2x16x128xf32>
    %cst_47 = arith.constant dense<0.000000e+00> : vector<2x128xf32>
    %155 = vector.multi_reduction <add>, %154, %cst_47 [1] : vector<2x16x128xf32> to vector<2x128xf32>
    %156 = vector.shape_cast %155 : vector<2x128xf32> to vector<2x1x128xf32>
    %c0_48 = arith.constant 0 : index
    %c0_49 = arith.constant 0 : index
    %c0_50 = arith.constant 0 : index
    %157 = vector.load %arg16[%c0_48, %c0_49, %c0_50] : memref<2x8x128xf32, #tpu.memory_space<vmem>>, vector<2x1x128xf32>
    tpu.vector_store %arg16[%c0_48, %c0_49, %c0_50], %156 {strides = array<i32>} : memref<2x8x128xf32, #tpu.memory_space<vmem>>, vector<2x1x128xf32>,
    %158 = vector.extract_strided_slice %116 {offsets = [0, 1, 0], sizes = [2, 1, 128], strides = [1, 1, 1]} : vector<2x8x128xf32> to vector<2x1x128xf32>
    %159 = vector.shape_cast %114 : vector<16x128xf32> to vector<1x16x128xf32>
    %160 = vector.broadcast %158 : vector<2x1x128xf32> to vector<2x16x128xf32>
    %161 = vector.broadcast %159 : vector<1x16x128xf32> to vector<2x16x128xf32>
    %162 = arith.mulf %160, %161 : vector<2x16x128xf32>
    %163 = math.exp %162 : vector<2x16x128xf32>
    %164 = vector.extract_strided_slice %118 {offsets = [0, 1, 0], sizes = [2, 1, 16], strides = [1, 1, 1]} : vector<2x8x32xf32> to vector<2x1x16xf32>
    %165 = vector.shape_cast %164 : vector<2x1x16xf32> to vector<2x16xf32>
    %166 = vector.shape_cast %165 : vector<2x16xf32> to vector<2x16x1xf32>
    %167 = vector.shape_cast %166 : vector<2x16x1xf32> to vector<2x16x1xf32>
    %168 = vector.broadcast %167 : vector<2x16x1xf32> to vector<2x16x64xf32>
    %169 = vector.extract_strided_slice %118 {offsets = [0, 1, 16], sizes = [2, 1, 16], strides = [1, 1, 1]} : vector<2x8x32xf32> to vector<2x1x16xf32>
    %170 = vector.shape_cast %169 : vector<2x1x16xf32> to vector<2x16xf32>
    %171 = vector.shape_cast %170 : vector<2x16xf32> to vector<2x16x1xf32>
    %172 = vector.shape_cast %171 : vector<2x16x1xf32> to vector<2x16x1xf32>
    %173 = vector.broadcast %172 : vector<2x16x1xf32> to vector<2x16x64xf32>
    %174 = tpu.concatenate %168, %173 in 2 : vector<2x16x64xf32>, vector<2x16x64xf32> -> vector<2x16x128xf32>
    %175 = vector.extract_strided_slice %119 {offsets = [0, 1, 0], sizes = [2, 1, 16], strides = [1, 1, 1]} : vector<2x8x32xf32> to vector<2x1x16xf32>
    %176 = vector.shape_cast %175 : vector<2x1x16xf32> to vector<2x16xf32>
    %177 = vector.shape_cast %176 : vector<2x16xf32> to vector<2x16x1xf32>
    %178 = vector.shape_cast %177 : vector<2x16x1xf32> to vector<2x16x1xf32>
    %179 = vector.broadcast %178 : vector<2x16x1xf32> to vector<2x16x64xf32>
    %180 = vector.extract_strided_slice %119 {offsets = [0, 1, 16], sizes = [2, 1, 16], strides = [1, 1, 1]} : vector<2x8x32xf32> to vector<2x1x16xf32>
    %181 = vector.shape_cast %180 : vector<2x1x16xf32> to vector<2x16xf32>
    %182 = vector.shape_cast %181 : vector<2x16xf32> to vector<2x16x1xf32>
    %183 = vector.shape_cast %182 : vector<2x16x1xf32> to vector<2x16x1xf32>
    %184 = vector.broadcast %183 : vector<2x16x1xf32> to vector<2x16x64xf32>
    %185 = tpu.concatenate %179, %184 in 2 : vector<2x16x64xf32>, vector<2x16x64xf32> -> vector<2x16x128xf32>
    %186 = arith.mulf %163, %153 : vector<2x16x128xf32>
    %187 = vector.extract_strided_slice %117 {offsets = [0, 1, 0], sizes = [2, 1, 128], strides = [1, 1, 1]} : vector<2x8x128xf32> to vector<2x1x128xf32>
    %188 = vector.broadcast %187 : vector<2x1x128xf32> to vector<2x16x128xf32>
    %189 = arith.mulf %188, %174 : vector<2x16x128xf32>
    %190 = arith.addf %186, %189 : vector<2x16x128xf32>
    %191 = arith.mulf %185, %190 : vector<2x16x128xf32>
    %cst_51 = arith.constant dense<0.000000e+00> : vector<2x128xf32>
    %192 = vector.multi_reduction <add>, %191, %cst_51 [1] : vector<2x16x128xf32> to vector<2x128xf32>
    %193 = vector.shape_cast %192 : vector<2x128xf32> to vector<2x1x128xf32>
    %c0_52 = arith.constant 0 : index
    %c1 = arith.constant 1 : index
    %c0_53 = arith.constant 0 : index
    %194 = vector.load %arg16[%c0_52, %c1, %c0_53] : memref<2x8x128xf32, #tpu.memory_space<vmem>>, vector<2x1x128xf32>
    tpu.vector_store %arg16[%c0_52, %c1, %c0_53], %193 {strides = array<i32>} : memref<2x8x128xf32, #tpu.memory_space<vmem>>, vector<2x1x128xf32>,
    %195 = vector.extract_strided_slice %116 {offsets = [0, 2, 0], sizes = [2, 1, 128], strides = [1, 1, 1]} : vector<2x8x128xf32> to vector<2x1x128xf32>
    %196 = vector.shape_cast %114 : vector<16x128xf32> to vector<1x16x128xf32>
    %197 = vector.broadcast %195 : vector<2x1x128xf32> to vector<2x16x128xf32>
    %198 = vector.broadcast %196 : vector<1x16x128xf32> to vector<2x16x128xf32>
    %199 = arith.mulf %197, %198 : vector<2x16x128xf32>
    %200 = math.exp %199 : vector<2x16x128xf32>
    %201 = vector.extract_strided_slice %118 {offsets = [0, 2, 0], sizes = [2, 1, 16], strides = [1, 1, 1]} : vector<2x8x32xf32> to vector<2x1x16xf32>
    %202 = vector.shape_cast %201 : vector<2x1x16xf32> to vector<2x16xf32>
    %203 = vector.shape_cast %202 : vector<2x16xf32> to vector<2x16x1xf32>
    %204 = vector.shape_cast %203 : vector<2x16x1xf32> to vector<2x16x1xf32>
    %205 = vector.broadcast %204 : vector<2x16x1xf32> to vector<2x16x64xf32>
    %206 = vector.extract_strided_slice %118 {offsets = [0, 2, 16], sizes = [2, 1, 16], strides = [1, 1, 1]} : vector<2x8x32xf32> to vector<2x1x16xf32>
    %207 = vector.shape_cast %206 : vector<2x1x16xf32> to vector<2x16xf32>
    %208 = vector.shape_cast %207 : vector<2x16xf32> to vector<2x16x1xf32>
    %209 = vector.shape_cast %208 : vector<2x16x1xf32> to vector<2x16x1xf32>
    %210 = vector.broadcast %209 : vector<2x16x1xf32> to vector<2x16x64xf32>
    %211 = tpu.concatenate %205, %210 in 2 : vector<2x16x64xf32>, vector<2x16x64xf32> -> vector<2x16x128xf32>
    %212 = vector.extract_strided_slice %119 {offsets = [0, 2, 0], sizes = [2, 1, 16], strides = [1, 1, 1]} : vector<2x8x32xf32> to vector<2x1x16xf32>
    %213 = vector.shape_cast %212 : vector<2x1x16xf32> to vector<2x16xf32>
    %214 = vector.shape_cast %213 : vector<2x16xf32> to vector<2x16x1xf32>
    %215 = vector.shape_cast %214 : vector<2x16x1xf32> to vector<2x16x1xf32>
    %216 = vector.broadcast %215 : vector<2x16x1xf32> to vector<2x16x64xf32>
    %217 = vector.extract_strided_slice %119 {offsets = [0, 2, 16], sizes = [2, 1, 16], strides = [1, 1, 1]} : vector<2x8x32xf32> to vector<2x1x16xf32>
    %218 = vector.shape_cast %217 : vector<2x1x16xf32> to vector<2x16xf32>
    %219 = vector.shape_cast %218 : vector<2x16xf32> to vector<2x16x1xf32>
    %220 = vector.shape_cast %219 : vector<2x16x1xf32> to vector<2x16x1xf32>
    %221 = vector.broadcast %220 : vector<2x16x1xf32> to vector<2x16x64xf32>
    %222 = tpu.concatenate %216, %221 in 2 : vector<2x16x64xf32>, vector<2x16x64xf32> -> vector<2x16x128xf32>
    %223 = arith.mulf %200, %190 : vector<2x16x128xf32>
    %224 = vector.extract_strided_slice %117 {offsets = [0, 2, 0], sizes = [2, 1, 128], strides = [1, 1, 1]} : vector<2x8x128xf32> to vector<2x1x128xf32>
    %225 = vector.broadcast %224 : vector<2x1x128xf32> to vector<2x16x128xf32>
    %226 = arith.mulf %225, %211 : vector<2x16x128xf32>
    %227 = arith.addf %223, %226 : vector<2x16x128xf32>
    %228 = arith.mulf %222, %227 : vector<2x16x128xf32>
    %cst_54 = arith.constant dense<0.000000e+00> : vector<2x128xf32>
    %229 = vector.multi_reduction <add>, %228, %cst_54 [1] : vector<2x16x128xf32> to vector<2x128xf32>
    %230 = vector.shape_cast %229 : vector<2x128xf32> to vector<2x1x128xf32>
    %c0_55 = arith.constant 0 : index
    %c2 = arith.constant 2 : index
    %c0_56 = arith.constant 0 : index
    %231 = vector.load %arg16[%c0_55, %c2, %c0_56] : memref<2x8x128xf32, #tpu.memory_space<vmem>>, vector<2x1x128xf32>
    tpu.vector_store %arg16[%c0_55, %c2, %c0_56], %230 {strides = array<i32>} : memref<2x8x128xf32, #tpu.memory_space<vmem>>, vector<2x1x128xf32>,
    %232 = vector.extract_strided_slice %116 {offsets = [0, 3, 0], sizes = [2, 1, 128], strides = [1, 1, 1]} : vector<2x8x128xf32> to vector<2x1x128xf32>
    %233 = vector.shape_cast %114 : vector<16x128xf32> to vector<1x16x128xf32>
    %234 = vector.broadcast %232 : vector<2x1x128xf32> to vector<2x16x128xf32>
    %235 = vector.broadcast %233 : vector<1x16x128xf32> to vector<2x16x128xf32>
    %236 = arith.mulf %234, %235 : vector<2x16x128xf32>
    %237 = math.exp %236 : vector<2x16x128xf32>
    %238 = vector.extract_strided_slice %118 {offsets = [0, 3, 0], sizes = [2, 1, 16], strides = [1, 1, 1]} : vector<2x8x32xf32> to vector<2x1x16xf32>
    %239 = vector.shape_cast %238 : vector<2x1x16xf32> to vector<2x16xf32>
    %240 = vector.shape_cast %239 : vector<2x16xf32> to vector<2x16x1xf32>
    %241 = vector.shape_cast %240 : vector<2x16x1xf32> to vector<2x16x1xf32>
    %242 = vector.broadcast %241 : vector<2x16x1xf32> to vector<2x16x64xf32>
    %243 = vector.extract_strided_slice %118 {offsets = [0, 3, 16], sizes = [2, 1, 16], strides = [1, 1, 1]} : vector<2x8x32xf32> to vector<2x1x16xf32>
    %244 = vector.shape_cast %243 : vector<2x1x16xf32> to vector<2x16xf32>
    %245 = vector.shape_cast %244 : vector<2x16xf32> to vector<2x16x1xf32>
    %246 = vector.shape_cast %245 : vector<2x16x1xf32> to vector<2x16x1xf32>
    %247 = vector.broadcast %246 : vector<2x16x1xf32> to vector<2x16x64xf32>
    %248 = tpu.concatenate %242, %247 in 2 : vector<2x16x64xf32>, vector<2x16x64xf32> -> vector<2x16x128xf32>
    %249 = vector.extract_strided_slice %119 {offsets = [0, 3, 0], sizes = [2, 1, 16], strides = [1, 1, 1]} : vector<2x8x32xf32> to vector<2x1x16xf32>
    %250 = vector.shape_cast %249 : vector<2x1x16xf32> to vector<2x16xf32>
    %251 = vector.shape_cast %250 : vector<2x16xf32> to vector<2x16x1xf32>
    %252 = vector.shape_cast %251 : vector<2x16x1xf32> to vector<2x16x1xf32>
    %253 = vector.broadcast %252 : vector<2x16x1xf32> to vector<2x16x64xf32>
    %254 = vector.extract_strided_slice %119 {offsets = [0, 3, 16], sizes = [2, 1, 16], strides = [1, 1, 1]} : vector<2x8x32xf32> to vector<2x1x16xf32>
    %255 = vector.shape_cast %254 : vector<2x1x16xf32> to vector<2x16xf32>
    %256 = vector.shape_cast %255 : vector<2x16xf32> to vector<2x16x1xf32>
    %257 = vector.shape_cast %256 : vector<2x16x1xf32> to vector<2x16x1xf32>
    %258 = vector.broadcast %257 : vector<2x16x1xf32> to vector<2x16x64xf32>
    %259 = tpu.concatenate %253, %258 in 2 : vector<2x16x64xf32>, vector<2x16x64xf32> -> vector<2x16x128xf32>
    %260 = arith.mulf %237, %227 : vector<2x16x128xf32>
    %261 = vector.extract_strided_slice %117 {offsets = [0, 3, 0], sizes = [2, 1, 128], strides = [1, 1, 1]} : vector<2x8x128xf32> to vector<2x1x128xf32>
    %262 = vector.broadcast %261 : vector<2x1x128xf32> to vector<2x16x128xf32>
    %263 = arith.mulf %262, %248 : vector<2x16x128xf32>
    %264 = arith.addf %260, %263 : vector<2x16x128xf32>
    %265 = arith.mulf %259, %264 : vector<2x16x128xf32>
    %cst_57 = arith.constant dense<0.000000e+00> : vector<2x128xf32>
    %266 = vector.multi_reduction <add>, %265, %cst_57 [1] : vector<2x16x128xf32> to vector<2x128xf32>
    %267 = vector.shape_cast %266 : vector<2x128xf32> to vector<2x1x128xf32>
    %c0_58 = arith.constant 0 : index
    %c3 = arith.constant 3 : index
    %c0_59 = arith.constant 0 : index
    %268 = vector.load %arg16[%c0_58, %c3, %c0_59] : memref<2x8x128xf32, #tpu.memory_space<vmem>>, vector<2x1x128xf32>
    tpu.vector_store %arg16[%c0_58, %c3, %c0_59], %267 {strides = array<i32>} : memref<2x8x128xf32, #tpu.memory_space<vmem>>, vector<2x1x128xf32>,
    %269 = vector.extract_strided_slice %116 {offsets = [0, 4, 0], sizes = [2, 1, 128], strides = [1, 1, 1]} : vector<2x8x128xf32> to vector<2x1x128xf32>
    %270 = vector.shape_cast %114 : vector<16x128xf32> to vector<1x16x128xf32>
    %271 = vector.broadcast %269 : vector<2x1x128xf32> to vector<2x16x128xf32>
    %272 = vector.broadcast %270 : vector<1x16x128xf32> to vector<2x16x128xf32>
    %273 = arith.mulf %271, %272 : vector<2x16x128xf32>
    %274 = math.exp %273 : vector<2x16x128xf32>
    %275 = vector.extract_strided_slice %118 {offsets = [0, 4, 0], sizes = [2, 1, 16], strides = [1, 1, 1]} : vector<2x8x32xf32> to vector<2x1x16xf32>
    %276 = vector.shape_cast %275 : vector<2x1x16xf32> to vector<2x16xf32>
    %277 = vector.shape_cast %276 : vector<2x16xf32> to vector<2x16x1xf32>
    %278 = vector.shape_cast %277 : vector<2x16x1xf32> to vector<2x16x1xf32>
    %279 = vector.broadcast %278 : vector<2x16x1xf32> to vector<2x16x64xf32>
    %280 = vector.extract_strided_slice %118 {offsets = [0, 4, 16], sizes = [2, 1, 16], strides = [1, 1, 1]} : vector<2x8x32xf32> to vector<2x1x16xf32>
    %281 = vector.shape_cast %280 : vector<2x1x16xf32> to vector<2x16xf32>
    %282 = vector.shape_cast %281 : vector<2x16xf32> to vector<2x16x1xf32>
    %283 = vector.shape_cast %282 : vector<2x16x1xf32> to vector<2x16x1xf32>
    %284 = vector.broadcast %283 : vector<2x16x1xf32> to vector<2x16x64xf32>
    %285 = tpu.concatenate %279, %284 in 2 : vector<2x16x64xf32>, vector<2x16x64xf32> -> vector<2x16x128xf32>
    %286 = vector.extract_strided_slice %119 {offsets = [0, 4, 0], sizes = [2, 1, 16], strides = [1, 1, 1]} : vector<2x8x32xf32> to vector<2x1x16xf32>
    %287 = vector.shape_cast %286 : vector<2x1x16xf32> to vector<2x16xf32>
    %288 = vector.shape_cast %287 : vector<2x16xf32> to vector<2x16x1xf32>
    %289 = vector.shape_cast %288 : vector<2x16x1xf32> to vector<2x16x1xf32>
    %290 = vector.broadcast %289 : vector<2x16x1xf32> to vector<2x16x64xf32>
    %291 = vector.extract_strided_slice %119 {offsets = [0, 4, 16], sizes = [2, 1, 16], strides = [1, 1, 1]} : vector<2x8x32xf32> to vector<2x1x16xf32>
    %292 = vector.shape_cast %291 : vector<2x1x16xf32> to vector<2x16xf32>
    %293 = vector.shape_cast %292 : vector<2x16xf32> to vector<2x16x1xf32>
    %294 = vector.shape_cast %293 : vector<2x16x1xf32> to vector<2x16x1xf32>
    %295 = vector.broadcast %294 : vector<2x16x1xf32> to vector<2x16x64xf32>
    %296 = tpu.concatenate %290, %295 in 2 : vector<2x16x64xf32>, vector<2x16x64xf32> -> vector<2x16x128xf32>
    %297 = arith.mulf %274, %264 : vector<2x16x128xf32>
    %298 = vector.extract_strided_slice %117 {offsets = [0, 4, 0], sizes = [2, 1, 128], strides = [1, 1, 1]} : vector<2x8x128xf32> to vector<2x1x128xf32>
    %299 = vector.broadcast %298 : vector<2x1x128xf32> to vector<2x16x128xf32>
    %300 = arith.mulf %299, %285 : vector<2x16x128xf32>
    %301 = arith.addf %297, %300 : vector<2x16x128xf32>
    %302 = arith.mulf %296, %301 : vector<2x16x128xf32>
    %cst_60 = arith.constant dense<0.000000e+00> : vector<2x128xf32>
    %303 = vector.multi_reduction <add>, %302, %cst_60 [1] : vector<2x16x128xf32> to vector<2x128xf32>
    %304 = vector.shape_cast %303 : vector<2x128xf32> to vector<2x1x128xf32>
    %c0_61 = arith.constant 0 : index
    %c4 = arith.constant 4 : index
    %c0_62 = arith.constant 0 : index
    %305 = vector.load %arg16[%c0_61, %c4, %c0_62] : memref<2x8x128xf32, #tpu.memory_space<vmem>>, vector<2x1x128xf32>
    tpu.vector_store %arg16[%c0_61, %c4, %c0_62], %304 {strides = array<i32>} : memref<2x8x128xf32, #tpu.memory_space<vmem>>, vector<2x1x128xf32>,
    %306 = vector.extract_strided_slice %116 {offsets = [0, 5, 0], sizes = [2, 1, 128], strides = [1, 1, 1]} : vector<2x8x128xf32> to vector<2x1x128xf32>
    %307 = vector.shape_cast %114 : vector<16x128xf32> to vector<1x16x128xf32>
    %308 = vector.broadcast %306 : vector<2x1x128xf32> to vector<2x16x128xf32>
    %309 = vector.broadcast %307 : vector<1x16x128xf32> to vector<2x16x128xf32>
    %310 = arith.mulf %308, %309 : vector<2x16x128xf32>
    %311 = math.exp %310 : vector<2x16x128xf32>
    %312 = vector.extract_strided_slice %118 {offsets = [0, 5, 0], sizes = [2, 1, 16], strides = [1, 1, 1]} : vector<2x8x32xf32> to vector<2x1x16xf32>
    %313 = vector.shape_cast %312 : vector<2x1x16xf32> to vector<2x16xf32>
    %314 = vector.shape_cast %313 : vector<2x16xf32> to vector<2x16x1xf32>
    %315 = vector.shape_cast %314 : vector<2x16x1xf32> to vector<2x16x1xf32>
    %316 = vector.broadcast %315 : vector<2x16x1xf32> to vector<2x16x64xf32>
    %317 = vector.extract_strided_slice %118 {offsets = [0, 5, 16], sizes = [2, 1, 16], strides = [1, 1, 1]} : vector<2x8x32xf32> to vector<2x1x16xf32>
    %318 = vector.shape_cast %317 : vector<2x1x16xf32> to vector<2x16xf32>
    %319 = vector.shape_cast %318 : vector<2x16xf32> to vector<2x16x1xf32>
    %320 = vector.shape_cast %319 : vector<2x16x1xf32> to vector<2x16x1xf32>
    %321 = vector.broadcast %320 : vector<2x16x1xf32> to vector<2x16x64xf32>
    %322 = tpu.concatenate %316, %321 in 2 : vector<2x16x64xf32>, vector<2x16x64xf32> -> vector<2x16x128xf32>
    %323 = vector.extract_strided_slice %119 {offsets = [0, 5, 0], sizes = [2, 1, 16], strides = [1, 1, 1]} : vector<2x8x32xf32> to vector<2x1x16xf32>
    %324 = vector.shape_cast %323 : vector<2x1x16xf32> to vector<2x16xf32>
    %325 = vector.shape_cast %324 : vector<2x16xf32> to vector<2x16x1xf32>
    %326 = vector.shape_cast %325 : vector<2x16x1xf32> to vector<2x16x1xf32>
    %327 = vector.broadcast %326 : vector<2x16x1xf32> to vector<2x16x64xf32>
    %328 = vector.extract_strided_slice %119 {offsets = [0, 5, 16], sizes = [2, 1, 16], strides = [1, 1, 1]} : vector<2x8x32xf32> to vector<2x1x16xf32>
    %329 = vector.shape_cast %328 : vector<2x1x16xf32> to vector<2x16xf32>
    %330 = vector.shape_cast %329 : vector<2x16xf32> to vector<2x16x1xf32>
    %331 = vector.shape_cast %330 : vector<2x16x1xf32> to vector<2x16x1xf32>
    %332 = vector.broadcast %331 : vector<2x16x1xf32> to vector<2x16x64xf32>
    %333 = tpu.concatenate %327, %332 in 2 : vector<2x16x64xf32>, vector<2x16x64xf32> -> vector<2x16x128xf32>
    %334 = arith.mulf %311, %301 : vector<2x16x128xf32>
    %335 = vector.extract_strided_slice %117 {offsets = [0, 5, 0], sizes = [2, 1, 128], strides = [1, 1, 1]} : vector<2x8x128xf32> to vector<2x1x128xf32>
    %336 = vector.broadcast %335 : vector<2x1x128xf32> to vector<2x16x128xf32>
    %337 = arith.mulf %336, %322 : vector<2x16x128xf32>
    %338 = arith.addf %334, %337 : vector<2x16x128xf32>
    %339 = arith.mulf %333, %338 : vector<2x16x128xf32>
    %cst_63 = arith.constant dense<0.000000e+00> : vector<2x128xf32>
    %340 = vector.multi_reduction <add>, %339, %cst_63 [1] : vector<2x16x128xf32> to vector<2x128xf32>
    %341 = vector.shape_cast %340 : vector<2x128xf32> to vector<2x1x128xf32>
    %c0_64 = arith.constant 0 : index
    %c5 = arith.constant 5 : index
    %c0_65 = arith.constant 0 : index
    %342 = vector.load %arg16[%c0_64, %c5, %c0_65] : memref<2x8x128xf32, #tpu.memory_space<vmem>>, vector<2x1x128xf32>
    tpu.vector_store %arg16[%c0_64, %c5, %c0_65], %341 {strides = array<i32>} : memref<2x8x128xf32, #tpu.memory_space<vmem>>, vector<2x1x128xf32>,
    %343 = vector.extract_strided_slice %116 {offsets = [0, 6, 0], sizes = [2, 1, 128], strides = [1, 1, 1]} : vector<2x8x128xf32> to vector<2x1x128xf32>
    %344 = vector.shape_cast %114 : vector<16x128xf32> to vector<1x16x128xf32>
    %345 = vector.broadcast %343 : vector<2x1x128xf32> to vector<2x16x128xf32>
    %346 = vector.broadcast %344 : vector<1x16x128xf32> to vector<2x16x128xf32>
    %347 = arith.mulf %345, %346 : vector<2x16x128xf32>
    %348 = math.exp %347 : vector<2x16x128xf32>
    %349 = vector.extract_strided_slice %118 {offsets = [0, 6, 0], sizes = [2, 1, 16], strides = [1, 1, 1]} : vector<2x8x32xf32> to vector<2x1x16xf32>
    %350 = vector.shape_cast %349 : vector<2x1x16xf32> to vector<2x16xf32>
    %351 = vector.shape_cast %350 : vector<2x16xf32> to vector<2x16x1xf32>
    %352 = vector.shape_cast %351 : vector<2x16x1xf32> to vector<2x16x1xf32>
    %353 = vector.broadcast %352 : vector<2x16x1xf32> to vector<2x16x64xf32>
    %354 = vector.extract_strided_slice %118 {offsets = [0, 6, 16], sizes = [2, 1, 16], strides = [1, 1, 1]} : vector<2x8x32xf32> to vector<2x1x16xf32>
    %355 = vector.shape_cast %354 : vector<2x1x16xf32> to vector<2x16xf32>
    %356 = vector.shape_cast %355 : vector<2x16xf32> to vector<2x16x1xf32>
    %357 = vector.shape_cast %356 : vector<2x16x1xf32> to vector<2x16x1xf32>
    %358 = vector.broadcast %357 : vector<2x16x1xf32> to vector<2x16x64xf32>
    %359 = tpu.concatenate %353, %358 in 2 : vector<2x16x64xf32>, vector<2x16x64xf32> -> vector<2x16x128xf32>
    %360 = vector.extract_strided_slice %119 {offsets = [0, 6, 0], sizes = [2, 1, 16], strides = [1, 1, 1]} : vector<2x8x32xf32> to vector<2x1x16xf32>
    %361 = vector.shape_cast %360 : vector<2x1x16xf32> to vector<2x16xf32>
    %362 = vector.shape_cast %361 : vector<2x16xf32> to vector<2x16x1xf32>
    %363 = vector.shape_cast %362 : vector<2x16x1xf32> to vector<2x16x1xf32>
    %364 = vector.broadcast %363 : vector<2x16x1xf32> to vector<2x16x64xf32>
    %365 = vector.extract_strided_slice %119 {offsets = [0, 6, 16], sizes = [2, 1, 16], strides = [1, 1, 1]} : vector<2x8x32xf32> to vector<2x1x16xf32>
    %366 = vector.shape_cast %365 : vector<2x1x16xf32> to vector<2x16xf32>
    %367 = vector.shape_cast %366 : vector<2x16xf32> to vector<2x16x1xf32>
    %368 = vector.shape_cast %367 : vector<2x16x1xf32> to vector<2x16x1xf32>
    %369 = vector.broadcast %368 : vector<2x16x1xf32> to vector<2x16x64xf32>
    %370 = tpu.concatenate %364, %369 in 2 : vector<2x16x64xf32>, vector<2x16x64xf32> -> vector<2x16x128xf32>
    %371 = arith.mulf %348, %338 : vector<2x16x128xf32>
    %372 = vector.extract_strided_slice %117 {offsets = [0, 6, 0], sizes = [2, 1, 128], strides = [1, 1, 1]} : vector<2x8x128xf32> to vector<2x1x128xf32>
    %373 = vector.broadcast %372 : vector<2x1x128xf32> to vector<2x16x128xf32>
    %374 = arith.mulf %373, %359 : vector<2x16x128xf32>
    %375 = arith.addf %371, %374 : vector<2x16x128xf32>
    %376 = arith.mulf %370, %375 : vector<2x16x128xf32>
    %cst_66 = arith.constant dense<0.000000e+00> : vector<2x128xf32>
    %377 = vector.multi_reduction <add>, %376, %cst_66 [1] : vector<2x16x128xf32> to vector<2x128xf32>
    %378 = vector.shape_cast %377 : vector<2x128xf32> to vector<2x1x128xf32>
    %c0_67 = arith.constant 0 : index
    %c6 = arith.constant 6 : index
    %c0_68 = arith.constant 0 : index
    %379 = vector.load %arg16[%c0_67, %c6, %c0_68] : memref<2x8x128xf32, #tpu.memory_space<vmem>>, vector<2x1x128xf32>
    tpu.vector_store %arg16[%c0_67, %c6, %c0_68], %378 {strides = array<i32>} : memref<2x8x128xf32, #tpu.memory_space<vmem>>, vector<2x1x128xf32>,
    %380 = vector.extract_strided_slice %116 {offsets = [0, 7, 0], sizes = [2, 1, 128], strides = [1, 1, 1]} : vector<2x8x128xf32> to vector<2x1x128xf32>
    %381 = vector.shape_cast %114 : vector<16x128xf32> to vector<1x16x128xf32>
    %382 = vector.broadcast %380 : vector<2x1x128xf32> to vector<2x16x128xf32>
    %383 = vector.broadcast %381 : vector<1x16x128xf32> to vector<2x16x128xf32>
    %384 = arith.mulf %382, %383 : vector<2x16x128xf32>
    %385 = math.exp %384 : vector<2x16x128xf32>
    %386 = vector.extract_strided_slice %118 {offsets = [0, 7, 0], sizes = [2, 1, 16], strides = [1, 1, 1]} : vector<2x8x32xf32> to vector<2x1x16xf32>
    %387 = vector.shape_cast %386 : vector<2x1x16xf32> to vector<2x16xf32>
    %388 = vector.shape_cast %387 : vector<2x16xf32> to vector<2x16x1xf32>
    %389 = vector.shape_cast %388 : vector<2x16x1xf32> to vector<2x16x1xf32>
    %390 = vector.broadcast %389 : vector<2x16x1xf32> to vector<2x16x64xf32>
    %391 = vector.extract_strided_slice %118 {offsets = [0, 7, 16], sizes = [2, 1, 16], strides = [1, 1, 1]} : vector<2x8x32xf32> to vector<2x1x16xf32>
    %392 = vector.shape_cast %391 : vector<2x1x16xf32> to vector<2x16xf32>
    %393 = vector.shape_cast %392 : vector<2x16xf32> to vector<2x16x1xf32>
    %394 = vector.shape_cast %393 : vector<2x16x1xf32> to vector<2x16x1xf32>
    %395 = vector.broadcast %394 : vector<2x16x1xf32> to vector<2x16x64xf32>
    %396 = tpu.concatenate %390, %395 in 2 : vector<2x16x64xf32>, vector<2x16x64xf32> -> vector<2x16x128xf32>
    %397 = vector.extract_strided_slice %119 {offsets = [0, 7, 0], sizes = [2, 1, 16], strides = [1, 1, 1]} : vector<2x8x32xf32> to vector<2x1x16xf32>
    %398 = vector.shape_cast %397 : vector<2x1x16xf32> to vector<2x16xf32>
    %399 = vector.shape_cast %398 : vector<2x16xf32> to vector<2x16x1xf32>
    %400 = vector.shape_cast %399 : vector<2x16x1xf32> to vector<2x16x1xf32>
    %401 = vector.broadcast %400 : vector<2x16x1xf32> to vector<2x16x64xf32>
    %402 = vector.extract_strided_slice %119 {offsets = [0, 7, 16], sizes = [2, 1, 16], strides = [1, 1, 1]} : vector<2x8x32xf32> to vector<2x1x16xf32>
    %403 = vector.shape_cast %402 : vector<2x1x16xf32> to vector<2x16xf32>
    %404 = vector.shape_cast %403 : vector<2x16xf32> to vector<2x16x1xf32>
    %405 = vector.shape_cast %404 : vector<2x16x1xf32> to vector<2x16x1xf32>
    %406 = vector.broadcast %405 : vector<2x16x1xf32> to vector<2x16x64xf32>
    %407 = tpu.concatenate %401, %406 in 2 : vector<2x16x64xf32>, vector<2x16x64xf32> -> vector<2x16x128xf32>
    %408 = arith.mulf %385, %375 : vector<2x16x128xf32>
    %409 = vector.extract_strided_slice %117 {offsets = [0, 7, 0], sizes = [2, 1, 128], strides = [1, 1, 1]} : vector<2x8x128xf32> to vector<2x1x128xf32>
    %410 = vector.broadcast %409 : vector<2x1x128xf32> to vector<2x16x128xf32>
    %411 = arith.mulf %410, %396 : vector<2x16x128xf32>
    %412 = arith.addf %408, %411 : vector<2x16x128xf32>
    %413 = arith.mulf %407, %412 : vector<2x16x128xf32>
    %cst_69 = arith.constant dense<0.000000e+00> : vector<2x128xf32>
    %414 = vector.multi_reduction <add>, %413, %cst_69 [1] : vector<2x16x128xf32> to vector<2x128xf32>
    %415 = vector.shape_cast %414 : vector<2x128xf32> to vector<2x1x128xf32>
    %c0_70 = arith.constant 0 : index
    %c7 = arith.constant 7 : index
    %c0_71 = arith.constant 0 : index
    %416 = vector.load %arg16[%c0_70, %c7, %c0_71] : memref<2x8x128xf32, #tpu.memory_space<vmem>>, vector<2x1x128xf32>
    tpu.vector_store %arg16[%c0_70, %c7, %c0_71], %415 {strides = array<i32>} : memref<2x8x128xf32, #tpu.memory_space<vmem>>, vector<2x1x128xf32>,
    %c0_72 = arith.constant 0 : index
    %c0_73 = arith.constant 0 : index
    %c0_74 = arith.constant 0 : index
    %417 = vector.load %arg16[%c0_72, %c0_73, %c0_74] : memref<2x8x128xf32, #tpu.memory_space<vmem>>, vector<2x8x128xf32>
    %418 = vector.shape_cast %417 : vector<2x8x128xf32> to vector<16x128xf32>
    %c0_75 = arith.constant 0 : index
    %c0_76 = arith.constant 0 : index
    %c0_77 = arith.constant 0 : index
    %419 = vector.load %arg11[%c0_75, %c0_76, %c0_77] : memref<2x1x128xf32, #tpu.memory_space<vmem>>, vector<1x1x128xf32>
    %420 = vector.shape_cast %419 : vector<1x1x128xf32> to vector<1x128xf32>
    %421 = vector.broadcast %420 : vector<1x128xf32> to vector<16x128xf32>
    %422 = arith.mulf %94, %421 : vector<16x128xf32>
    %423 = arith.addf %418, %422 : vector<16x128xf32>
    %424 = vector.shape_cast %423 : vector<16x128xf32> to vector<2x8x128xf32>
    %425 = vector.extract_strided_slice %424 {offsets = [0, 7, 0], sizes = [2, 1, 128], strides = [1, 1, 1]} : vector<2x8x128xf32> to vector<2x1x128xf32>
    %426 = vector.extract_strided_slice %424 {offsets = [0, 6, 0], sizes = [2, 1, 128], strides = [1, 1, 1]} : vector<2x8x128xf32> to vector<2x1x128xf32>
    %427 = vector.extract_strided_slice %424 {offsets = [0, 5, 0], sizes = [2, 1, 128], strides = [1, 1, 1]} : vector<2x8x128xf32> to vector<2x1x128xf32>
    %428 = vector.extract_strided_slice %424 {offsets = [0, 4, 0], sizes = [2, 1, 128], strides = [1, 1, 1]} : vector<2x8x128xf32> to vector<2x1x128xf32>
    %429 = vector.extract_strided_slice %424 {offsets = [0, 3, 0], sizes = [2, 1, 128], strides = [1, 1, 1]} : vector<2x8x128xf32> to vector<2x1x128xf32>
    %430 = vector.extract_strided_slice %424 {offsets = [0, 2, 0], sizes = [2, 1, 128], strides = [1, 1, 1]} : vector<2x8x128xf32> to vector<2x1x128xf32>
    %431 = vector.extract_strided_slice %424 {offsets = [0, 1, 0], sizes = [2, 1, 128], strides = [1, 1, 1]} : vector<2x8x128xf32> to vector<2x1x128xf32>
    %432 = vector.extract_strided_slice %424 {offsets = [0, 0, 0], sizes = [2, 1, 128], strides = [1, 1, 1]} : vector<2x8x128xf32> to vector<2x1x128xf32>
    %433 = tpu.concatenate %425, %426, %427, %428, %429, %430, %431, %432 in 1 : vector<2x1x128xf32>, vector<2x1x128xf32>, vector<2x1x128xf32>, vector<2x1x128xf32>, vector<2x1x128xf32>, vector<2x1x128xf32>, vector<2x1x128xf32>, vector<2x1x128xf32> -> vector<2x8x128xf32>
    %434 = vector.shape_cast %433 : vector<2x8x128xf32> to vector<16x128xf32>
    %435 = arith.select %9, %423, %434 : vector<16x128xi1>, vector<16x128xf32>
    %cst_78 = arith.constant 0.000000e+00 : f32
    %436 = vector.broadcast %cst_78 : f32 to vector<16x64xf32>
    %437 = arith.subf %436, %39 : vector<16x64xf32>
    %438 = math.exp %437 : vector<16x64xf32>
    %cst_79 = arith.constant 1.000000e+00 : f32
    %439 = vector.broadcast %cst_79 : f32 to vector<16x64xf32>
    %440 = arith.addf %439, %438 : vector<16x64xf32>
    %441 = tpu.reciprocal %440 {approx = true} : vector<16x64xf32> -> vector<16x64xf32>
    %442 = arith.mulf %39, %441 : vector<16x64xf32>
    %443 = tpu.concatenate %442, %442 in 1 : vector<16x64xf32>, vector<16x64xf32> -> vector<16x128xf32>
    %444 = arith.mulf %435, %443 : vector<16x128xf32>
    %c0_80 = arith.constant 0 : index
    %c0_81 = arith.constant 0 : index
    %c0_82 = arith.constant 0 : index
    %445 = vector.load %arg12[%c0_80, %c0_81, %c0_82] : memref<2x128x32xf32, #tpu.memory_space<vmem>>, vector<1x128x32xf32>
    %446 = vector.shape_cast %445 : vector<1x128x32xf32> to vector<128x32xf32>
    %cst_83 = arith.constant dense<0.000000e+00> : vector<16x32xf32>
    %447 = tpu.matmul %444, %446, %cst_83 {dimension_numbers = #tpu.dot_dimension_numbers<[1], [0], [0], [1], [0, 0, 1, 1], [], []>} : vector<16x128xf32>, vector<128x32xf32>, vector<16x32xf32> -> vector<16x32xf32>
    %448 = arith.addf %447, %10 : vector<16x32xf32>
    %c1_84 = arith.constant 1 : index
    %c0_85 = arith.constant 0 : index
    %c0_86 = arith.constant 0 : index
    %449 = vector.load %arg3[%c1_84, %c0_85, %c0_86] : memref<2x1x32xf32, #tpu.memory_space<vmem>>, vector<1x1x32xf32>
    %450 = vector.shape_cast %449 : vector<1x1x32xf32> to vector<1x32xf32>
    %c1_87 = arith.constant 1 : index
    %c0_88 = arith.constant 0 : index
    %c0_89 = arith.constant 0 : index
    %451 = vector.load %arg4[%c1_87, %c0_88, %c0_89] : memref<2x1x32xf32, #tpu.memory_space<vmem>>, vector<1x1x32xf32>
    %452 = vector.shape_cast %451 : vector<1x1x32xf32> to vector<1x32xf32>
    %cst_90 = arith.constant dense<0.000000e+00> : vector<16xf32>
    %453 = vector.multi_reduction <add>, %448, %cst_90 [1] : vector<16x32xf32> to vector<16xf32>
    %454 = vector.shape_cast %453 : vector<16xf32> to vector<16x1xf32>
    %cst_91 = arith.constant 3.200000e+01 : f32
    %455 = vector.broadcast %cst_91 : f32 to vector<16x1xf32>
    %456 = arith.divf %454, %455 : vector<16x1xf32>
    %457 = vector.broadcast %456 : vector<16x1xf32> to vector<16x32xf32>
    %458 = arith.subf %448, %457 : vector<16x32xf32>
    %459 = arith.mulf %458, %458 : vector<16x32xf32>
    %cst_92 = arith.constant dense<0.000000e+00> : vector<16xf32>
    %460 = vector.multi_reduction <add>, %459, %cst_92 [1] : vector<16x32xf32> to vector<16xf32>
    %461 = vector.shape_cast %460 : vector<16xf32> to vector<16x1xf32>
    %cst_93 = arith.constant 3.200000e+01 : f32
    %462 = vector.broadcast %cst_93 : f32 to vector<16x1xf32>
    %463 = arith.divf %461, %462 : vector<16x1xf32>
    %cst_94 = arith.constant 9.99999974E-6 : f32
    %464 = vector.broadcast %cst_94 : f32 to vector<16x1xf32>
    %465 = arith.addf %463, %464 : vector<16x1xf32>
    %466 = math.rsqrt %465 : vector<16x1xf32>
    %467 = vector.broadcast %466 : vector<16x1xf32> to vector<16x32xf32>
    %468 = arith.mulf %458, %467 : vector<16x32xf32>
    %469 = vector.broadcast %450 : vector<1x32xf32> to vector<16x32xf32>
    %470 = arith.mulf %468, %469 : vector<16x32xf32>
    %471 = vector.broadcast %452 : vector<1x32xf32> to vector<16x32xf32>
    %472 = arith.addf %470, %471 : vector<16x32xf32>
    %c1_95 = arith.constant 1 : index
    %c0_96 = arith.constant 0 : index
    %c0_97 = arith.constant 0 : index
    %473 = vector.load %arg5[%c1_95, %c0_96, %c0_97] : memref<2x32x128xf32, #tpu.memory_space<vmem>>, vector<1x32x128xf32>
    %474 = vector.shape_cast %473 : vector<1x32x128xf32> to vector<32x128xf32>
    %cst_98 = arith.constant dense<0.000000e+00> : vector<16x128xf32>
    %475 = tpu.matmul %472, %474, %cst_98 {dimension_numbers = #tpu.dot_dimension_numbers<[1], [0], [0], [1], [0, 0, 1, 1], [], []>} : vector<16x32xf32>, vector<32x128xf32>, vector<16x128xf32> -> vector<16x128xf32>
    %476 = vector.extract_strided_slice %475 {offsets = [0, 0], sizes = [16, 64], strides = [1, 1]} : vector<16x128xf32> to vector<16x64xf32>
    %477 = vector.extract_strided_slice %475 {offsets = [0, 64], sizes = [16, 64], strides = [1, 1]} : vector<16x128xf32> to vector<16x64xf32>
    %478 = vector.shape_cast %476 : vector<16x64xf32> to vector<2x8x64xf32>
    %479 = vector.extract_strided_slice %478 {offsets = [0, 7, 0], sizes = [2, 1, 64], strides = [1, 1, 1]} : vector<2x8x64xf32> to vector<2x1x64xf32>
    %480 = vector.extract_strided_slice %478 {offsets = [0, 6, 0], sizes = [2, 1, 64], strides = [1, 1, 1]} : vector<2x8x64xf32> to vector<2x1x64xf32>
    %481 = vector.extract_strided_slice %478 {offsets = [0, 5, 0], sizes = [2, 1, 64], strides = [1, 1, 1]} : vector<2x8x64xf32> to vector<2x1x64xf32>
    %482 = vector.extract_strided_slice %478 {offsets = [0, 4, 0], sizes = [2, 1, 64], strides = [1, 1, 1]} : vector<2x8x64xf32> to vector<2x1x64xf32>
    %483 = vector.extract_strided_slice %478 {offsets = [0, 3, 0], sizes = [2, 1, 64], strides = [1, 1, 1]} : vector<2x8x64xf32> to vector<2x1x64xf32>
    %484 = vector.extract_strided_slice %478 {offsets = [0, 2, 0], sizes = [2, 1, 64], strides = [1, 1, 1]} : vector<2x8x64xf32> to vector<2x1x64xf32>
    %485 = vector.extract_strided_slice %478 {offsets = [0, 1, 0], sizes = [2, 1, 64], strides = [1, 1, 1]} : vector<2x8x64xf32> to vector<2x1x64xf32>
    %486 = vector.extract_strided_slice %478 {offsets = [0, 0, 0], sizes = [2, 1, 64], strides = [1, 1, 1]} : vector<2x8x64xf32> to vector<2x1x64xf32>
    %487 = tpu.concatenate %479, %480, %481, %482, %483, %484, %485, %486 in 1 : vector<2x1x64xf32>, vector<2x1x64xf32>, vector<2x1x64xf32>, vector<2x1x64xf32>, vector<2x1x64xf32>, vector<2x1x64xf32>, vector<2x1x64xf32>, vector<2x1x64xf32> -> vector<2x8x64xf32>
    %488 = vector.shape_cast %487 : vector<2x8x64xf32> to vector<16x64xf32>
    %489 = tpu.concatenate %476, %488 in 1 : vector<16x64xf32>, vector<16x64xf32> -> vector<16x128xf32>
    %c1_99 = arith.constant 1 : index
    %c0_100 = arith.constant 0 : index
    %c0_101 = arith.constant 0 : index
    %490 = vector.load %arg6[%c1_99, %c0_100, %c0_101] : memref<2x4x128xf32, #tpu.memory_space<vmem>>, vector<1x4x128xf32>
    %491 = vector.shape_cast %490 : vector<1x4x128xf32> to vector<4x128xf32>
    %492 = vector.extract_strided_slice %491 {offsets = [3, 0], sizes = [1, 128], strides = [1, 1]} : vector<4x128xf32> to vector<1x128xf32>
    %493 = vector.broadcast %492 : vector<1x128xf32> to vector<16x128xf32>
    %494 = arith.mulf %489, %493 : vector<16x128xf32>
    %c1_102 = arith.constant 1 : index
    %c0_103 = arith.constant 0 : index
    %c0_104 = arith.constant 0 : index
    %495 = vector.load %arg7[%c1_102, %c0_103, %c0_104] : memref<2x1x128xf32, #tpu.memory_space<vmem>>, vector<1x1x128xf32>
    %496 = vector.shape_cast %495 : vector<1x1x128xf32> to vector<1x128xf32>
    %497 = vector.broadcast %496 : vector<1x128xf32> to vector<16x128xf32>
    %498 = arith.addf %494, %497 : vector<16x128xf32>
    %c1_i32_105 = arith.constant 1 : i32
    %499 = vector.broadcast %c1_i32_105 : i32 to vector<16x128xi32>
    %500 = arith.cmpi sge, %6, %499 : vector<16x128xi32>
    %c1_i32_106 = arith.constant 1 : i32
    %501 = tpu.dynamic_rotate %489 by %c1_i32_106 dim 0 : vector<16x128xf32>, i32 -> vector<16x128xf32>
    %cst_107 = arith.constant 0.000000e+00 : f32
    %502 = vector.broadcast %cst_107 : f32 to vector<16x128xf32>
    %503 = arith.select %500, %501, %502 : vector<16x128xi1>, vector<16x128xf32>
    %504 = vector.extract_strided_slice %491 {offsets = [2, 0], sizes = [1, 128], strides = [1, 1]} : vector<4x128xf32> to vector<1x128xf32>
    %505 = vector.broadcast %504 : vector<1x128xf32> to vector<16x128xf32>
    %506 = arith.mulf %503, %505 : vector<16x128xf32>
    %507 = arith.addf %498, %506 : vector<16x128xf32>
    %c2_i32_108 = arith.constant 2 : i32
    %508 = vector.broadcast %c2_i32_108 : i32 to vector<16x128xi32>
    %509 = arith.cmpi sge, %6, %508 : vector<16x128xi32>
    %c2_i32_109 = arith.constant 2 : i32
    %510 = tpu.dynamic_rotate %489 by %c2_i32_109 dim 0 : vector<16x128xf32>, i32 -> vector<16x128xf32>
    %cst_110 = arith.constant 0.000000e+00 : f32
    %511 = vector.broadcast %cst_110 : f32 to vector<16x128xf32>
    %512 = arith.select %509, %510, %511 : vector<16x128xi1>, vector<16x128xf32>
    %513 = vector.extract_strided_slice %491 {offsets = [1, 0], sizes = [1, 128], strides = [1, 1]} : vector<4x128xf32> to vector<1x128xf32>
    %514 = vector.broadcast %513 : vector<1x128xf32> to vector<16x128xf32>
    %515 = arith.mulf %512, %514 : vector<16x128xf32>
    %516 = arith.addf %507, %515 : vector<16x128xf32>
    %c3_i32_111 = arith.constant 3 : i32
    %517 = vector.broadcast %c3_i32_111 : i32 to vector<16x128xi32>
    %518 = arith.cmpi sge, %6, %517 : vector<16x128xi32>
    %c3_i32_112 = arith.constant 3 : i32
    %519 = tpu.dynamic_rotate %489 by %c3_i32_112 dim 0 : vector<16x128xf32>, i32 -> vector<16x128xf32>
    %cst_113 = arith.constant 0.000000e+00 : f32
    %520 = vector.broadcast %cst_113 : f32 to vector<16x128xf32>
    %521 = arith.select %518, %519, %520 : vector<16x128xi1>, vector<16x128xf32>
    %522 = vector.extract_strided_slice %491 {offsets = [0, 0], sizes = [1, 128], strides = [1, 1]} : vector<4x128xf32> to vector<1x128xf32>
    %523 = vector.broadcast %522 : vector<1x128xf32> to vector<16x128xf32>
    %524 = arith.mulf %521, %523 : vector<16x128xf32>
    %525 = arith.addf %516, %524 : vector<16x128xf32>
    %cst_114 = arith.constant 0.000000e+00 : f32
    %526 = vector.broadcast %cst_114 : f32 to vector<16x128xf32>
    %527 = arith.subf %526, %525 : vector<16x128xf32>
    %528 = math.exp %527 : vector<16x128xf32>
    %cst_115 = arith.constant 1.000000e+00 : f32
    %529 = vector.broadcast %cst_115 : f32 to vector<16x128xf32>
    %530 = arith.addf %529, %528 : vector<16x128xf32>
    %531 = tpu.reciprocal %530 {approx = true} : vector<16x128xf32> -> vector<16x128xf32>
    %532 = arith.mulf %525, %531 : vector<16x128xf32>
    %c1_116 = arith.constant 1 : index
    %c0_117 = arith.constant 0 : index
    %c0_118 = arith.constant 0 : index
    %533 = vector.load %arg8[%c1_116, %c0_117, %c0_118] : memref<2x128x256xf32, #tpu.memory_space<vmem>>, vector<1x128x256xf32>
    %534 = vector.shape_cast %533 : vector<1x128x256xf32> to vector<128x256xf32>
    %cst_119 = arith.constant dense<0.000000e+00> : vector<16x256xf32>
    %535 = tpu.matmul %532, %534, %cst_119 {dimension_numbers = #tpu.dot_dimension_numbers<[1], [0], [0], [1], [0, 0, 1, 1], [], []>} : vector<16x128xf32>, vector<128x256xf32>, vector<16x256xf32> -> vector<16x256xf32>
    %536 = vector.extract_strided_slice %535 {offsets = [0, 0], sizes = [16, 128], strides = [1, 1]} : vector<16x256xf32> to vector<16x128xf32>
    %c1_120 = arith.constant 1 : index
    %c0_121 = arith.constant 0 : index
    %c0_122 = arith.constant 0 : index
    %537 = vector.load %arg9[%c1_120, %c0_121, %c0_122] : memref<2x1x128xf32, #tpu.memory_space<vmem>>, vector<1x1x128xf32>
    %538 = vector.shape_cast %537 : vector<1x1x128xf32> to vector<1x128xf32>
    %539 = vector.broadcast %538 : vector<1x128xf32> to vector<16x128xf32>
    %540 = arith.addf %536, %539 : vector<16x128xf32>
    %cst_123 = arith.constant 0.000000e+00 : f32
    %541 = vector.broadcast %cst_123 : f32 to vector<16x128xf32>
    %542 = arith.maximumf %540, %541 : vector<16x128xf32>
    %543 = math.absf %540 : vector<16x128xf32>
    %cst_124 = arith.constant 0.000000e+00 : f32
    %544 = vector.broadcast %cst_124 : f32 to vector<16x128xf32>
    %545 = arith.subf %544, %543 : vector<16x128xf32>
    %546 = math.exp %545 : vector<16x128xf32>
    %547 = math.log1p %546 : vector<16x128xf32>
    %548 = arith.addf %542, %547 : vector<16x128xf32>
    %549 = vector.extract_strided_slice %535 {offsets = [0, 128], sizes = [16, 32], strides = [1, 1]} : vector<16x256xf32> to vector<16x32xf32>
    %550 = vector.extract_strided_slice %535 {offsets = [0, 160], sizes = [16, 32], strides = [1, 1]} : vector<16x256xf32> to vector<16x32xf32>
    %c1_125 = arith.constant 1 : index
    %c0_126 = arith.constant 0 : index
    %c0_127 = arith.constant 0 : index
    %551 = vector.load %arg10[%c1_125, %c0_126, %c0_127] : memref<2x16x128xf32, #tpu.memory_space<vmem>>, vector<1x16x128xf32>
    %552 = vector.shape_cast %551 : vector<1x16x128xf32> to vector<16x128xf32>
    %553 = arith.mulf %548, %532 : vector<16x128xf32>
    %554 = vector.shape_cast %548 : vector<16x128xf32> to vector<2x8x128xf32>
    %555 = vector.shape_cast %553 : vector<16x128xf32> to vector<2x8x128xf32>
    %556 = vector.shape_cast %549 : vector<16x32xf32> to vector<2x8x32xf32>
    %557 = vector.shape_cast %550 : vector<16x32xf32> to vector<2x8x32xf32>
    %cst_128 = arith.constant 0.000000e+00 : f32
    %558 = vector.broadcast %cst_128 : f32 to vector<2x16x128xf32>
    %559 = vector.extract_strided_slice %554 {offsets = [0, 0, 0], sizes = [2, 1, 128], strides = [1, 1, 1]} : vector<2x8x128xf32> to vector<2x1x128xf32>
    %560 = vector.shape_cast %552 : vector<16x128xf32> to vector<1x16x128xf32>
    %561 = vector.broadcast %559 : vector<2x1x128xf32> to vector<2x16x128xf32>
    %562 = vector.broadcast %560 : vector<1x16x128xf32> to vector<2x16x128xf32>
    %563 = arith.mulf %561, %562 : vector<2x16x128xf32>
    %564 = math.exp %563 : vector<2x16x128xf32>
    %565 = vector.extract_strided_slice %556 {offsets = [0, 0, 0], sizes = [2, 1, 16], strides = [1, 1, 1]} : vector<2x8x32xf32> to vector<2x1x16xf32>
    %566 = vector.shape_cast %565 : vector<2x1x16xf32> to vector<2x16xf32>
    %567 = vector.shape_cast %566 : vector<2x16xf32> to vector<2x16x1xf32>
    %568 = vector.shape_cast %567 : vector<2x16x1xf32> to vector<2x16x1xf32>
    %569 = vector.broadcast %568 : vector<2x16x1xf32> to vector<2x16x64xf32>
    %570 = vector.extract_strided_slice %556 {offsets = [0, 0, 16], sizes = [2, 1, 16], strides = [1, 1, 1]} : vector<2x8x32xf32> to vector<2x1x16xf32>
    %571 = vector.shape_cast %570 : vector<2x1x16xf32> to vector<2x16xf32>
    %572 = vector.shape_cast %571 : vector<2x16xf32> to vector<2x16x1xf32>
    %573 = vector.shape_cast %572 : vector<2x16x1xf32> to vector<2x16x1xf32>
    %574 = vector.broadcast %573 : vector<2x16x1xf32> to vector<2x16x64xf32>
    %575 = tpu.concatenate %569, %574 in 2 : vector<2x16x64xf32>, vector<2x16x64xf32> -> vector<2x16x128xf32>
    %576 = vector.extract_strided_slice %557 {offsets = [0, 0, 0], sizes = [2, 1, 16], strides = [1, 1, 1]} : vector<2x8x32xf32> to vector<2x1x16xf32>
    %577 = vector.shape_cast %576 : vector<2x1x16xf32> to vector<2x16xf32>
    %578 = vector.shape_cast %577 : vector<2x16xf32> to vector<2x16x1xf32>
    %579 = vector.shape_cast %578 : vector<2x16x1xf32> to vector<2x16x1xf32>
    %580 = vector.broadcast %579 : vector<2x16x1xf32> to vector<2x16x64xf32>
    %581 = vector.extract_strided_slice %557 {offsets = [0, 0, 16], sizes = [2, 1, 16], strides = [1, 1, 1]} : vector<2x8x32xf32> to vector<2x1x16xf32>
    %582 = vector.shape_cast %581 : vector<2x1x16xf32> to vector<2x16xf32>
    %583 = vector.shape_cast %582 : vector<2x16xf32> to vector<2x16x1xf32>
    %584 = vector.shape_cast %583 : vector<2x16x1xf32> to vector<2x16x1xf32>
    %585 = vector.broadcast %584 : vector<2x16x1xf32> to vector<2x16x64xf32>
    %586 = tpu.concatenate %580, %585 in 2 : vector<2x16x64xf32>, vector<2x16x64xf32> -> vector<2x16x128xf32>
    %587 = arith.mulf %564, %558 : vector<2x16x128xf32>
    %588 = vector.extract_strided_slice %555 {offsets = [0, 0, 0], sizes = [2, 1, 128], strides = [1, 1, 1]} : vector<2x8x128xf32> to vector<2x1x128xf32>
    %589 = vector.broadcast %588 : vector<2x1x128xf32> to vector<2x16x128xf32>
    %590 = arith.mulf %589, %575 : vector<2x16x128xf32>
    %591 = arith.addf %587, %590 : vector<2x16x128xf32>
    %592 = arith.mulf %586, %591 : vector<2x16x128xf32>
    %cst_129 = arith.constant dense<0.000000e+00> : vector<2x128xf32>
    %593 = vector.multi_reduction <add>, %592, %cst_129 [1] : vector<2x16x128xf32> to vector<2x128xf32>
    %594 = vector.shape_cast %593 : vector<2x128xf32> to vector<2x1x128xf32>
    %c0_130 = arith.constant 0 : index
    %c0_131 = arith.constant 0 : index
    %c0_132 = arith.constant 0 : index
    %595 = vector.load %arg16[%c0_130, %c0_131, %c0_132] : memref<2x8x128xf32, #tpu.memory_space<vmem>>, vector<2x1x128xf32>
    tpu.vector_store %arg16[%c0_130, %c0_131, %c0_132], %594 {strides = array<i32>} : memref<2x8x128xf32, #tpu.memory_space<vmem>>, vector<2x1x128xf32>,
    %596 = vector.extract_strided_slice %554 {offsets = [0, 1, 0], sizes = [2, 1, 128], strides = [1, 1, 1]} : vector<2x8x128xf32> to vector<2x1x128xf32>
    %597 = vector.shape_cast %552 : vector<16x128xf32> to vector<1x16x128xf32>
    %598 = vector.broadcast %596 : vector<2x1x128xf32> to vector<2x16x128xf32>
    %599 = vector.broadcast %597 : vector<1x16x128xf32> to vector<2x16x128xf32>
    %600 = arith.mulf %598, %599 : vector<2x16x128xf32>
    %601 = math.exp %600 : vector<2x16x128xf32>
    %602 = vector.extract_strided_slice %556 {offsets = [0, 1, 0], sizes = [2, 1, 16], strides = [1, 1, 1]} : vector<2x8x32xf32> to vector<2x1x16xf32>
    %603 = vector.shape_cast %602 : vector<2x1x16xf32> to vector<2x16xf32>
    %604 = vector.shape_cast %603 : vector<2x16xf32> to vector<2x16x1xf32>
    %605 = vector.shape_cast %604 : vector<2x16x1xf32> to vector<2x16x1xf32>
    %606 = vector.broadcast %605 : vector<2x16x1xf32> to vector<2x16x64xf32>
    %607 = vector.extract_strided_slice %556 {offsets = [0, 1, 16], sizes = [2, 1, 16], strides = [1, 1, 1]} : vector<2x8x32xf32> to vector<2x1x16xf32>
    %608 = vector.shape_cast %607 : vector<2x1x16xf32> to vector<2x16xf32>
    %609 = vector.shape_cast %608 : vector<2x16xf32> to vector<2x16x1xf32>
    %610 = vector.shape_cast %609 : vector<2x16x1xf32> to vector<2x16x1xf32>
    %611 = vector.broadcast %610 : vector<2x16x1xf32> to vector<2x16x64xf32>
    %612 = tpu.concatenate %606, %611 in 2 : vector<2x16x64xf32>, vector<2x16x64xf32> -> vector<2x16x128xf32>
    %613 = vector.extract_strided_slice %557 {offsets = [0, 1, 0], sizes = [2, 1, 16], strides = [1, 1, 1]} : vector<2x8x32xf32> to vector<2x1x16xf32>
    %614 = vector.shape_cast %613 : vector<2x1x16xf32> to vector<2x16xf32>
    %615 = vector.shape_cast %614 : vector<2x16xf32> to vector<2x16x1xf32>
    %616 = vector.shape_cast %615 : vector<2x16x1xf32> to vector<2x16x1xf32>
    %617 = vector.broadcast %616 : vector<2x16x1xf32> to vector<2x16x64xf32>
    %618 = vector.extract_strided_slice %557 {offsets = [0, 1, 16], sizes = [2, 1, 16], strides = [1, 1, 1]} : vector<2x8x32xf32> to vector<2x1x16xf32>
    %619 = vector.shape_cast %618 : vector<2x1x16xf32> to vector<2x16xf32>
    %620 = vector.shape_cast %619 : vector<2x16xf32> to vector<2x16x1xf32>
    %621 = vector.shape_cast %620 : vector<2x16x1xf32> to vector<2x16x1xf32>
    %622 = vector.broadcast %621 : vector<2x16x1xf32> to vector<2x16x64xf32>
    %623 = tpu.concatenate %617, %622 in 2 : vector<2x16x64xf32>, vector<2x16x64xf32> -> vector<2x16x128xf32>
    %624 = arith.mulf %601, %591 : vector<2x16x128xf32>
    %625 = vector.extract_strided_slice %555 {offsets = [0, 1, 0], sizes = [2, 1, 128], strides = [1, 1, 1]} : vector<2x8x128xf32> to vector<2x1x128xf32>
    %626 = vector.broadcast %625 : vector<2x1x128xf32> to vector<2x16x128xf32>
    %627 = arith.mulf %626, %612 : vector<2x16x128xf32>
    %628 = arith.addf %624, %627 : vector<2x16x128xf32>
    %629 = arith.mulf %623, %628 : vector<2x16x128xf32>
    %cst_133 = arith.constant dense<0.000000e+00> : vector<2x128xf32>
    %630 = vector.multi_reduction <add>, %629, %cst_133 [1] : vector<2x16x128xf32> to vector<2x128xf32>
    %631 = vector.shape_cast %630 : vector<2x128xf32> to vector<2x1x128xf32>
    %c0_134 = arith.constant 0 : index
    %c1_135 = arith.constant 1 : index
    %c0_136 = arith.constant 0 : index
    %632 = vector.load %arg16[%c0_134, %c1_135, %c0_136] : memref<2x8x128xf32, #tpu.memory_space<vmem>>, vector<2x1x128xf32>
    tpu.vector_store %arg16[%c0_134, %c1_135, %c0_136], %631 {strides = array<i32>} : memref<2x8x128xf32, #tpu.memory_space<vmem>>, vector<2x1x128xf32>,
    %633 = vector.extract_strided_slice %554 {offsets = [0, 2, 0], sizes = [2, 1, 128], strides = [1, 1, 1]} : vector<2x8x128xf32> to vector<2x1x128xf32>
    %634 = vector.shape_cast %552 : vector<16x128xf32> to vector<1x16x128xf32>
    %635 = vector.broadcast %633 : vector<2x1x128xf32> to vector<2x16x128xf32>
    %636 = vector.broadcast %634 : vector<1x16x128xf32> to vector<2x16x128xf32>
    %637 = arith.mulf %635, %636 : vector<2x16x128xf32>
    %638 = math.exp %637 : vector<2x16x128xf32>
    %639 = vector.extract_strided_slice %556 {offsets = [0, 2, 0], sizes = [2, 1, 16], strides = [1, 1, 1]} : vector<2x8x32xf32> to vector<2x1x16xf32>
    %640 = vector.shape_cast %639 : vector<2x1x16xf32> to vector<2x16xf32>
    %641 = vector.shape_cast %640 : vector<2x16xf32> to vector<2x16x1xf32>
    %642 = vector.shape_cast %641 : vector<2x16x1xf32> to vector<2x16x1xf32>
    %643 = vector.broadcast %642 : vector<2x16x1xf32> to vector<2x16x64xf32>
    %644 = vector.extract_strided_slice %556 {offsets = [0, 2, 16], sizes = [2, 1, 16], strides = [1, 1, 1]} : vector<2x8x32xf32> to vector<2x1x16xf32>
    %645 = vector.shape_cast %644 : vector<2x1x16xf32> to vector<2x16xf32>
    %646 = vector.shape_cast %645 : vector<2x16xf32> to vector<2x16x1xf32>
    %647 = vector.shape_cast %646 : vector<2x16x1xf32> to vector<2x16x1xf32>
    %648 = vector.broadcast %647 : vector<2x16x1xf32> to vector<2x16x64xf32>
    %649 = tpu.concatenate %643, %648 in 2 : vector<2x16x64xf32>, vector<2x16x64xf32> -> vector<2x16x128xf32>
    %650 = vector.extract_strided_slice %557 {offsets = [0, 2, 0], sizes = [2, 1, 16], strides = [1, 1, 1]} : vector<2x8x32xf32> to vector<2x1x16xf32>
    %651 = vector.shape_cast %650 : vector<2x1x16xf32> to vector<2x16xf32>
    %652 = vector.shape_cast %651 : vector<2x16xf32> to vector<2x16x1xf32>
    %653 = vector.shape_cast %652 : vector<2x16x1xf32> to vector<2x16x1xf32>
    %654 = vector.broadcast %653 : vector<2x16x1xf32> to vector<2x16x64xf32>
    %655 = vector.extract_strided_slice %557 {offsets = [0, 2, 16], sizes = [2, 1, 16], strides = [1, 1, 1]} : vector<2x8x32xf32> to vector<2x1x16xf32>
    %656 = vector.shape_cast %655 : vector<2x1x16xf32> to vector<2x16xf32>
    %657 = vector.shape_cast %656 : vector<2x16xf32> to vector<2x16x1xf32>
    %658 = vector.shape_cast %657 : vector<2x16x1xf32> to vector<2x16x1xf32>
    %659 = vector.broadcast %658 : vector<2x16x1xf32> to vector<2x16x64xf32>
    %660 = tpu.concatenate %654, %659 in 2 : vector<2x16x64xf32>, vector<2x16x64xf32> -> vector<2x16x128xf32>
    %661 = arith.mulf %638, %628 : vector<2x16x128xf32>
    %662 = vector.extract_strided_slice %555 {offsets = [0, 2, 0], sizes = [2, 1, 128], strides = [1, 1, 1]} : vector<2x8x128xf32> to vector<2x1x128xf32>
    %663 = vector.broadcast %662 : vector<2x1x128xf32> to vector<2x16x128xf32>
    %664 = arith.mulf %663, %649 : vector<2x16x128xf32>
    %665 = arith.addf %661, %664 : vector<2x16x128xf32>
    %666 = arith.mulf %660, %665 : vector<2x16x128xf32>
    %cst_137 = arith.constant dense<0.000000e+00> : vector<2x128xf32>
    %667 = vector.multi_reduction <add>, %666, %cst_137 [1] : vector<2x16x128xf32> to vector<2x128xf32>
    %668 = vector.shape_cast %667 : vector<2x128xf32> to vector<2x1x128xf32>
    %c0_138 = arith.constant 0 : index
    %c2_139 = arith.constant 2 : index
    %c0_140 = arith.constant 0 : index
    %669 = vector.load %arg16[%c0_138, %c2_139, %c0_140] : memref<2x8x128xf32, #tpu.memory_space<vmem>>, vector<2x1x128xf32>
    tpu.vector_store %arg16[%c0_138, %c2_139, %c0_140], %668 {strides = array<i32>} : memref<2x8x128xf32, #tpu.memory_space<vmem>>, vector<2x1x128xf32>,
    %670 = vector.extract_strided_slice %554 {offsets = [0, 3, 0], sizes = [2, 1, 128], strides = [1, 1, 1]} : vector<2x8x128xf32> to vector<2x1x128xf32>
    %671 = vector.shape_cast %552 : vector<16x128xf32> to vector<1x16x128xf32>
    %672 = vector.broadcast %670 : vector<2x1x128xf32> to vector<2x16x128xf32>
    %673 = vector.broadcast %671 : vector<1x16x128xf32> to vector<2x16x128xf32>
    %674 = arith.mulf %672, %673 : vector<2x16x128xf32>
    %675 = math.exp %674 : vector<2x16x128xf32>
    %676 = vector.extract_strided_slice %556 {offsets = [0, 3, 0], sizes = [2, 1, 16], strides = [1, 1, 1]} : vector<2x8x32xf32> to vector<2x1x16xf32>
    %677 = vector.shape_cast %676 : vector<2x1x16xf32> to vector<2x16xf32>
    %678 = vector.shape_cast %677 : vector<2x16xf32> to vector<2x16x1xf32>
    %679 = vector.shape_cast %678 : vector<2x16x1xf32> to vector<2x16x1xf32>
    %680 = vector.broadcast %679 : vector<2x16x1xf32> to vector<2x16x64xf32>
    %681 = vector.extract_strided_slice %556 {offsets = [0, 3, 16], sizes = [2, 1, 16], strides = [1, 1, 1]} : vector<2x8x32xf32> to vector<2x1x16xf32>
    %682 = vector.shape_cast %681 : vector<2x1x16xf32> to vector<2x16xf32>
    %683 = vector.shape_cast %682 : vector<2x16xf32> to vector<2x16x1xf32>
    %684 = vector.shape_cast %683 : vector<2x16x1xf32> to vector<2x16x1xf32>
    %685 = vector.broadcast %684 : vector<2x16x1xf32> to vector<2x16x64xf32>
    %686 = tpu.concatenate %680, %685 in 2 : vector<2x16x64xf32>, vector<2x16x64xf32> -> vector<2x16x128xf32>
    %687 = vector.extract_strided_slice %557 {offsets = [0, 3, 0], sizes = [2, 1, 16], strides = [1, 1, 1]} : vector<2x8x32xf32> to vector<2x1x16xf32>
    %688 = vector.shape_cast %687 : vector<2x1x16xf32> to vector<2x16xf32>
    %689 = vector.shape_cast %688 : vector<2x16xf32> to vector<2x16x1xf32>
    %690 = vector.shape_cast %689 : vector<2x16x1xf32> to vector<2x16x1xf32>
    %691 = vector.broadcast %690 : vector<2x16x1xf32> to vector<2x16x64xf32>
    %692 = vector.extract_strided_slice %557 {offsets = [0, 3, 16], sizes = [2, 1, 16], strides = [1, 1, 1]} : vector<2x8x32xf32> to vector<2x1x16xf32>
    %693 = vector.shape_cast %692 : vector<2x1x16xf32> to vector<2x16xf32>
    %694 = vector.shape_cast %693 : vector<2x16xf32> to vector<2x16x1xf32>
    %695 = vector.shape_cast %694 : vector<2x16x1xf32> to vector<2x16x1xf32>
    %696 = vector.broadcast %695 : vector<2x16x1xf32> to vector<2x16x64xf32>
    %697 = tpu.concatenate %691, %696 in 2 : vector<2x16x64xf32>, vector<2x16x64xf32> -> vector<2x16x128xf32>
    %698 = arith.mulf %675, %665 : vector<2x16x128xf32>
    %699 = vector.extract_strided_slice %555 {offsets = [0, 3, 0], sizes = [2, 1, 128], strides = [1, 1, 1]} : vector<2x8x128xf32> to vector<2x1x128xf32>
    %700 = vector.broadcast %699 : vector<2x1x128xf32> to vector<2x16x128xf32>
    %701 = arith.mulf %700, %686 : vector<2x16x128xf32>
    %702 = arith.addf %698, %701 : vector<2x16x128xf32>
    %703 = arith.mulf %697, %702 : vector<2x16x128xf32>
    %cst_141 = arith.constant dense<0.000000e+00> : vector<2x128xf32>
    %704 = vector.multi_reduction <add>, %703, %cst_141 [1] : vector<2x16x128xf32> to vector<2x128xf32>
    %705 = vector.shape_cast %704 : vector<2x128xf32> to vector<2x1x128xf32>
    %c0_142 = arith.constant 0 : index
    %c3_143 = arith.constant 3 : index
    %c0_144 = arith.constant 0 : index
    %706 = vector.load %arg16[%c0_142, %c3_143, %c0_144] : memref<2x8x128xf32, #tpu.memory_space<vmem>>, vector<2x1x128xf32>
    tpu.vector_store %arg16[%c0_142, %c3_143, %c0_144], %705 {strides = array<i32>} : memref<2x8x128xf32, #tpu.memory_space<vmem>>, vector<2x1x128xf32>,
    %707 = vector.extract_strided_slice %554 {offsets = [0, 4, 0], sizes = [2, 1, 128], strides = [1, 1, 1]} : vector<2x8x128xf32> to vector<2x1x128xf32>
    %708 = vector.shape_cast %552 : vector<16x128xf32> to vector<1x16x128xf32>
    %709 = vector.broadcast %707 : vector<2x1x128xf32> to vector<2x16x128xf32>
    %710 = vector.broadcast %708 : vector<1x16x128xf32> to vector<2x16x128xf32>
    %711 = arith.mulf %709, %710 : vector<2x16x128xf32>
    %712 = math.exp %711 : vector<2x16x128xf32>
    %713 = vector.extract_strided_slice %556 {offsets = [0, 4, 0], sizes = [2, 1, 16], strides = [1, 1, 1]} : vector<2x8x32xf32> to vector<2x1x16xf32>
    %714 = vector.shape_cast %713 : vector<2x1x16xf32> to vector<2x16xf32>
    %715 = vector.shape_cast %714 : vector<2x16xf32> to vector<2x16x1xf32>
    %716 = vector.shape_cast %715 : vector<2x16x1xf32> to vector<2x16x1xf32>
    %717 = vector.broadcast %716 : vector<2x16x1xf32> to vector<2x16x64xf32>
    %718 = vector.extract_strided_slice %556 {offsets = [0, 4, 16], sizes = [2, 1, 16], strides = [1, 1, 1]} : vector<2x8x32xf32> to vector<2x1x16xf32>
    %719 = vector.shape_cast %718 : vector<2x1x16xf32> to vector<2x16xf32>
    %720 = vector.shape_cast %719 : vector<2x16xf32> to vector<2x16x1xf32>
    %721 = vector.shape_cast %720 : vector<2x16x1xf32> to vector<2x16x1xf32>
    %722 = vector.broadcast %721 : vector<2x16x1xf32> to vector<2x16x64xf32>
    %723 = tpu.concatenate %717, %722 in 2 : vector<2x16x64xf32>, vector<2x16x64xf32> -> vector<2x16x128xf32>
    %724 = vector.extract_strided_slice %557 {offsets = [0, 4, 0], sizes = [2, 1, 16], strides = [1, 1, 1]} : vector<2x8x32xf32> to vector<2x1x16xf32>
    %725 = vector.shape_cast %724 : vector<2x1x16xf32> to vector<2x16xf32>
    %726 = vector.shape_cast %725 : vector<2x16xf32> to vector<2x16x1xf32>
    %727 = vector.shape_cast %726 : vector<2x16x1xf32> to vector<2x16x1xf32>
    %728 = vector.broadcast %727 : vector<2x16x1xf32> to vector<2x16x64xf32>
    %729 = vector.extract_strided_slice %557 {offsets = [0, 4, 16], sizes = [2, 1, 16], strides = [1, 1, 1]} : vector<2x8x32xf32> to vector<2x1x16xf32>
    %730 = vector.shape_cast %729 : vector<2x1x16xf32> to vector<2x16xf32>
    %731 = vector.shape_cast %730 : vector<2x16xf32> to vector<2x16x1xf32>
    %732 = vector.shape_cast %731 : vector<2x16x1xf32> to vector<2x16x1xf32>
    %733 = vector.broadcast %732 : vector<2x16x1xf32> to vector<2x16x64xf32>
    %734 = tpu.concatenate %728, %733 in 2 : vector<2x16x64xf32>, vector<2x16x64xf32> -> vector<2x16x128xf32>
    %735 = arith.mulf %712, %702 : vector<2x16x128xf32>
    %736 = vector.extract_strided_slice %555 {offsets = [0, 4, 0], sizes = [2, 1, 128], strides = [1, 1, 1]} : vector<2x8x128xf32> to vector<2x1x128xf32>
    %737 = vector.broadcast %736 : vector<2x1x128xf32> to vector<2x16x128xf32>
    %738 = arith.mulf %737, %723 : vector<2x16x128xf32>
    %739 = arith.addf %735, %738 : vector<2x16x128xf32>
    %740 = arith.mulf %734, %739 : vector<2x16x128xf32>
    %cst_145 = arith.constant dense<0.000000e+00> : vector<2x128xf32>
    %741 = vector.multi_reduction <add>, %740, %cst_145 [1] : vector<2x16x128xf32> to vector<2x128xf32>
    %742 = vector.shape_cast %741 : vector<2x128xf32> to vector<2x1x128xf32>
    %c0_146 = arith.constant 0 : index
    %c4_147 = arith.constant 4 : index
    %c0_148 = arith.constant 0 : index
    %743 = vector.load %arg16[%c0_146, %c4_147, %c0_148] : memref<2x8x128xf32, #tpu.memory_space<vmem>>, vector<2x1x128xf32>
    tpu.vector_store %arg16[%c0_146, %c4_147, %c0_148], %742 {strides = array<i32>} : memref<2x8x128xf32, #tpu.memory_space<vmem>>, vector<2x1x128xf32>,
    %744 = vector.extract_strided_slice %554 {offsets = [0, 5, 0], sizes = [2, 1, 128], strides = [1, 1, 1]} : vector<2x8x128xf32> to vector<2x1x128xf32>
    %745 = vector.shape_cast %552 : vector<16x128xf32> to vector<1x16x128xf32>
    %746 = vector.broadcast %744 : vector<2x1x128xf32> to vector<2x16x128xf32>
    %747 = vector.broadcast %745 : vector<1x16x128xf32> to vector<2x16x128xf32>
    %748 = arith.mulf %746, %747 : vector<2x16x128xf32>
    %749 = math.exp %748 : vector<2x16x128xf32>
    %750 = vector.extract_strided_slice %556 {offsets = [0, 5, 0], sizes = [2, 1, 16], strides = [1, 1, 1]} : vector<2x8x32xf32> to vector<2x1x16xf32>
    %751 = vector.shape_cast %750 : vector<2x1x16xf32> to vector<2x16xf32>
    %752 = vector.shape_cast %751 : vector<2x16xf32> to vector<2x16x1xf32>
    %753 = vector.shape_cast %752 : vector<2x16x1xf32> to vector<2x16x1xf32>
    %754 = vector.broadcast %753 : vector<2x16x1xf32> to vector<2x16x64xf32>
    %755 = vector.extract_strided_slice %556 {offsets = [0, 5, 16], sizes = [2, 1, 16], strides = [1, 1, 1]} : vector<2x8x32xf32> to vector<2x1x16xf32>
    %756 = vector.shape_cast %755 : vector<2x1x16xf32> to vector<2x16xf32>
    %757 = vector.shape_cast %756 : vector<2x16xf32> to vector<2x16x1xf32>
    %758 = vector.shape_cast %757 : vector<2x16x1xf32> to vector<2x16x1xf32>
    %759 = vector.broadcast %758 : vector<2x16x1xf32> to vector<2x16x64xf32>
    %760 = tpu.concatenate %754, %759 in 2 : vector<2x16x64xf32>, vector<2x16x64xf32> -> vector<2x16x128xf32>
    %761 = vector.extract_strided_slice %557 {offsets = [0, 5, 0], sizes = [2, 1, 16], strides = [1, 1, 1]} : vector<2x8x32xf32> to vector<2x1x16xf32>
    %762 = vector.shape_cast %761 : vector<2x1x16xf32> to vector<2x16xf32>
    %763 = vector.shape_cast %762 : vector<2x16xf32> to vector<2x16x1xf32>
    %764 = vector.shape_cast %763 : vector<2x16x1xf32> to vector<2x16x1xf32>
    %765 = vector.broadcast %764 : vector<2x16x1xf32> to vector<2x16x64xf32>
    %766 = vector.extract_strided_slice %557 {offsets = [0, 5, 16], sizes = [2, 1, 16], strides = [1, 1, 1]} : vector<2x8x32xf32> to vector<2x1x16xf32>
    %767 = vector.shape_cast %766 : vector<2x1x16xf32> to vector<2x16xf32>
    %768 = vector.shape_cast %767 : vector<2x16xf32> to vector<2x16x1xf32>
    %769 = vector.shape_cast %768 : vector<2x16x1xf32> to vector<2x16x1xf32>
    %770 = vector.broadcast %769 : vector<2x16x1xf32> to vector<2x16x64xf32>
    %771 = tpu.concatenate %765, %770 in 2 : vector<2x16x64xf32>, vector<2x16x64xf32> -> vector<2x16x128xf32>
    %772 = arith.mulf %749, %739 : vector<2x16x128xf32>
    %773 = vector.extract_strided_slice %555 {offsets = [0, 5, 0], sizes = [2, 1, 128], strides = [1, 1, 1]} : vector<2x8x128xf32> to vector<2x1x128xf32>
    %774 = vector.broadcast %773 : vector<2x1x128xf32> to vector<2x16x128xf32>
    %775 = arith.mulf %774, %760 : vector<2x16x128xf32>
    %776 = arith.addf %772, %775 : vector<2x16x128xf32>
    %777 = arith.mulf %771, %776 : vector<2x16x128xf32>
    %cst_149 = arith.constant dense<0.000000e+00> : vector<2x128xf32>
    %778 = vector.multi_reduction <add>, %777, %cst_149 [1] : vector<2x16x128xf32> to vector<2x128xf32>
    %779 = vector.shape_cast %778 : vector<2x128xf32> to vector<2x1x128xf32>
    %c0_150 = arith.constant 0 : index
    %c5_151 = arith.constant 5 : index
    %c0_152 = arith.constant 0 : index
    %780 = vector.load %arg16[%c0_150, %c5_151, %c0_152] : memref<2x8x128xf32, #tpu.memory_space<vmem>>, vector<2x1x128xf32>
    tpu.vector_store %arg16[%c0_150, %c5_151, %c0_152], %779 {strides = array<i32>} : memref<2x8x128xf32, #tpu.memory_space<vmem>>, vector<2x1x128xf32>,
    %781 = vector.extract_strided_slice %554 {offsets = [0, 6, 0], sizes = [2, 1, 128], strides = [1, 1, 1]} : vector<2x8x128xf32> to vector<2x1x128xf32>
    %782 = vector.shape_cast %552 : vector<16x128xf32> to vector<1x16x128xf32>
    %783 = vector.broadcast %781 : vector<2x1x128xf32> to vector<2x16x128xf32>
    %784 = vector.broadcast %782 : vector<1x16x128xf32> to vector<2x16x128xf32>
    %785 = arith.mulf %783, %784 : vector<2x16x128xf32>
    %786 = math.exp %785 : vector<2x16x128xf32>
    %787 = vector.extract_strided_slice %556 {offsets = [0, 6, 0], sizes = [2, 1, 16], strides = [1, 1, 1]} : vector<2x8x32xf32> to vector<2x1x16xf32>
    %788 = vector.shape_cast %787 : vector<2x1x16xf32> to vector<2x16xf32>
    %789 = vector.shape_cast %788 : vector<2x16xf32> to vector<2x16x1xf32>
    %790 = vector.shape_cast %789 : vector<2x16x1xf32> to vector<2x16x1xf32>
    %791 = vector.broadcast %790 : vector<2x16x1xf32> to vector<2x16x64xf32>
    %792 = vector.extract_strided_slice %556 {offsets = [0, 6, 16], sizes = [2, 1, 16], strides = [1, 1, 1]} : vector<2x8x32xf32> to vector<2x1x16xf32>
    %793 = vector.shape_cast %792 : vector<2x1x16xf32> to vector<2x16xf32>
    %794 = vector.shape_cast %793 : vector<2x16xf32> to vector<2x16x1xf32>
    %795 = vector.shape_cast %794 : vector<2x16x1xf32> to vector<2x16x1xf32>
    %796 = vector.broadcast %795 : vector<2x16x1xf32> to vector<2x16x64xf32>
    %797 = tpu.concatenate %791, %796 in 2 : vector<2x16x64xf32>, vector<2x16x64xf32> -> vector<2x16x128xf32>
    %798 = vector.extract_strided_slice %557 {offsets = [0, 6, 0], sizes = [2, 1, 16], strides = [1, 1, 1]} : vector<2x8x32xf32> to vector<2x1x16xf32>
    %799 = vector.shape_cast %798 : vector<2x1x16xf32> to vector<2x16xf32>
    %800 = vector.shape_cast %799 : vector<2x16xf32> to vector<2x16x1xf32>
    %801 = vector.shape_cast %800 : vector<2x16x1xf32> to vector<2x16x1xf32>
    %802 = vector.broadcast %801 : vector<2x16x1xf32> to vector<2x16x64xf32>
    %803 = vector.extract_strided_slice %557 {offsets = [0, 6, 16], sizes = [2, 1, 16], strides = [1, 1, 1]} : vector<2x8x32xf32> to vector<2x1x16xf32>
    %804 = vector.shape_cast %803 : vector<2x1x16xf32> to vector<2x16xf32>
    %805 = vector.shape_cast %804 : vector<2x16xf32> to vector<2x16x1xf32>
    %806 = vector.shape_cast %805 : vector<2x16x1xf32> to vector<2x16x1xf32>
    %807 = vector.broadcast %806 : vector<2x16x1xf32> to vector<2x16x64xf32>
    %808 = tpu.concatenate %802, %807 in 2 : vector<2x16x64xf32>, vector<2x16x64xf32> -> vector<2x16x128xf32>
    %809 = arith.mulf %786, %776 : vector<2x16x128xf32>
    %810 = vector.extract_strided_slice %555 {offsets = [0, 6, 0], sizes = [2, 1, 128], strides = [1, 1, 1]} : vector<2x8x128xf32> to vector<2x1x128xf32>
    %811 = vector.broadcast %810 : vector<2x1x128xf32> to vector<2x16x128xf32>
    %812 = arith.mulf %811, %797 : vector<2x16x128xf32>
    %813 = arith.addf %809, %812 : vector<2x16x128xf32>
    %814 = arith.mulf %808, %813 : vector<2x16x128xf32>
    %cst_153 = arith.constant dense<0.000000e+00> : vector<2x128xf32>
    %815 = vector.multi_reduction <add>, %814, %cst_153 [1] : vector<2x16x128xf32> to vector<2x128xf32>
    %816 = vector.shape_cast %815 : vector<2x128xf32> to vector<2x1x128xf32>
    %c0_154 = arith.constant 0 : index
    %c6_155 = arith.constant 6 : index
    %c0_156 = arith.constant 0 : index
    %817 = vector.load %arg16[%c0_154, %c6_155, %c0_156] : memref<2x8x128xf32, #tpu.memory_space<vmem>>, vector<2x1x128xf32>
    tpu.vector_store %arg16[%c0_154, %c6_155, %c0_156], %816 {strides = array<i32>} : memref<2x8x128xf32, #tpu.memory_space<vmem>>, vector<2x1x128xf32>,
    %818 = vector.extract_strided_slice %554 {offsets = [0, 7, 0], sizes = [2, 1, 128], strides = [1, 1, 1]} : vector<2x8x128xf32> to vector<2x1x128xf32>
    %819 = vector.shape_cast %552 : vector<16x128xf32> to vector<1x16x128xf32>
    %820 = vector.broadcast %818 : vector<2x1x128xf32> to vector<2x16x128xf32>
    %821 = vector.broadcast %819 : vector<1x16x128xf32> to vector<2x16x128xf32>
    %822 = arith.mulf %820, %821 : vector<2x16x128xf32>
    %823 = math.exp %822 : vector<2x16x128xf32>
    %824 = vector.extract_strided_slice %556 {offsets = [0, 7, 0], sizes = [2, 1, 16], strides = [1, 1, 1]} : vector<2x8x32xf32> to vector<2x1x16xf32>
    %825 = vector.shape_cast %824 : vector<2x1x16xf32> to vector<2x16xf32>
    %826 = vector.shape_cast %825 : vector<2x16xf32> to vector<2x16x1xf32>
    %827 = vector.shape_cast %826 : vector<2x16x1xf32> to vector<2x16x1xf32>
    %828 = vector.broadcast %827 : vector<2x16x1xf32> to vector<2x16x64xf32>
    %829 = vector.extract_strided_slice %556 {offsets = [0, 7, 16], sizes = [2, 1, 16], strides = [1, 1, 1]} : vector<2x8x32xf32> to vector<2x1x16xf32>
    %830 = vector.shape_cast %829 : vector<2x1x16xf32> to vector<2x16xf32>
    %831 = vector.shape_cast %830 : vector<2x16xf32> to vector<2x16x1xf32>
    %832 = vector.shape_cast %831 : vector<2x16x1xf32> to vector<2x16x1xf32>
    %833 = vector.broadcast %832 : vector<2x16x1xf32> to vector<2x16x64xf32>
    %834 = tpu.concatenate %828, %833 in 2 : vector<2x16x64xf32>, vector<2x16x64xf32> -> vector<2x16x128xf32>
    %835 = vector.extract_strided_slice %557 {offsets = [0, 7, 0], sizes = [2, 1, 16], strides = [1, 1, 1]} : vector<2x8x32xf32> to vector<2x1x16xf32>
    %836 = vector.shape_cast %835 : vector<2x1x16xf32> to vector<2x16xf32>
    %837 = vector.shape_cast %836 : vector<2x16xf32> to vector<2x16x1xf32>
    %838 = vector.shape_cast %837 : vector<2x16x1xf32> to vector<2x16x1xf32>
    %839 = vector.broadcast %838 : vector<2x16x1xf32> to vector<2x16x64xf32>
    %840 = vector.extract_strided_slice %557 {offsets = [0, 7, 16], sizes = [2, 1, 16], strides = [1, 1, 1]} : vector<2x8x32xf32> to vector<2x1x16xf32>
    %841 = vector.shape_cast %840 : vector<2x1x16xf32> to vector<2x16xf32>
    %842 = vector.shape_cast %841 : vector<2x16xf32> to vector<2x16x1xf32>
    %843 = vector.shape_cast %842 : vector<2x16x1xf32> to vector<2x16x1xf32>
    %844 = vector.broadcast %843 : vector<2x16x1xf32> to vector<2x16x64xf32>
    %845 = tpu.concatenate %839, %844 in 2 : vector<2x16x64xf32>, vector<2x16x64xf32> -> vector<2x16x128xf32>
    %846 = arith.mulf %823, %813 : vector<2x16x128xf32>
    %847 = vector.extract_strided_slice %555 {offsets = [0, 7, 0], sizes = [2, 1, 128], strides = [1, 1, 1]} : vector<2x8x128xf32> to vector<2x1x128xf32>
    %848 = vector.broadcast %847 : vector<2x1x128xf32> to vector<2x16x128xf32>
    %849 = arith.mulf %848, %834 : vector<2x16x128xf32>
    %850 = arith.addf %846, %849 : vector<2x16x128xf32>
    %851 = arith.mulf %845, %850 : vector<2x16x128xf32>
    %cst_157 = arith.constant dense<0.000000e+00> : vector<2x128xf32>
    %852 = vector.multi_reduction <add>, %851, %cst_157 [1] : vector<2x16x128xf32> to vector<2x128xf32>
    %853 = vector.shape_cast %852 : vector<2x128xf32> to vector<2x1x128xf32>
    %c0_158 = arith.constant 0 : index
    %c7_159 = arith.constant 7 : index
    %c0_160 = arith.constant 0 : index
    %854 = vector.load %arg16[%c0_158, %c7_159, %c0_160] : memref<2x8x128xf32, #tpu.memory_space<vmem>>, vector<2x1x128xf32>
    tpu.vector_store %arg16[%c0_158, %c7_159, %c0_160], %853 {strides = array<i32>} : memref<2x8x128xf32, #tpu.memory_space<vmem>>, vector<2x1x128xf32>,
    %c0_161 = arith.constant 0 : index
    %c0_162 = arith.constant 0 : index
    %c0_163 = arith.constant 0 : index
    %855 = vector.load %arg16[%c0_161, %c0_162, %c0_163] : memref<2x8x128xf32, #tpu.memory_space<vmem>>, vector<2x8x128xf32>
    %856 = vector.shape_cast %855 : vector<2x8x128xf32> to vector<16x128xf32>
    %c1_164 = arith.constant 1 : index
    %c0_165 = arith.constant 0 : index
    %c0_166 = arith.constant 0 : index
    %857 = vector.load %arg11[%c1_164, %c0_165, %c0_166] : memref<2x1x128xf32, #tpu.memory_space<vmem>>, vector<1x1x128xf32>
    %858 = vector.shape_cast %857 : vector<1x1x128xf32> to vector<1x128xf32>
    %859 = vector.broadcast %858 : vector<1x128xf32> to vector<16x128xf32>
    %860 = arith.mulf %532, %859 : vector<16x128xf32>
    %861 = arith.addf %856, %860 : vector<16x128xf32>
    %862 = vector.shape_cast %861 : vector<16x128xf32> to vector<2x8x128xf32>
    %863 = vector.extract_strided_slice %862 {offsets = [0, 7, 0], sizes = [2, 1, 128], strides = [1, 1, 1]} : vector<2x8x128xf32> to vector<2x1x128xf32>
    %864 = vector.extract_strided_slice %862 {offsets = [0, 6, 0], sizes = [2, 1, 128], strides = [1, 1, 1]} : vector<2x8x128xf32> to vector<2x1x128xf32>
    %865 = vector.extract_strided_slice %862 {offsets = [0, 5, 0], sizes = [2, 1, 128], strides = [1, 1, 1]} : vector<2x8x128xf32> to vector<2x1x128xf32>
    %866 = vector.extract_strided_slice %862 {offsets = [0, 4, 0], sizes = [2, 1, 128], strides = [1, 1, 1]} : vector<2x8x128xf32> to vector<2x1x128xf32>
    %867 = vector.extract_strided_slice %862 {offsets = [0, 3, 0], sizes = [2, 1, 128], strides = [1, 1, 1]} : vector<2x8x128xf32> to vector<2x1x128xf32>
    %868 = vector.extract_strided_slice %862 {offsets = [0, 2, 0], sizes = [2, 1, 128], strides = [1, 1, 1]} : vector<2x8x128xf32> to vector<2x1x128xf32>
    %869 = vector.extract_strided_slice %862 {offsets = [0, 1, 0], sizes = [2, 1, 128], strides = [1, 1, 1]} : vector<2x8x128xf32> to vector<2x1x128xf32>
    %870 = vector.extract_strided_slice %862 {offsets = [0, 0, 0], sizes = [2, 1, 128], strides = [1, 1, 1]} : vector<2x8x128xf32> to vector<2x1x128xf32>
    %871 = tpu.concatenate %863, %864, %865, %866, %867, %868, %869, %870 in 1 : vector<2x1x128xf32>, vector<2x1x128xf32>, vector<2x1x128xf32>, vector<2x1x128xf32>, vector<2x1x128xf32>, vector<2x1x128xf32>, vector<2x1x128xf32>, vector<2x1x128xf32> -> vector<2x8x128xf32>
    %872 = vector.shape_cast %871 : vector<2x8x128xf32> to vector<16x128xf32>
    %873 = arith.select %9, %861, %872 : vector<16x128xi1>, vector<16x128xf32>
    %cst_167 = arith.constant 0.000000e+00 : f32
    %874 = vector.broadcast %cst_167 : f32 to vector<16x64xf32>
    %875 = arith.subf %874, %477 : vector<16x64xf32>
    %876 = math.exp %875 : vector<16x64xf32>
    %cst_168 = arith.constant 1.000000e+00 : f32
    %877 = vector.broadcast %cst_168 : f32 to vector<16x64xf32>
    %878 = arith.addf %877, %876 : vector<16x64xf32>
    %879 = tpu.reciprocal %878 {approx = true} : vector<16x64xf32> -> vector<16x64xf32>
    %880 = arith.mulf %477, %879 : vector<16x64xf32>
    %881 = tpu.concatenate %880, %880 in 1 : vector<16x64xf32>, vector<16x64xf32> -> vector<16x128xf32>
    %882 = arith.mulf %873, %881 : vector<16x128xf32>
    %c1_169 = arith.constant 1 : index
    %c0_170 = arith.constant 0 : index
    %c0_171 = arith.constant 0 : index
    %883 = vector.load %arg12[%c1_169, %c0_170, %c0_171] : memref<2x128x32xf32, #tpu.memory_space<vmem>>, vector<1x128x32xf32>
    %884 = vector.shape_cast %883 : vector<1x128x32xf32> to vector<128x32xf32>
    %cst_172 = arith.constant dense<0.000000e+00> : vector<16x32xf32>
    %885 = tpu.matmul %882, %884, %cst_172 {dimension_numbers = #tpu.dot_dimension_numbers<[1], [0], [0], [1], [0, 0, 1, 1], [], []>} : vector<16x128xf32>, vector<128x32xf32>, vector<16x32xf32> -> vector<16x32xf32>
    %886 = arith.addf %885, %448 : vector<16x32xf32>
    %c0_173 = arith.constant 0 : index
    %c0_174 = arith.constant 0 : index
    %887 = vector.load %arg13[%c0_173, %c0_174] : memref<1x32xf32, #tpu.memory_space<vmem>>, vector<1x32xf32>
    %c0_175 = arith.constant 0 : index
    %c0_176 = arith.constant 0 : index
    %888 = vector.load %arg14[%c0_175, %c0_176] : memref<1x32xf32, #tpu.memory_space<vmem>>, vector<1x32xf32>
    %cst_177 = arith.constant dense<0.000000e+00> : vector<16xf32>
    %889 = vector.multi_reduction <add>, %886, %cst_177 [1] : vector<16x32xf32> to vector<16xf32>
    %890 = vector.shape_cast %889 : vector<16xf32> to vector<16x1xf32>
    %cst_178 = arith.constant 3.200000e+01 : f32
    %891 = vector.broadcast %cst_178 : f32 to vector<16x1xf32>
    %892 = arith.divf %890, %891 : vector<16x1xf32>
    %893 = vector.broadcast %892 : vector<16x1xf32> to vector<16x32xf32>
    %894 = arith.subf %886, %893 : vector<16x32xf32>
    %895 = arith.mulf %894, %894 : vector<16x32xf32>
    %cst_179 = arith.constant dense<0.000000e+00> : vector<16xf32>
    %896 = vector.multi_reduction <add>, %895, %cst_179 [1] : vector<16x32xf32> to vector<16xf32>
    %897 = vector.shape_cast %896 : vector<16xf32> to vector<16x1xf32>
    %cst_180 = arith.constant 3.200000e+01 : f32
    %898 = vector.broadcast %cst_180 : f32 to vector<16x1xf32>
    %899 = arith.divf %897, %898 : vector<16x1xf32>
    %cst_181 = arith.constant 9.99999974E-6 : f32
    %900 = vector.broadcast %cst_181 : f32 to vector<16x1xf32>
    %901 = arith.addf %899, %900 : vector<16x1xf32>
    %902 = math.rsqrt %901 : vector<16x1xf32>
    %903 = vector.broadcast %902 : vector<16x1xf32> to vector<16x32xf32>
    %904 = arith.mulf %894, %903 : vector<16x32xf32>
    %905 = vector.broadcast %887 : vector<1x32xf32> to vector<16x32xf32>
    %906 = arith.mulf %904, %905 : vector<16x32xf32>
    %907 = vector.broadcast %888 : vector<1x32xf32> to vector<16x32xf32>
    %908 = arith.addf %906, %907 : vector<16x32xf32>
    %909 = vector.shape_cast %908 : vector<16x32xf32> to vector<2x8x32xf32>
    %c0_182 = arith.constant 0 : index
    %c0_183 = arith.constant 0 : index
    %c0_184 = arith.constant 0 : index
    %910 = vector.load %arg15[%c0_182, %c0_183, %c0_184] : memref<2x8x32xf32, #tpu.memory_space<vmem>>, vector<2x8x32xf32>
    tpu.vector_store %arg15[%c0_182, %c0_183, %c0_184], %909 {strides = array<i32>} : memref<2x8x32xf32, #tpu.memory_space<vmem>>, vector<2x8x32xf32>,
    return
  }
  func.func @transform_0(%arg0: i32) -> (i32, i32, i32) {
    %c0_i32 = arith.constant 0 : i32
    %c0_i32_0 = arith.constant 0 : i32
    %c0_i32_1 = arith.constant 0 : i32
    return %arg0, %c0_i32, %c0_i32_0 : i32, i32, i32
  }
  func.func @transform_1(%arg0: i32) -> (i32, i32, i32) {
    %c0_i32 = arith.constant 0 : i32
    %c0_i32_0 = arith.constant 0 : i32
    %c0_i32_1 = arith.constant 0 : i32
    return %arg0, %c0_i32, %c0_i32_0 : i32, i32, i32
  }
  func.func @transform_2(%arg0: i32) -> (i32, i32, i32) {
    %c0_i32 = arith.constant 0 : i32
    %c0_i32_0 = arith.constant 0 : i32
    %c0_i32_1 = arith.constant 0 : i32
    %c0_i32_2 = arith.constant 0 : i32
    return %c0_i32, %c0_i32_0, %c0_i32_1 : i32, i32, i32
  }
  func.func @transform_3(%arg0: i32) -> (i32, i32, i32) {
    %c0_i32 = arith.constant 0 : i32
    %c0_i32_0 = arith.constant 0 : i32
    %c0_i32_1 = arith.constant 0 : i32
    %c0_i32_2 = arith.constant 0 : i32
    return %c0_i32, %c0_i32_0, %c0_i32_1 : i32, i32, i32
  }
  func.func @transform_4(%arg0: i32) -> (i32, i32, i32) {
    %c0_i32 = arith.constant 0 : i32
    %c0_i32_0 = arith.constant 0 : i32
    %c0_i32_1 = arith.constant 0 : i32
    %c0_i32_2 = arith.constant 0 : i32
    return %c0_i32, %c0_i32_0, %c0_i32_1 : i32, i32, i32
  }
  func.func @transform_5(%arg0: i32) -> (i32, i32, i32) {
    %c0_i32 = arith.constant 0 : i32
    %c0_i32_0 = arith.constant 0 : i32
    %c0_i32_1 = arith.constant 0 : i32
    %c0_i32_2 = arith.constant 0 : i32
    return %c0_i32, %c0_i32_0, %c0_i32_1 : i32, i32, i32
  }
  func.func @transform_6(%arg0: i32) -> (i32, i32, i32) {
    %c0_i32 = arith.constant 0 : i32
    %c0_i32_0 = arith.constant 0 : i32
    %c0_i32_1 = arith.constant 0 : i32
    %c0_i32_2 = arith.constant 0 : i32
    return %c0_i32, %c0_i32_0, %c0_i32_1 : i32, i32, i32
  }
  func.func @transform_7(%arg0: i32) -> (i32, i32, i32) {
    %c0_i32 = arith.constant 0 : i32
    %c0_i32_0 = arith.constant 0 : i32
    %c0_i32_1 = arith.constant 0 : i32
    %c0_i32_2 = arith.constant 0 : i32
    return %c0_i32, %c0_i32_0, %c0_i32_1 : i32, i32, i32
  }
  func.func @transform_8(%arg0: i32) -> (i32, i32, i32) {
    %c0_i32 = arith.constant 0 : i32
    %c0_i32_0 = arith.constant 0 : i32
    %c0_i32_1 = arith.constant 0 : i32
    %c0_i32_2 = arith.constant 0 : i32
    return %c0_i32, %c0_i32_0, %c0_i32_1 : i32, i32, i32
  }
  func.func @transform_9(%arg0: i32) -> (i32, i32, i32) {
    %c0_i32 = arith.constant 0 : i32
    %c0_i32_0 = arith.constant 0 : i32
    %c0_i32_1 = arith.constant 0 : i32
    %c0_i32_2 = arith.constant 0 : i32
    return %c0_i32, %c0_i32_0, %c0_i32_1 : i32, i32, i32
  }
  func.func @transform_10(%arg0: i32) -> (i32, i32, i32) {
    %c0_i32 = arith.constant 0 : i32
    %c0_i32_0 = arith.constant 0 : i32
    %c0_i32_1 = arith.constant 0 : i32
    %c0_i32_2 = arith.constant 0 : i32
    return %c0_i32, %c0_i32_0, %c0_i32_1 : i32, i32, i32
  }
  func.func @transform_11(%arg0: i32) -> (i32, i32, i32) {
    %c0_i32 = arith.constant 0 : i32
    %c0_i32_0 = arith.constant 0 : i32
    %c0_i32_1 = arith.constant 0 : i32
    %c0_i32_2 = arith.constant 0 : i32
    return %c0_i32, %c0_i32_0, %c0_i32_1 : i32, i32, i32
  }
  func.func @transform_12(%arg0: i32) -> (i32, i32) {
    %c0_i32 = arith.constant 0 : i32
    %c0_i32_0 = arith.constant 0 : i32
    %c0_i32_1 = arith.constant 0 : i32
    return %c0_i32, %c0_i32_0 : i32, i32
  }
  func.func @transform_13(%arg0: i32) -> (i32, i32) {
    %c0_i32 = arith.constant 0 : i32
    %c0_i32_0 = arith.constant 0 : i32
    %c0_i32_1 = arith.constant 0 : i32
    return %c0_i32, %c0_i32_0 : i32, i32
  }
  func.func @transform_14(%arg0: i32) -> (i32, i32, i32) {
    %c0_i32 = arith.constant 0 : i32
    %c0_i32_0 = arith.constant 0 : i32
    %c0_i32_1 = arith.constant 0 : i32
    return %arg0, %c0_i32, %c0_i32_0 : i32, i32, i32
  }
}

</mosaic_0001>

<llo_original>
// kernel: _mixer_forward.1
$region0: #{_mixer_forward.1}
  #allocation0 [shape = 'u32[]', space=smem, size = 0x4, offset = 0x4, fixed_abs, tag = 'smem constant byte address 0x4 - core index']
  #allocation1 [shape = 'u32[72,128]{1,0:T(1,128)}', space=vmem, size = 0x9000, scoped, tag = 'internal scratch']
  #allocation2 [shape = 'f32[2,8,128]{2,1,0:T(8,128)}', space=vmem, size = 0x2000, scoped, tag = 'scratch operand']
  %s0 = inlined_call_operand.vmem [shape: f32[2,8,32], index: 0, kind: input, shape index: {}]
  %s1 = inlined_call_operand.vmem [shape: f32[2,8,32], index: 1, kind: input, shape index: {}]
  %s2 = inlined_call_operand.vmem [shape: f32[2,1,32], index: 2, kind: input, shape index: {}]
  %s3 = inlined_call_operand.vmem [shape: f32[2,1,32], index: 3, kind: input, shape index: {}]
  %s4 = inlined_call_operand.vmem [shape: f32[2,32,128], index: 4, kind: input, shape index: {}]
  %s5 = inlined_call_operand.vmem [shape: f32[2,4,128], index: 5, kind: input, shape index: {}]
  %s6 = inlined_call_operand.vmem [shape: f32[2,1,128], index: 6, kind: input, shape index: {}]
  %s7 = inlined_call_operand.hbm [shape: f32[2,128,256], index: 7, kind: input, shape index: {}]
  %s8 = inlined_call_operand.vmem [shape: f32[2,1,128], index: 8, kind: input, shape index: {}]
  %s9 = inlined_call_operand.vmem [shape: f32[2,16,128], index: 9, kind: input, shape index: {}]
  %s10 = inlined_call_operand.vmem [shape: f32[2,1,128], index: 10, kind: input, shape index: {}]
  %s11 = inlined_call_operand.vmem [shape: f32[2,128,32], index: 11, kind: input, shape index: {}]
  %s12 = inlined_call_operand.vmem [shape: f32[1,32], index: 12, kind: input, shape index: {}]
  %s13 = inlined_call_operand.vmem [shape: f32[1,32], index: 13, kind: input, shape index: {}]
  %s14 = inlined_call_operand.hbm [shape: f32[2,8,32], index: 14, kind: output, shape index: {}]
  %s15 = sld [smem:[#allocation0]]
  $region70: #{_mixer_forward.1} parent=0
    _
  %s17 = ssub.s32 1, %s15
  %s18 = scalar_select 0, %s17, %s15
  $region1: #{_mixer_forward.1} parent=0
    #allocation3 [shape = 'u8[262144]{0}', space=vmem, size = 0x40000, scoped, tag = 'input window, operand 7, single buffered']
    #allocation4 [shape = 's32[1]{0}', space=sflag, size = 0x4, scoped, tag = 'scoped memory for _mixer_forward.1']
    #allocation5 [shape = 's32[1]{0}', space=sflag, size = 0x4, scoped, tag = 'scoped memory for _mixer_forward.1']
    #allocation6 [shape = 'u8[8192]{0}', space=vmem, size = 0x2000, scoped, tag = 'output window, operand 0, single buffered']
    %19 = vsyncpa [#allocation4], 0
    %20 = vsyncpa [#allocation5], 0
    // Predicated region
    $region2: #{_mixer_forward.1} parent=1 // pred_check
      _
    $region3: #{_mixer_forward.1} parent=1 // pred_check_branch
      %22 = sbr.rel (0) target = $region5
    $region4: #{_mixer_forward.1} parent=1 // pred_region
      _
    $region5: #{_mixer_forward.1} parent=1 // pred_fallthru
      _
    // Predicated region
    $region6: #{_mixer_forward.1} parent=1 // pred_check
      _
    $region7: #{_mixer_forward.1} parent=1 // pred_check_branch
      %24 = sbr.rel (0) target = $region9
    $region8: #{_mixer_forward.1} parent=1 // pred_region
      _
    $region9: #{_mixer_forward.1} parent=1 // pred_fallthru
      _
    // Predicated region
    $region10: #{_mixer_forward.1} parent=1 // pred_check
      _
    $region11: #{_mixer_forward.1} parent=1 // pred_check_branch
      %26 = sbr.rel (0) target = $region13
    $region12: #{_mixer_forward.1} parent=1 // pred_region
      _
    $region13: #{_mixer_forward.1} parent=1 // pred_fallthru
      _
    // Predicated region
    $region14: #{_mixer_forward.1} parent=1 // pred_check
      _
    $region15: #{_mixer_forward.1} parent=1 // pred_check_branch
      %28 = sbr.rel (0) target = $region17
    $region16: #{_mixer_forward.1} parent=1 // pred_region
      _
    $region17: #{_mixer_forward.1} parent=1 // pred_fallthru
      _
    // Predicated region
    $region18: #{_mixer_forward.1} parent=1 // pred_check
      _
    $region19: #{_mixer_forward.1} parent=1 // pred_check_branch
      %30 = sbr.rel (0) target = $region21
    $region20: #{_mixer_forward.1} parent=1 // pred_region
      _
    $region21: #{_mixer_forward.1} parent=1 // pred_fallthru
      _
    // Predicated region
    $region22: #{_mixer_forward.1} parent=1 // pred_check
      _
    $region23: #{_mixer_forward.1} parent=1 // pred_check_branch
      %32 = sbr.rel (0) target = $region25
    $region24: #{_mixer_forward.1} parent=1 // pred_region
      _
    $region25: #{_mixer_forward.1} parent=1 // pred_fallthru
      _
    // Predicated region
    $region26: #{_mixer_forward.1} parent=1 // pred_check
      _
    $region27: #{_mixer_forward.1} parent=1 // pred_check_branch
      %34 = sbr.rel (0) target = $region29
    $region28: #{_mixer_forward.1} parent=1 // pred_region
      _
    $region29: #{_mixer_forward.1} parent=1 // pred_fallthru
      _
    // Predicated region
    $region30: #{_mixer_forward.1} parent=1 // pred_check
      _
    $region31: #{_mixer_forward.1} parent=1 // pred_check_branch
      %36 = sbr.rel (0) target = $region33
    $region32: #{_mixer_forward.1} parent=1 // pred_region
      %38 = vsyncadd [#allocation4], 0
      %s39 = sshll.u32 %s7, 4
      %s40 = int_to_ptr.hbm [resolvable:$true] %s39
      %s41 = sshll.u32 [#allocation3], 4
      %s42 = int_to_ptr.vmem [resolvable:$true] %s41
      %47 = dma.hbm_to_vmem [thread:$0]  %s40, 8192, %s42, [#allocation4], 256, 256, 16
    $region33: #{_mixer_forward.1} parent=1 // pred_fallthru
      _
    // Predicated region
    $region34: #{_mixer_forward.1} parent=1 // pred_check
      _
    $region35: #{_mixer_forward.1} parent=1 // pred_check_branch
      %49 = sbr.rel (0) target = $region37
    $region36: #{_mixer_forward.1} parent=1 // pred_region
      _
    $region37: #{_mixer_forward.1} parent=1 // pred_fallthru
      _
    // Predicated region
    $region38: #{_mixer_forward.1} parent=1 // pred_check
      _
    $region39: #{_mixer_forward.1} parent=1 // pred_check_branch
      %51 = sbr.rel (0) target = $region41
    $region40: #{_mixer_forward.1} parent=1 // pred_region
      _
    $region41: #{_mixer_forward.1} parent=1 // pred_fallthru
      _
    // Predicated region
    $region42: #{_mixer_forward.1} parent=1 // pred_check
      _
    $region43: #{_mixer_forward.1} parent=1 // pred_check_branch
      %53 = sbr.rel (0) target = $region45
    $region44: #{_mixer_forward.1} parent=1 // pred_region
      _
    $region45: #{_mixer_forward.1} parent=1 // pred_fallthru
      _
    // Predicated region
    $region46: #{_mixer_forward.1} parent=1 // pred_check
      _
    $region47: #{_mixer_forward.1} parent=1 // pred_check_branch
      %55 = sbr.rel (0) target = $region49
    $region48: #{_mixer_forward.1} parent=1 // pred_region
      _
    $region49: #{_mixer_forward.1} parent=1 // pred_fallthru
      _
    // Predicated region
    $region50: #{_mixer_forward.1} parent=1 // pred_check
      _
    $region51: #{_mixer_forward.1} parent=1 // pred_check_branch
      %57 = sbr.rel (0) target = $region53
    $region52: #{_mixer_forward.1} parent=1 // pred_region
      _
    $region53: #{_mixer_forward.1} parent=1 // pred_fallthru
      _
    // Predicated region
    $region54: #{_mixer_forward.1} parent=1 // pred_check
      _
    $region55: #{_mixer_forward.1} parent=1 // pred_check_branch
      %59 = sbr.rel (0) target = $region57
    $region56: #{_mixer_forward.1} parent=1 // pred_region
      _
    $region57: #{_mixer_forward.1} parent=1 // pred_fallthru
      _
    // Predicated region
    $region58: #{_mixer_forward.1} parent=1 // pred_check
      _
    $region59: #{_mixer_forward.1} parent=1 // pred_check_branch
      %61 = sbr.rel (0) target = $region61
    $region60: #{_mixer_forward.1} parent=1 // pred_region
      %63 = dma.done [#allocation4], 8192
    $region61: #{_mixer_forward.1} parent=1 // pred_fallthru
      _
    %v64 = vld [vmem:[%s0] sm:$0xff]
    %v65 = vld [vmem:[%s0 + $0x8] sm:$0xff]
    %v66 = vld [vmem:[%s1] sm:$0xff]
    %v67 = vld [vmem:[%s1 + $0x8] sm:$0xff]
    %v68 = vadd.f32 %v64, %v66
    %v69 = vadd.f32 %v65, %v67
    %v70 = vlaneseq
    %v71 = vshrl.u32 %v70, 7
    %v72 = vlaneseq
    %v73 = vand.u32 %v72, 127
    %vm74 = vcmp.lt.s32.totalorder %v73, 64
    %v75 = vadd.f32 %v68, 0.0
    %v76 = vadd.f32 %v69, 0.0
    %v77 = vld [vmem:[%s2] sm:$0x1]
    %v78 = vld [vmem:[%s3] sm:$0x1]
    %vm79 = vcmask 261120
    %v80 = vsel %vm79, %v75, 0.0
    %81 = vadd.xlane.f32.xlu0 %v80
    %v82 = vpop.xlane.xlu0 %81
    %v83 = vsel %vm79, %v76, 0.0
    %84 = vadd.xlane.f32.xlu0 %v83
    %v85 = vpop.xlane.xlu0 %84
    %v86 = vrcp.pop 32.0
    %v87 = vmul.f32 32.0, %v86
    %v88 = vsub.f32 1.0, %v87
    %v89 = vmul.f32 %v86, %v88
    %v90 = vadd.f32 %v86, %v89
    %vm91 = vweird.f32 %v86
    %v92 = vsel %vm91, %v86, %v90
    %v93 = vmul.f32 %v82, %v92
    %v94 = vmul.f32 %v85, %v92
    %v95 = vsub.f32 %v75, %v93
    %v96 = vsub.f32 %v76, %v94
    %v97 = vmul.f32 %v95, %v95
    %v98 = vmul.f32 %v96, %v96
    %v99 = vsel %vm79, %v97, 0.0
    %100 = vadd.xlane.f32.xlu0 %v99
    %v101 = vpop.xlane.xlu0 %100
    %v102 = vsel %vm79, %v98, 0.0
    %103 = vadd.xlane.f32.xlu0 %v102
    %v104 = vpop.xlane.xlu0 %103
    %v105 = vmul.f32 %v101, %v92
    %v106 = vmul.f32 %v104, %v92
    %v107 = vadd.f32 %v105, 1e-05
    %v108 = vadd.f32 %v106, 1e-05
    %v109 = vrsqrt.pop %v107
    %v110 = vmul.f32 %v109, %v107
    %v111 = vmul.f32 %v110, %v109
    %v112 = vmul.f32 0.5, %v111
    %v113 = vsub.f32 1.5, %v112
    %v114 = vmul.f32 %v109, %v113
    %vm115 = vweird.f32 %v107
    %vm116 = vweird.f32 %v109
    %vm117 = vmor %vm115, %vm116
    %v118 = vsel %vm117, %v109, %v114
    %v119 = vrsqrt.pop %v108
    %v120 = vmul.f32 %v119, %v108
    %v121 = vmul.f32 %v120, %v119
    %v122 = vmul.f32 0.5, %v121
    %v123 = vsub.f32 1.5, %v122
    %v124 = vmul.f32 %v119, %v123
    %vm125 = vweird.f32 %v108
    %vm126 = vweird.f32 %v119
    %vm127 = vmor %vm125, %vm126
    %v128 = vsel %vm127, %v119, %v124
    %v129 = vmul.f32 %v95, %v118
    %v130 = vmul.f32 %v96, %v128
    %v132 = vperm.slane %v77, 0
    %v134 = vmul.f32 %v129, %v132
    %v135 = vmul.f32 %v130, %v132
    %v137 = vperm.slane %v78, 0
    %v139 = vadd.f32 %v134, %v137
    %v140 = vadd.f32 %v135, %v137
    %v141 = vld [vmem:[%s4] sm:$0xff]
    %v142 = vld [vmem:[%s4 + $0x8] sm:$0xff]
    %v143 = vld [vmem:[%s4 + $0x10] sm:$0xff]
    %v144 = vld [vmem:[%s4 + $0x18] sm:$0xff]
    %v146 = vsel %vm79, %v139, 0
    %v149 = vsel %vm79, %v140, 0
    %151 = vmatpush.msra.mxu0 0.0
    %152 = vmatpush.msra.mxu0 0.0
    %153 = vmatpush.msra.mxu0 0.0
    %154 = vmatpush.msra.mxu0 0.0
    %155 = vmatpush.msra.mxu0 0.0
    %156 = vmatpush.msra.mxu0 0.0
    %157 = vmatpush.msra.mxu0 0.0
    %158 = vmatpush.msra.mxu0 0.0
    %159 = vmatpush.msra.mxu0 0.0
    %160 = vmatpush.msra.mxu0 0.0
    %161 = vmatpush.msra.mxu0 0.0
    %162 = vmatpush.msra.mxu0 0.0
    %163 = vmatpush.msra.mxu0 %v144
    %164 = vmatpush.msra.mxu0 %v143
    %165 = vmatpush.msra.mxu0 %v142
    %166 = vmatpush.msra.mxu0 %v141
    %167 = vmatmul.f32.gmra.mxu0 %v146
    %v168 = vpop.f32.mrf.mxu0
    %v169 = vadd.f32 0.0, %v168
    %170 = vmatmul.f32.gmra.mxu0 %v149
    %v171 = vpop.f32.mrf.mxu0
    %v172 = vadd.f32 0.0, %v171
    %173 = vdwg.mxu0
    %v176 = vrot.slane %v169, 7
    %v177 = vrot.slane %v172, 7
    %v180 = vrot.slane %v169, 5
    %v181 = vrot.slane %v172, 5
    %v184 = vrot.slane %v169, 3
    %v185 = vrot.slane %v172, 3
    %v188 = vrot.slane %v169, 1
    %v189 = vrot.slane %v172, 1
    %vm192 = vcmask 1040384
    %v193 = vsel %vm192, %v176, %v180
    %v194 = vsel %vm192, %v177, %v181
    %vm195 = vcmask 1041408
    %v196 = vsel %vm195, %v193, %v184
    %v197 = vsel %vm195, %v194, %v185
    %vm198 = vcmask 1042432
    %v199 = vsel %vm198, %v196, %v188
    %v200 = vsel %vm198, %v197, %v189
    %vm201 = vcmask 1043456
    %v202 = vsel %vm201, %v199, %v176
    %v203 = vsel %vm201, %v200, %v177
    %vm204 = vcmask 1044480
    %v205 = vsel %vm204, %v202, %v180
    %v206 = vsel %vm204, %v203, %v181
    %vm207 = vcmask 1045504
    %v208 = vsel %vm207, %v205, %v184
    %v209 = vsel %vm207, %v206, %v185
    %vm210 = vcmask 1046528
    %v211 = vsel %vm210, %v208, %v188
    %v212 = vsel %vm210, %v209, %v189
    %215 = vrot.lane.b32.xlu0 %v211, 64
    %v216 = vpop.permute.xlu0 %215
    %217 = vrot.lane.b32.xlu0 %v212, 64
    %v218 = vpop.permute.xlu0 %217
    %vm221 = vcmask 523264
    %v222 = vsel %vm221, %v169, %v216
    %v223 = vsel %vm221, %v172, %v218
    %v224 = vld [vmem:[%s5] sm:$0xf]
    %v225 = vperm.slane %v224, 3
    %v226 = vmul.f32 %v222, %v225
    %v227 = vmul.f32 %v223, %v225
    %v228 = vld [vmem:[%s6] sm:$0x1]
    %v230 = vperm.slane %v228, 0
    %v232 = vadd.f32 %v226, %v230
    %v233 = vadd.f32 %v227, %v230
    %vm234 = vcmp.ge.s32.totalorder %v71, 1
    %v235 = vrot.slane %v222, 7
    %v236 = vrot.slane %v223, 7
    %vm237 = vcmp.lt.s32.totalorder %v71, 1
    %v238 = vsel %vm237, %v235, %v236
    %v239 = vsel %vm237, %v236, %v235
    %v240 = vsel %vm234, %v239, 0.0
    %v241 = vsel %vm234, %v238, 0.0
    %v242 = vperm.slane %v224, 2
    %v243 = vmul.f32 %v240, %v242
    %v244 = vmul.f32 %v241, %v242
    %v245 = vadd.f32 %v232, %v243
    %v246 = vadd.f32 %v233, %v244
    %vm247 = vcmp.ge.s32.totalorder %v71, 2
    %v248 = vrot.slane %v222, 6
    %v249 = vrot.slane %v223, 6
    %vm250 = vcmp.lt.s32.totalorder %v71, 2
    %v251 = vsel %vm250, %v248, %v249
    %v252 = vsel %vm250, %v249, %v248
    %v253 = vsel %vm247, %v252, 0.0
    %v254 = vsel %vm247, %v251, 0.0
    %v255 = vperm.slane %v224, 1
    %v256 = vmul.f32 %v253, %v255
    %v257 = vmul.f32 %v254, %v255
    %v258 = vadd.f32 %v245, %v256
    %v259 = vadd.f32 %v246, %v257
    %vm260 = vcmp.ge.s32.totalorder %v71, 3
    %v261 = vrot.slane %v222, 5
    %v262 = vrot.slane %v223, 5
    %vm263 = vcmp.lt.s32.totalorder %v71, 3
    %v264 = vsel %vm263, %v261, %v262
    %v265 = vsel %vm263, %v262, %v261
    %v266 = vsel %vm260, %v265, 0.0
    %v267 = vsel %vm260, %v264, 0.0
    %v268 = vperm.slane %v224, 0
    %v269 = vmul.f32 %v266, %v268
    %v270 = vmul.f32 %v267, %v268
    %v271 = vadd.f32 %v258, %v269
    %v272 = vadd.f32 %v259, %v270
    %v273 = vsub.f32 0.0, %v271
    %v274 = vsub.f32 0.0, %v272
    %v275 = vmul.f32 %v273, 1.442695
    %v276 = vpow.pop %v275
    %v277 = vmul.f32 %v274, 1.442695
    %v278 = vpow.pop %v277
    %v279 = vadd.f32 %v276, 1.0
    %v280 = vadd.f32 %v278, 1.0
    %v281 = vrcp.pop %v279
    %v282 = vrcp.pop %v280
    %v283 = vmul.f32 %v271, %v281
    %v284 = vmul.f32 %v272, %v282
    %v285 = vld [vmem:[#allocation3] sm:$0xff]
    %v286 = vld [vmem:[#allocation3 + $0x8] sm:$0xff]
    %v287 = vld [vmem:[#allocation3 + $0x10] sm:$0xff]
    %v288 = vld [vmem:[#allocation3 + $0x18] sm:$0xff]
    %v289 = vld [vmem:[#allocation3 + $0x20] sm:$0xff]
    %v290 = vld [vmem:[#allocation3 + $0x28] sm:$0xff]
    %v291 = vld [vmem:[#allocation3 + $0x30] sm:$0xff]
    %v292 = vld [vmem:[#allocation3 + $0x38] sm:$0xff]
    %v293 = vld [vmem:[#allocation3 + $0x40] sm:$0xff]
    %v294 = vld [vmem:[#allocation3 + $0x48] sm:$0xff]
    %v295 = vld [vmem:[#allocation3 + $0x50] sm:$0xff]
    %v296 = vld [vmem:[#allocation3 + $0x58] sm:$0xff]
    %v297 = vld [vmem:[#allocation3 + $0x60] sm:$0xff]
    %v298 = vld [vmem:[#allocation3 + $0x68] sm:$0xff]
    %v299 = vld [vmem:[#allocation3 + $0x70] sm:$0xff]
    %v300 = vld [vmem:[#allocation3 + $0x78] sm:$0xff]
    %v301 = vld [vmem:[#allocation3 + $0x80] sm:$0xff]
    %v302 = vld [vmem:[#allocation3 + $0x88] sm:$0xff]
    %v303 = vld [vmem:[#allocation3 + $0x90] sm:$0xff]
    %v304 = vld [vmem:[#allocation3 + $0x98] sm:$0xff]
    %v305 = vld [vmem:[#allocation3 + $0xa0] sm:$0xff]
    %v306 = vld [vmem:[#allocation3 + $0xa8] sm:$0xff]
    %v307 = vld [vmem:[#allocation3 + $0xb0] sm:$0xff]
    %v308 = vld [vmem:[#allocation3 + $0xb8] sm:$0xff]
    %v309 = vld [vmem:[#allocation3 + $0xc0] sm:$0xff]
    %v310 = vld [vmem:[#allocation3 + $0xc8] sm:$0xff]
    %v311 = vld [vmem:[#allocation3 + $0xd0] sm:$0xff]
    %v312 = vld [vmem:[#allocation3 + $0xd8] sm:$0xff]
    %v313 = vld [vmem:[#allocation3 + $0xe0] sm:$0xff]
    %v314 = vld [vmem:[#allocation3 + $0xe8] sm:$0xff]
    %v315 = vld [vmem:[#allocation3 + $0xf0] sm:$0xff]
    %v316 = vld [vmem:[#allocation3 + $0xf8] sm:$0xff]
    %317 = vmatpush.msra.mxu0 %v315
    %318 = vmatpush.msra.mxu0 %v313
    %319 = vmatpush.msra.mxu0 %v311
    %320 = vmatpush.msra.mxu0 %v309
    %321 = vmatpush.msra.mxu0 %v307
    %322 = vmatpush.msra.mxu0 %v305
    %323 = vmatpush.msra.mxu0 %v303
    %324 = vmatpush.msra.mxu0 %v301
    %325 = vmatpush.msra.mxu0 %v299
    %326 = vmatpush.msra.mxu0 %v297
    %327 = vmatpush.msra.mxu0 %v295
    %328 = vmatpush.msra.mxu0 %v293
    %329 = vmatpush.msra.mxu0 %v291
    %330 = vmatpush.msra.mxu0 %v289
    %331 = vmatpush.msra.mxu0 %v287
    %332 = vmatpush.msra.mxu0 %v285
    %333 = vmatmul.f32.gmra.mxu0 %v283
    %v334 = vpop.f32.mrf.mxu0
    %v335 = vadd.f32 0.0, %v334
    %336 = vmatmul.f32.gmra.mxu0 %v284
    %v337 = vpop.f32.mrf.mxu0
    %v338 = vadd.f32 0.0, %v337
    %339 = vdwg.mxu0
    %340 = vmatpush.msra.mxu0 %v316
    %341 = vmatpush.msra.mxu0 %v314
    %342 = vmatpush.msra.mxu0 %v312
    %343 = vmatpush.msra.mxu0 %v310
    %344 = vmatpush.msra.mxu0 %v308
    %345 = vmatpush.msra.mxu0 %v306
    %346 = vmatpush.msra.mxu0 %v304
    %347 = vmatpush.msra.mxu0 %v302
    %348 = vmatpush.msra.mxu0 %v300
    %349 = vmatpush.msra.mxu0 %v298
    %350 = vmatpush.msra.mxu0 %v296
    %351 = vmatpush.msra.mxu0 %v294
    %352 = vmatpush.msra.mxu0 %v292
    %353 = vmatpush.msra.mxu0 %v290
    %354 = vmatpush.msra.mxu0 %v288
    %355 = vmatpush.msra.mxu0 %v286
    %356 = vmatmul.f32.gmra.mxu0 %v283
    %v357 = vpop.f32.mrf.mxu0
    %v358 = vadd.f32 0.0, %v357
    %359 = vmatmul.f32.gmra.mxu0 %v284
    %v360 = vpop.f32.mrf.mxu0
    %v361 = vadd.f32 0.0, %v360
    %362 = vdwg.mxu0
    %v363 = vld [vmem:[%s8] sm:$0x1]
    %v365 = vperm.slane %v363, 0
    %v367 = vadd.f32 %v335, %v365
    %v368 = vadd.f32 %v338, %v365
    %v369 = vmax.f32 %v367, 0.0
    %v370 = vmax.f32 %v368, 0.0
    %v371 = vand.u32 2147483647, %v367
    %v372 = vand.u32 2147483647, %v368
    %v373 = vsub.f32 0.0, %v371
    %v374 = vsub.f32 0.0, %v372
    %v375 = vmul.f32 %v373, 1.442695
    %v376 = vpow.pop %v375
    %v377 = vmul.f32 %v374, 1.442695
    %v378 = vpow.pop %v377
    %v379 = vadd.f32 %v376, 1.0
    %v380 = vlog2.pop %v379
    %v381 = vmul.f32 %v380, 0.6931472
    %v382 = vmul.f32 -0.5, %v376
    %v383 = vadd.f32 %v382, 1.0
    %v384 = vmul.f32 %v383, %v376
    %v385 = vand.u32 2147483647, %v376
    %vm386 = vcmp.lt.f32.partialorder %v385, 0.0004427343
    %v387 = vsel %vm386, %v384, %v381
    %v388 = vadd.f32 %v378, 1.0
    %v389 = vlog2.pop %v388
    %v390 = vmul.f32 %v389, 0.6931472
    %v391 = vmul.f32 -0.5, %v378
    %v392 = vadd.f32 %v391, 1.0
    %v393 = vmul.f32 %v392, %v378
    %v394 = vand.u32 2147483647, %v378
    %vm395 = vcmp.lt.f32.partialorder %v394, 0.0004427343
    %v396 = vsel %vm395, %v393, %v390
    %v397 = vadd.f32 %v369, %v387
    %v398 = vadd.f32 %v370, %v396
    %v399 = vld [vmem:[%s9] sm:$0xff]
    %v400 = vld [vmem:[%s9 + $0x8] sm:$0xff]
    %v401 = vmul.f32 %v397, %v283
    %v402 = vmul.f32 %v398, %v284
    %v403 = vperm.slane %v397, 0
    %v404 = vperm.slane %v398, 0
    %v405 = vmul.f32 %v403, %v399
    %v406 = vmul.f32 %v403, %v400
    %v407 = vmul.f32 %v404, %v399
    %v408 = vmul.f32 %v404, %v400
    %v409 = vmul.f32 %v405, 1.442695
    %v410 = vpow.pop %v409
    %v411 = vmul.f32 %v406, 1.442695
    %v412 = vpow.pop %v411
    %v413 = vmul.f32 %v407, 1.442695
    %v414 = vpow.pop %v413
    %v415 = vmul.f32 %v408, 1.442695
    %v416 = vpow.pop %v415
    %v417 = vperm.slane %v358, 0
    %v418 = vlaneseq
    %v419 = vshrl.u32 %v418, 7
    %421 = vset.pattern.permute.xlu0 %v419
    %422 = vperm.xlu0 %421, %v417
    %v423 = vpop.permute.xlu0 %422
    %v424 = vlaneseq
    %v425 = vshrl.u32 %v424, 7
    %v426 = vadd.s32 %v425, 8
    %427 = vset.pattern.permute.xlu0 %v426
    %428 = vperm.xlu0 %427, %v417
    %v429 = vpop.permute.xlu0 %428
    %v430 = vperm.slane %v361, 0
    %v431 = vlaneseq
    %v432 = vshrl.u32 %v431, 7
    %434 = vset.pattern.permute.xlu0 %v432
    %435 = vperm.xlu0 %434, %v430
    %v436 = vpop.permute.xlu0 %435
    %v437 = vlaneseq
    %v438 = vshrl.u32 %v437, 7
    %v439 = vadd.s32 %v438, 8
    %440 = vset.pattern.permute.xlu0 %v439
    %441 = vperm.xlu0 %440, %v430
    %v442 = vpop.permute.xlu0 %441
    %v443 = vlaneseq
    %v444 = vshrl.u32 %v443, 7
    %v445 = vadd.s32 %v444, 16
    %446 = vset.pattern.permute.xlu0 %v445
    %447 = vperm.xlu0 %446, %v417
    %v448 = vpop.permute.xlu0 %447
    %v449 = vlaneseq
    %v450 = vshrl.u32 %v449, 7
    %v451 = vadd.s32 %v450, 24
    %452 = vset.pattern.permute.xlu0 %v451
    %453 = vperm.xlu0 %452, %v417
    %v454 = vpop.permute.xlu0 %453
    %v455 = vlaneseq
    %v456 = vshrl.u32 %v455, 7
    %v457 = vadd.s32 %v456, 16
    %458 = vset.pattern.permute.xlu0 %v457
    %459 = vperm.xlu0 %458, %v430
    %v460 = vpop.permute.xlu0 %459
    %v461 = vlaneseq
    %v462 = vshrl.u32 %v461, 7
    %v463 = vadd.s32 %v462, 24
    %464 = vset.pattern.permute.xlu0 %v463
    %465 = vperm.xlu0 %464, %v430
    %v466 = vpop.permute.xlu0 %465
    %v467 = vsel %vm221, %v423, %v448
    %v468 = vsel %vm221, %v429, %v454
    %v469 = vsel %vm221, %v436, %v460
    %v470 = vsel %vm221, %v442, %v466
    %v471 = vlaneseq
    %v472 = vshrl.u32 %v471, 7
    %v473 = vadd.s32 %v472, 32
    %474 = vset.pattern.permute.xlu0 %v473
    %475 = vperm.xlu0 %474, %v417
    %v476 = vpop.permute.xlu0 %475
    %v477 = vlaneseq
    %v478 = vshrl.u32 %v477, 7
    %v479 = vadd.s32 %v478, 40
    %480 = vset.pattern.permute.xlu0 %v479
    %481 = vperm.xlu0 %480, %v417
    %v482 = vpop.permute.xlu0 %481
    %v483 = vlaneseq
    %v484 = vshrl.u32 %v483, 7
    %v485 = vadd.s32 %v484, 32
    %486 = vset.pattern.permute.xlu0 %v485
    %487 = vperm.xlu0 %486, %v430
    %v488 = vpop.permute.xlu0 %487
    %v489 = vlaneseq
    %v490 = vshrl.u32 %v489, 7
    %v491 = vadd.s32 %v490, 40
    %492 = vset.pattern.permute.xlu0 %v491
    %493 = vperm.xlu0 %492, %v430
    %v494 = vpop.permute.xlu0 %493
    %v495 = vlaneseq
    %v496 = vshrl.u32 %v495, 7
    %v497 = vadd.s32 %v496, 48
    %498 = vset.pattern.permute.xlu0 %v497
    %499 = vperm.xlu0 %498, %v417
    %v500 = vpop.permute.xlu0 %499
    %v501 = vlaneseq
    %v502 = vshrl.u32 %v501, 7
    %v503 = vadd.s32 %v502, 56
    %504 = vset.pattern.permute.xlu0 %v503
    %505 = vperm.xlu0 %504, %v417
    %v506 = vpop.permute.xlu0 %505
    %v507 = vlaneseq
    %v508 = vshrl.u32 %v507, 7
    %v509 = vadd.s32 %v508, 48
    %510 = vset.pattern.permute.xlu0 %v509
    %511 = vperm.xlu0 %510, %v430
    %v512 = vpop.permute.xlu0 %511
    %v513 = vlaneseq
    %v514 = vshrl.u32 %v513, 7
    %v515 = vadd.s32 %v514, 56
    %516 = vset.pattern.permute.xlu0 %v515
    %517 = vperm.xlu0 %516, %v430
    %v518 = vpop.permute.xlu0 %517
    %v519 = vsel %vm221, %v476, %v500
    %v520 = vsel %vm221, %v482, %v506
    %v521 = vsel %vm221, %v488, %v512
    %v522 = vsel %vm221, %v494, %v518
    %v523 = vmul.f32 %v410, 0.0
    %v524 = vmul.f32 %v412, 0.0
    %v525 = vmul.f32 %v414, 0.0
    %v526 = vmul.f32 %v416, 0.0
    %v527 = vperm.slane %v401, 0
    %v528 = vperm.slane %v402, 0
    %v529 = vmul.f32 %v527, %v467
    %v530 = vmul.f32 %v527, %v468
    %v531 = vmul.f32 %v528, %v469
    %v532 = vmul.f32 %v528, %v470
    %v533 = vadd.f32 %v523, %v529
    %v534 = vadd.f32 %v524, %v530
    %v535 = vadd.f32 %v525, %v531
    %v536 = vadd.f32 %v526, %v532
    %v537 = vmul.f32 %v519, %v533
    %v538 = vmul.f32 %v520, %v534
    %v539 = vmul.f32 %v521, %v535
    %v540 = vmul.f32 %v522, %v536
    %v541 = vadd.f32 %v537, %v538
    %v542 = vrot.slane %v541, 4
    %v543 = vadd.f32 %v541, %v542
    %v544 = vrot.slane %v543, 2
    %v545 = vadd.f32 %v543, %v544
    %v546 = vrot.slane %v545, 1
    %v547 = vadd.f32 %v545, %v546
    %v548 = vadd.f32 %v539, %v540
    %v549 = vrot.slane %v548, 4
    %v550 = vadd.f32 %v548, %v549
    %v551 = vrot.slane %v550, 2
    %v552 = vadd.f32 %v550, %v551
    %v553 = vrot.slane %v552, 1
    %v554 = vadd.f32 %v552, %v553
    %555 = vst [vmem:[#allocation2] sm:$0x1] %v547
    %556 = vst [vmem:[#allocation2 + $0x8] sm:$0x1] %v554
    %v557 = vperm.slane %v397, 1
    %v558 = vperm.slane %v398, 1
    %v559 = vmul.f32 %v557, %v399
    %v560 = vmul.f32 %v557, %v400
    %v561 = vmul.f32 %v558, %v399
    %v562 = vmul.f32 %v558, %v400
    %v563 = vmul.f32 %v559, 1.442695
    %v564 = vpow.pop %v563
    %v565 = vmul.f32 %v560, 1.442695
    %v566 = vpow.pop %v565
    %v567 = vmul.f32 %v561, 1.442695
    %v568 = vpow.pop %v567
    %v569 = vmul.f32 %v562, 1.442695
    %v570 = vpow.pop %v569
    %v571 = vperm.slane %v358, 1
    %v572 = vlaneseq
    %v573 = vshrl.u32 %v572, 7
    %575 = vset.pattern.permute.xlu0 %v573
    %576 = vperm.xlu0 %575, %v571
    %v577 = vpop.permute.xlu0 %576
    %v578 = vlaneseq
    %v579 = vshrl.u32 %v578, 7
    %v580 = vadd.s32 %v579, 8
    %581 = vset.pattern.permute.xlu0 %v580
    %582 = vperm.xlu0 %581, %v571
    %v583 = vpop.permute.xlu0 %582
    %v584 = vperm.slane %v361, 1
    %v585 = vlaneseq
    %v586 = vshrl.u32 %v585, 7
    %588 = vset.pattern.permute.xlu0 %v586
    %589 = vperm.xlu0 %588, %v584
    %v590 = vpop.permute.xlu0 %589
    %v591 = vlaneseq
    %v592 = vshrl.u32 %v591, 7
    %v593 = vadd.s32 %v592, 8
    %594 = vset.pattern.permute.xlu0 %v593
    %595 = vperm.xlu0 %594, %v584
    %v596 = vpop.permute.xlu0 %595
    %v597 = vlaneseq
    %v598 = vshrl.u32 %v597, 7
    %v599 = vadd.s32 %v598, 16
    %600 = vset.pattern.permute.xlu0 %v599
    %601 = vperm.xlu0 %600, %v571
    %v602 = vpop.permute.xlu0 %601
    %v603 = vlaneseq
    %v604 = vshrl.u32 %v603, 7
    %v605 = vadd.s32 %v604, 24
    %606 = vset.pattern.permute.xlu0 %v605
    %607 = vperm.xlu0 %606, %v571
    %v608 = vpop.permute.xlu0 %607
    %v609 = vlaneseq
    %v610 = vshrl.u32 %v609, 7
    %v611 = vadd.s32 %v610, 16
    %612 = vset.pattern.permute.xlu0 %v611
    %613 = vperm.xlu0 %612, %v584
    %v614 = vpop.permute.xlu0 %613
    %v615 = vlaneseq
    %v616 = vshrl.u32 %v615, 7
    %v617 = vadd.s32 %v616, 24
    %618 = vset.pattern.permute.xlu0 %v617
    %619 = vperm.xlu0 %618, %v584
    %v620 = vpop.permute.xlu0 %619
    %v621 = vsel %vm221, %v577, %v602
    %v622 = vsel %vm221, %v583, %v608
    %v623 = vsel %vm221, %v590, %v614
    %v624 = vsel %vm221, %v596, %v620
    %v625 = vlaneseq
    %v626 = vshrl.u32 %v625, 7
    %v627 = vadd.s32 %v626, 32
    %628 = vset.pattern.permute.xlu0 %v627
    %629 = vperm.xlu0 %628, %v571
    %v630 = vpop.permute.xlu0 %629
    %v631 = vlaneseq
    %v632 = vshrl.u32 %v631, 7
    %v633 = vadd.s32 %v632, 40
    %634 = vset.pattern.permute.xlu0 %v633
    %635 = vperm.xlu0 %634, %v571
    %v636 = vpop.permute.xlu0 %635
    %v637 = vlaneseq
    %v638 = vshrl.u32 %v637, 7
    %v639 = vadd.s32 %v638, 32
    %640 = vset.pattern.permute.xlu0 %v639
    %641 = vperm.xlu0 %640, %v584
    %v642 = vpop.permute.xlu0 %641
    %v643 = vlaneseq
    %v644 = vshrl.u32 %v643, 7
    %v645 = vadd.s32 %v644, 40
    %646 = vset.pattern.permute.xlu0 %v645
    %647 = vperm.xlu0 %646, %v584
    %v648 = vpop.permute.xlu0 %647
    %v649 = vlaneseq
    %v650 = vshrl.u32 %v649, 7
    %v651 = vadd.s32 %v650, 48
    %652 = vset.pattern.permute.xlu0 %v651
    %653 = vperm.xlu0 %652, %v571
    %v654 = vpop.permute.xlu0 %653
    %v655 = vlaneseq
    %v656 = vshrl.u32 %v655, 7
    %v657 = vadd.s32 %v656, 56
    %658 = vset.pattern.permute.xlu0 %v657
    %659 = vperm.xlu0 %658, %v571
    %v660 = vpop.permute.xlu0 %659
    %v661 = vlaneseq
    %v662 = vshrl.u32 %v661, 7
    %v663 = vadd.s32 %v662, 48
    %664 = vset.pattern.permute.xlu0 %v663
    %665 = vperm.xlu0 %664, %v584
    %v666 = vpop.permute.xlu0 %665
    %v667 = vlaneseq
    %v668 = vshrl.u32 %v667, 7
    %v669 = vadd.s32 %v668, 56
    %670 = vset.pattern.permute.xlu0 %v669
    %671 = vperm.xlu0 %670, %v584
    %v672 = vpop.permute.xlu0 %671
    %v673 = vsel %vm221, %v630, %v654
    %v674 = vsel %vm221, %v636, %v660
    %v675 = vsel %vm221, %v642, %v666
    %v676 = vsel %vm221, %v648, %v672
    %v677 = vmul.f32 %v564, %v533
    %v678 = vmul.f32 %v566, %v534
    %v679 = vmul.f32 %v568, %v535
    %v680 = vmul.f32 %v570, %v536
    %v681 = vperm.slane %v401, 1
    %v682 = vperm.slane %v402, 1
    %v683 = vmul.f32 %v681, %v621
    %v684 = vmul.f32 %v681, %v622
    %v685 = vmul.f32 %v682, %v623
    %v686 = vmul.f32 %v682, %v624
    %v687 = vadd.f32 %v677, %v683
    %v688 = vadd.f32 %v678, %v684
    %v689 = vadd.f32 %v679, %v685
    %v690 = vadd.f32 %v680, %v686
    %v691 = vmul.f32 %v673, %v687
    %v692 = vmul.f32 %v674, %v688
    %v693 = vmul.f32 %v675, %v689
    %v694 = vmul.f32 %v676, %v690
    %v695 = vadd.f32 %v691, %v692
    %v696 = vrot.slane %v695, 4
    %v697 = vadd.f32 %v695, %v696
    %v698 = vrot.slane %v697, 2
    %v699 = vadd.f32 %v697, %v698
    %v700 = vrot.slane %v699, 1
    %v701 = vadd.f32 %v699, %v700
    %v702 = vadd.f32 %v693, %v694
    %v703 = vrot.slane %v702, 4
    %v704 = vadd.f32 %v702, %v703
    %v705 = vrot.slane %v704, 2
    %v706 = vadd.f32 %v704, %v705
    %v707 = vrot.slane %v706, 1
    %v708 = vadd.f32 %v706, %v707
    %709 = vst [vmem:[#allocation2 + $0x1] sm:$0x1] %v701
    %710 = vst [vmem:[#allocation2 + $0x9] sm:$0x1] %v708
    %v711 = vperm.slane %v397, 2
    %v712 = vperm.slane %v398, 2
    %v713 = vmul.f32 %v711, %v399
    %v714 = vmul.f32 %v711, %v400
    %v715 = vmul.f32 %v712, %v399
    %v716 = vmul.f32 %v712, %v400
    %v717 = vmul.f32 %v713, 1.442695
    %v718 = vpow.pop %v717
    %v719 = vmul.f32 %v714, 1.442695
    %v720 = vpow.pop %v719
    %v721 = vmul.f32 %v715, 1.442695
    %v722 = vpow.pop %v721
    %v723 = vmul.f32 %v716, 1.442695
    %v724 = vpow.pop %v723
    %v725 = vperm.slane %v358, 2
    %v726 = vlaneseq
    %v727 = vshrl.u32 %v726, 7
    %729 = vset.pattern.permute.xlu0 %v727
    %730 = vperm.xlu0 %729, %v725
    %v731 = vpop.permute.xlu0 %730
    %v732 = vlaneseq
    %v733 = vshrl.u32 %v732, 7
    %v734 = vadd.s32 %v733, 8
    %735 = vset.pattern.permute.xlu0 %v734
    %736 = vperm.xlu0 %735, %v725
    %v737 = vpop.permute.xlu0 %736
    %v738 = vperm.slane %v361, 2
    %v739 = vlaneseq
    %v740 = vshrl.u32 %v739, 7
    %742 = vset.pattern.permute.xlu0 %v740
    %743 = vperm.xlu0 %742, %v738
    %v744 = vpop.permute.xlu0 %743
    %v745 = vlaneseq
    %v746 = vshrl.u32 %v745, 7
    %v747 = vadd.s32 %v746, 8
    %748 = vset.pattern.permute.xlu0 %v747
    %749 = vperm.xlu0 %748, %v738
    %v750 = vpop.permute.xlu0 %749
    %v751 = vlaneseq
    %v752 = vshrl.u32 %v751, 7
    %v753 = vadd.s32 %v752, 16
    %754 = vset.pattern.permute.xlu0 %v753
    %755 = vperm.xlu0 %754, %v725
    %v756 = vpop.permute.xlu0 %755
    %v757 = vlaneseq
    %v758 = vshrl.u32 %v757, 7
    %v759 = vadd.s32 %v758, 24
    %760 = vset.pattern.permute.xlu0 %v759
    %761 = vperm.xlu0 %760, %v725
    %v762 = vpop.permute.xlu0 %761
    %v763 = vlaneseq
    %v764 = vshrl.u32 %v763, 7
    %v765 = vadd.s32 %v764, 16
    %766 = vset.pattern.permute.xlu0 %v765
    %767 = vperm.xlu0 %766, %v738
    %v768 = vpop.permute.xlu0 %767
    %v769 = vlaneseq
    %v770 = vshrl.u32 %v769, 7
    %v771 = vadd.s32 %v770, 24
    %772 = vset.pattern.permute.xlu0 %v771
    %773 = vperm.xlu0 %772, %v738
    %v774 = vpop.permute.xlu0 %773
    %v775 = vsel %vm221, %v731, %v756
    %v776 = vsel %vm221, %v737, %v762
    %v777 = vsel %vm221, %v744, %v768
    %v778 = vsel %vm221, %v750, %v774
    %v779 = vlaneseq
    %v780 = vshrl.u32 %v779, 7
    %v781 = vadd.s32 %v780, 32
    %782 = vset.pattern.permute.xlu0 %v781
    %783 = vperm.xlu0 %782, %v725
    %v784 = vpop.permute.xlu0 %783
    %v785 = vlaneseq
    %v786 = vshrl.u32 %v785, 7
    %v787 = vadd.s32 %v786, 40
    %788 = vset.pattern.permute.xlu0 %v787
    %789 = vperm.xlu0 %788, %v725
    %v790 = vpop.permute.xlu0 %789
    %v791 = vlaneseq
    %v792 = vshrl.u32 %v791, 7
    %v793 = vadd.s32 %v792, 32
    %794 = vset.pattern.permute.xlu0 %v793
    %795 = vperm.xlu0 %794, %v738
    %v796 = vpop.permute.xlu0 %795
    %v797 = vlaneseq
    %v798 = vshrl.u32 %v797, 7
    %v799 = vadd.s32 %v798, 40
    %800 = vset.pattern.permute.xlu0 %v799
    %801 = vperm.xlu0 %800, %v738
    %v802 = vpop.permute.xlu0 %801
    %v803 = vlaneseq
    %v804 = vshrl.u32 %v803, 7
    %v805 = vadd.s32 %v804, 48
    %806 = vset.pattern.permute.xlu0 %v805
    %807 = vperm.xlu0 %806, %v725
    %v808 = vpop.permute.xlu0 %807
    %v809 = vlaneseq
    %v810 = vshrl.u32 %v809, 7
    %v811 = vadd.s32 %v810, 56
    %812 = vset.pattern.permute.xlu0 %v811
    %813 = vperm.xlu0 %812, %v725
    %v814 = vpop.permute.xlu0 %813
    %v815 = vlaneseq
    %v816 = vshrl.u32 %v815, 7
    %v817 = vadd.s32 %v816, 48
    %818 = vset.pattern.permute.xlu0 %v817
    %819 = vperm.xlu0 %818, %v738
    %v820 = vpop.permute.xlu0 %819
    %v821 = vlaneseq
    %v822 = vshrl.u32 %v821, 7
    %v823 = vadd.s32 %v822, 56
    %824 = vset.pattern.permute.xlu0 %v823
    %825 = vperm.xlu0 %824, %v738
    %v826 = vpop.permute.xlu0 %825
    %v827 = vsel %vm221, %v784, %v808
    %v828 = vsel %vm221, %v790, %v814
    %v829 = vsel %vm221, %v796, %v820
    %v830 = vsel %vm221, %v802, %v826
    %v831 = vmul.f32 %v718, %v687
    %v832 = vmul.f32 %v720, %v688
    %v833 = vmul.f32 %v722, %v689
    %v834 = vmul.f32 %v724, %v690
    %v835 = vperm.slane %v401, 2
    %v836 = vperm.slane %v402, 2
    %v837 = vmul.f32 %v835, %v775
    %v838 = vmul.f32 %v835, %v776
    %v839 = vmul.f32 %v836, %v777
    %v840 = vmul.f32 %v836, %v778
    %v841 = vadd.f32 %v831, %v837
    %v842 = vadd.f32 %v832, %v838
    %v843 = vadd.f32 %v833, %v839
    %v844 = vadd.f32 %v834, %v840
    %v845 = vmul.f32 %v827, %v841
    %v846 = vmul.f32 %v828, %v842
    %v847 = vmul.f32 %v829, %v843
    %v848 = vmul.f32 %v830, %v844
    %v849 = vadd.f32 %v845, %v846
    %v850 = vrot.slane %v849, 4
    %v851 = vadd.f32 %v849, %v850
    %v852 = vrot.slane %v851, 2
    %v853 = vadd.f32 %v851, %v852
    %v854 = vrot.slane %v853, 1
    %v855 = vadd.f32 %v853, %v854
    %v856 = vadd.f32 %v847, %v848
    %v857 = vrot.slane %v856, 4
    %v858 = vadd.f32 %v856, %v857
    %v859 = vrot.slane %v858, 2
    %v860 = vadd.f32 %v858, %v859
    %v861 = vrot.slane %v860, 1
    %v862 = vadd.f32 %v860, %v861
    %863 = vst [vmem:[#allocation2 + $0x2] sm:$0x1] %v855
    %864 = vst [vmem:[#allocation2 + $0xa] sm:$0x1] %v862
    %v865 = vperm.slane %v397, 3
    %v866 = vperm.slane %v398, 3
    %v867 = vmul.f32 %v865, %v399
    %v868 = vmul.f32 %v865, %v400
    %v869 = vmul.f32 %v866, %v399
    %v870 = vmul.f32 %v866, %v400
    %v871 = vmul.f32 %v867, 1.442695
    %v872 = vpow.pop %v871
    %v873 = vmul.f32 %v868, 1.442695
    %v874 = vpow.pop %v873
    %v875 = vmul.f32 %v869, 1.442695
    %v876 = vpow.pop %v875
    %v877 = vmul.f32 %v870, 1.442695
    %v878 = vpow.pop %v877
    %v879 = vperm.slane %v358, 3
    %v880 = vlaneseq
    %v881 = vshrl.u32 %v880, 7
    %883 = vset.pattern.permute.xlu0 %v881
    %884 = vperm.xlu0 %883, %v879
    %v885 = vpop.permute.xlu0 %884
    %v886 = vlaneseq
    %v887 = vshrl.u32 %v886, 7
    %v888 = vadd.s32 %v887, 8
    %889 = vset.pattern.permute.xlu0 %v888
    %890 = vperm.xlu0 %889, %v879
    %v891 = vpop.permute.xlu0 %890
    %v892 = vperm.slane %v361, 3
    %v893 = vlaneseq
    %v894 = vshrl.u32 %v893, 7
    %896 = vset.pattern.permute.xlu0 %v894
    %897 = vperm.xlu0 %896, %v892
    %v898 = vpop.permute.xlu0 %897
    %v899 = vlaneseq
    %v900 = vshrl.u32 %v899, 7
    %v901 = vadd.s32 %v900, 8
    %902 = vset.pattern.permute.xlu0 %v901
    %903 = vperm.xlu0 %902, %v892
    %v904 = vpop.permute.xlu0 %903
    %v905 = vlaneseq
    %v906 = vshrl.u32 %v905, 7
    %v907 = vadd.s32 %v906, 16
    %908 = vset.pattern.permute.xlu0 %v907
    %909 = vperm.xlu0 %908, %v879
    %v910 = vpop.permute.xlu0 %909
    %v911 = vlaneseq
    %v912 = vshrl.u32 %v911, 7
    %v913 = vadd.s32 %v912, 24
    %914 = vset.pattern.permute.xlu0 %v913
    %915 = vperm.xlu0 %914, %v879
    %v916 = vpop.permute.xlu0 %915
    %v917 = vlaneseq
    %v918 = vshrl.u32 %v917, 7
    %v919 = vadd.s32 %v918, 16
    %920 = vset.pattern.permute.xlu0 %v919
    %921 = vperm.xlu0 %920, %v892
    %v922 = vpop.permute.xlu0 %921
    %v923 = vlaneseq
    %v924 = vshrl.u32 %v923, 7
    %v925 = vadd.s32 %v924, 24
    %926 = vset.pattern.permute.xlu0 %v925
    %927 = vperm.xlu0 %926, %v892
    %v928 = vpop.permute.xlu0 %927
    %v929 = vsel %vm221, %v885, %v910
    %v930 = vsel %vm221, %v891, %v916
    %v931 = vsel %vm221, %v898, %v922
    %v932 = vsel %vm221, %v904, %v928
    %v933 = vlaneseq
    %v934 = vshrl.u32 %v933, 7
    %v935 = vadd.s32 %v934, 32
    %936 = vset.pattern.permute.xlu0 %v935
    %937 = vperm.xlu0 %936, %v879
    %v938 = vpop.permute.xlu0 %937
    %v939 = vlaneseq
    %v940 = vshrl.u32 %v939, 7
    %v941 = vadd.s32 %v940, 40
    %942 = vset.pattern.permute.xlu0 %v941
    %943 = vperm.xlu0 %942, %v879
    %v944 = vpop.permute.xlu0 %943
    %v945 = vlaneseq
    %v946 = vshrl.u32 %v945, 7
    %v947 = vadd.s32 %v946, 32
    %948 = vset.pattern.permute.xlu0 %v947
    %949 = vperm.xlu0 %948, %v892
    %v950 = vpop.permute.xlu0 %949
    %v951 = vlaneseq
    %v952 = vshrl.u32 %v951, 7
    %v953 = vadd.s32 %v952, 40
    %954 = vset.pattern.permute.xlu0 %v953
    %955 = vperm.xlu0 %954, %v892
    %v956 = vpop.permute.xlu0 %955
    %v957 = vlaneseq
    %v958 = vshrl.u32 %v957, 7
    %v959 = vadd.s32 %v958, 48
    %960 = vset.pattern.permute.xlu0 %v959
    %961 = vperm.xlu0 %960, %v879
    %v962 = vpop.permute.xlu0 %961
    %v963 = vlaneseq
    %v964 = vshrl.u32 %v963, 7
    %v965 = vadd.s32 %v964, 56
    %966 = vset.pattern.permute.xlu0 %v965
    %967 = vperm.xlu0 %966, %v879
    %v968 = vpop.permute.xlu0 %967
    %v969 = vlaneseq
    %v970 = vshrl.u32 %v969, 7
    %v971 = vadd.s32 %v970, 48
    %972 = vset.pattern.permute.xlu0 %v971
    %973 = vperm.xlu0 %972, %v892
    %v974 = vpop.permute.xlu0 %973
    %v975 = vlaneseq
    %v976 = vshrl.u32 %v975, 7
    %v977 = vadd.s32 %v976, 56
    %978 = vset.pattern.permute.xlu0 %v977
    %979 = vperm.xlu0 %978, %v892
    %v980 = vpop.permute.xlu0 %979
    %v981 = vsel %vm221, %v938, %v962
    %v982 = vsel %vm221, %v944, %v968
    %v983 = vsel %vm221, %v950, %v974
    %v984 = vsel %vm221, %v956, %v980
    %v985 = vmul.f32 %v872, %v841
    %v986 = vmul.f32 %v874, %v842
    %v987 = vmul.f32 %v876, %v843
    %v988 = vmul.f32 %v878, %v844
    %v989 = vperm.slane %v401, 3
    %v990 = vperm.slane %v402, 3
    %v991 = vmul.f32 %v989, %v929
    %v992 = vmul.f32 %v989, %v930
    %v993 = vmul.f32 %v990, %v931
    %v994 = vmul.f32 %v990, %v932
    %v995 = vadd.f32 %v985, %v991
    %v996 = vadd.f32 %v986, %v992
    %v997 = vadd.f32 %v987, %v993
    %v998 = vadd.f32 %v988, %v994
    %v999 = vmul.f32 %v981, %v995
    %v1000 = vmul.f32 %v982, %v996
    %v1001 = vmul.f32 %v983, %v997
    %v1002 = vmul.f32 %v984, %v998
    %v1003 = vadd.f32 %v999, %v1000
    %v1004 = vrot.slane %v1003, 4
    %v1005 = vadd.f32 %v1003, %v1004
    %v1006 = vrot.slane %v1005, 2
    %v1007 = vadd.f32 %v1005, %v1006
    %v1008 = vrot.slane %v1007, 1
    %v1009 = vadd.f32 %v1007, %v1008
    %v1010 = vadd.f32 %v1001, %v1002
    %v1011 = vrot.slane %v1010, 4
    %v1012 = vadd.f32 %v1010, %v1011
    %v1013 = vrot.slane %v1012, 2
    %v1014 = vadd.f32 %v1012, %v1013
    %v1015 = vrot.slane %v1014, 1
    %v1016 = vadd.f32 %v1014, %v1015
    %1017 = vst [vmem:[#allocation2 + $0x3] sm:$0x1] %v1009
    %1018 = vst [vmem:[#allocation2 + $0xb] sm:$0x1] %v1016
    %v1019 = vperm.slane %v397, 4
    %v1020 = vperm.slane %v398, 4
    %v1021 = vmul.f32 %v1019, %v399
    %v1022 = vmul.f32 %v1019, %v400
    %v1023 = vmul.f32 %v1020, %v399
    %v1024 = vmul.f32 %v1020, %v400
    %v1025 = vmul.f32 %v1021, 1.442695
    %v1026 = vpow.pop %v1025
    %v1027 = vmul.f32 %v1022, 1.442695
    %v1028 = vpow.pop %v1027
    %v1029 = vmul.f32 %v1023, 1.442695
    %v1030 = vpow.pop %v1029
    %v1031 = vmul.f32 %v1024, 1.442695
    %v1032 = vpow.pop %v1031
    %v1033 = vperm.slane %v358, 4
    %v1034 = vlaneseq
    %v1035 = vshrl.u32 %v1034, 7
    %1037 = vset.pattern.permute.xlu0 %v1035
    %1038 = vperm.xlu0 %1037, %v1033
    %v1039 = vpop.permute.xlu0 %1038
    %v1040 = vlaneseq
    %v1041 = vshrl.u32 %v1040, 7
    %v1042 = vadd.s32 %v1041, 8
    %1043 = vset.pattern.permute.xlu0 %v1042
    %1044 = vperm.xlu0 %1043, %v1033
    %v1045 = vpop.permute.xlu0 %1044
    %v1046 = vperm.slane %v361, 4
    %v1047 = vlaneseq
    %v1048 = vshrl.u32 %v1047, 7
    %1050 = vset.pattern.permute.xlu0 %v1048
    %1051 = vperm.xlu0 %1050, %v1046
    %v1052 = vpop.permute.xlu0 %1051
    %v1053 = vlaneseq
    %v1054 = vshrl.u32 %v1053, 7
    %v1055 = vadd.s32 %v1054, 8
    %1056 = vset.pattern.permute.xlu0 %v1055
    %1057 = vperm.xlu0 %1056, %v1046
    %v1058 = vpop.permute.xlu0 %1057
    %v1059 = vlaneseq
    %v1060 = vshrl.u32 %v1059, 7
    %v1061 = vadd.s32 %v1060, 16
    %1062 = vset.pattern.permute.xlu0 %v1061
    %1063 = vperm.xlu0 %1062, %v1033
    %v1064 = vpop.permute.xlu0 %1063
    %v1065 = vlaneseq
    %v1066 = vshrl.u32 %v1065, 7
    %v1067 = vadd.s32 %v1066, 24
    %1068 = vset.pattern.permute.xlu0 %v1067
    %1069 = vperm.xlu0 %1068, %v1033
    %v1070 = vpop.permute.xlu0 %1069
    %v1071 = vlaneseq
    %v1072 = vshrl.u32 %v1071, 7
    %v1073 = vadd.s32 %v1072, 16
    %1074 = vset.pattern.permute.xlu0 %v1073
    %1075 = vperm.xlu0 %1074, %v1046
    %v1076 = vpop.permute.xlu0 %1075
    %v1077 = vlaneseq
    %v1078 = vshrl.u32 %v1077, 7
    %v1079 = vadd.s32 %v1078, 24
    %1080 = vset.pattern.permute.xlu0 %v1079
    %1081 = vperm.xlu0 %1080, %v1046
    %v1082 = vpop.permute.xlu0 %1081
    %v1083 = vsel %vm221, %v1039, %v1064
    %v1084 = vsel %vm221, %v1045, %v1070
    %v1085 = vsel %vm221, %v1052, %v1076
    %v1086 = vsel %vm221, %v1058, %v1082
    %v1087 = vlaneseq
    %v1088 = vshrl.u32 %v1087, 7
    %v1089 = vadd.s32 %v1088, 32
    %1090 = vset.pattern.permute.xlu0 %v1089
    %1091 = vperm.xlu0 %1090, %v1033
    %v1092 = vpop.permute.xlu0 %1091
    %v1093 = vlaneseq
    %v1094 = vshrl.u32 %v1093, 7
    %v1095 = vadd.s32 %v1094, 40
    %1096 = vset.pattern.permute.xlu0 %v1095
    %1097 = vperm.xlu0 %1096, %v1033
    %v1098 = vpop.permute.xlu0 %1097
    %v1099 = vlaneseq
    %v1100 = vshrl.u32 %v1099, 7
    %v1101 = vadd.s32 %v1100, 32
    %1102 = vset.pattern.permute.xlu0 %v1101
    %1103 = vperm.xlu0 %1102, %v1046
    %v1104 = vpop.permute.xlu0 %1103
    %v1105 = vlaneseq
    %v1106 = vshrl.u32 %v1105, 7
    %v1107 = vadd.s32 %v1106, 40
    %1108 = vset.pattern.permute.xlu0 %v1107
    %1109 = vperm.xlu0 %1108, %v1046
    %v1110 = vpop.permute.xlu0 %1109
    %v1111 = vlaneseq
    %v1112 = vshrl.u32 %v1111, 7
    %v1113 = vadd.s32 %v1112, 48
    %1114 = vset.pattern.permute.xlu0 %v1113
    %1115 = vperm.xlu0 %1114, %v1033
    %v1116 = vpop.permute.xlu0 %1115
    %v1117 = vlaneseq
    %v1118 = vshrl.u32 %v1117, 7
    %v1119 = vadd.s32 %v1118, 56
    %1120 = vset.pattern.permute.xlu0 %v1119
    %1121 = vperm.xlu0 %1120, %v1033
    %v1122 = vpop.permute.xlu0 %1121
    %v1123 = vlaneseq
    %v1124 = vshrl.u32 %v1123, 7
    %v1125 = vadd.s32 %v1124, 48
    %1126 = vset.pattern.permute.xlu0 %v1125
    %1127 = vperm.xlu0 %1126, %v1046
    %v1128 = vpop.permute.xlu0 %1127
    %v1129 = vlaneseq
    %v1130 = vshrl.u32 %v1129, 7
    %v1131 = vadd.s32 %v1130, 56
    %1132 = vset.pattern.permute.xlu0 %v1131
    %1133 = vperm.xlu0 %1132, %v1046
    %v1134 = vpop.permute.xlu0 %1133
    %v1135 = vsel %vm221, %v1092, %v1116
    %v1136 = vsel %vm221, %v1098, %v1122
    %v1137 = vsel %vm221, %v1104, %v1128
    %v1138 = vsel %vm221, %v1110, %v1134
    %v1139 = vmul.f32 %v1026, %v995
    %v1140 = vmul.f32 %v1028, %v996
    %v1141 = vmul.f32 %v1030, %v997
    %v1142 = vmul.f32 %v1032, %v998
    %v1143 = vperm.slane %v401, 4
    %v1144 = vperm.slane %v402, 4
    %v1145 = vmul.f32 %v1143, %v1083
    %v1146 = vmul.f32 %v1143, %v1084
    %v1147 = vmul.f32 %v1144, %v1085
    %v1148 = vmul.f32 %v1144, %v1086
    %v1149 = vadd.f32 %v1139, %v1145
    %v1150 = vadd.f32 %v1140, %v1146
    %v1151 = vadd.f32 %v1141, %v1147
    %v1152 = vadd.f32 %v1142, %v1148
    %v1153 = vmul.f32 %v1135, %v1149
    %v1154 = vmul.f32 %v1136, %v1150
    %v1155 = vmul.f32 %v1137, %v1151
    %v1156 = vmul.f32 %v1138, %v1152
    %v1157 = vadd.f32 %v1153, %v1154
    %v1158 = vrot.slane %v1157, 4
    %v1159 = vadd.f32 %v1157, %v1158
    %v1160 = vrot.slane %v1159, 2
    %v1161 = vadd.f32 %v1159, %v1160
    %v1162 = vrot.slane %v1161, 1
    %v1163 = vadd.f32 %v1161, %v1162
    %v1164 = vadd.f32 %v1155, %v1156
    %v1165 = vrot.slane %v1164, 4
    %v1166 = vadd.f32 %v1164, %v1165
    %v1167 = vrot.slane %v1166, 2
    %v1168 = vadd.f32 %v1166, %v1167
    %v1169 = vrot.slane %v1168, 1
    %v1170 = vadd.f32 %v1168, %v1169
    %1171 = vst [vmem:[#allocation2 + $0x4] sm:$0x1] %v1163
    %1172 = vst [vmem:[#allocation2 + $0xc] sm:$0x1] %v1170
    %v1173 = vperm.slane %v397, 5
    %v1174 = vperm.slane %v398, 5
    %v1175 = vmul.f32 %v1173, %v399
    %v1176 = vmul.f32 %v1173, %v400
    %v1177 = vmul.f32 %v1174, %v399
    %v1178 = vmul.f32 %v1174, %v400
    %v1179 = vmul.f32 %v1175, 1.442695
    %v1180 = vpow.pop %v1179
    %v1181 = vmul.f32 %v1176, 1.442695
    %v1182 = vpow.pop %v1181
    %v1183 = vmul.f32 %v1177, 1.442695
    %v1184 = vpow.pop %v1183
    %v1185 = vmul.f32 %v1178, 1.442695
    %v1186 = vpow.pop %v1185
    %v1187 = vperm.slane %v358, 5
    %v1188 = vlaneseq
    %v1189 = vshrl.u32 %v1188, 7
    %1191 = vset.pattern.permute.xlu0 %v1189
    %1192 = vperm.xlu0 %1191, %v1187
    %v1193 = vpop.permute.xlu0 %1192
    %v1194 = vlaneseq
    %v1195 = vshrl.u32 %v1194, 7
    %v1196 = vadd.s32 %v1195, 8
    %1197 = vset.pattern.permute.xlu0 %v1196
    %1198 = vperm.xlu0 %1197, %v1187
    %v1199 = vpop.permute.xlu0 %1198
    %v1200 = vperm.slane %v361, 5
    %v1201 = vlaneseq
    %v1202 = vshrl.u32 %v1201, 7
    %1204 = vset.pattern.permute.xlu0 %v1202
    %1205 = vperm.xlu0 %1204, %v1200
    %v1206 = vpop.permute.xlu0 %1205
    %v1207 = vlaneseq
    %v1208 = vshrl.u32 %v1207, 7
    %v1209 = vadd.s32 %v1208, 8
    %1210 = vset.pattern.permute.xlu0 %v1209
    %1211 = vperm.xlu0 %1210, %v1200
    %v1212 = vpop.permute.xlu0 %1211
    %v1213 = vlaneseq
    %v1214 = vshrl.u32 %v1213, 7
    %v1215 = vadd.s32 %v1214, 16
    %1216 = vset.pattern.permute.xlu0 %v1215
    %1217 = vperm.xlu0 %1216, %v1187
    %v1218 = vpop.permute.xlu0 %1217
    %v1219 = vlaneseq
    %v1220 = vshrl.u32 %v1219, 7
    %v1221 = vadd.s32 %v1220, 24
    %1222 = vset.pattern.permute.xlu0 %v1221
    %1223 = vperm.xlu0 %1222, %v1187
    %v1224 = vpop.permute.xlu0 %1223
    %v1225 = vlaneseq
    %v1226 = vshrl.u32 %v1225, 7
    %v1227 = vadd.s32 %v1226, 16
    %1228 = vset.pattern.permute.xlu0 %v1227
    %1229 = vperm.xlu0 %1228, %v1200
    %v1230 = vpop.permute.xlu0 %1229
    %v1231 = vlaneseq
    %v1232 = vshrl.u32 %v1231, 7
    %v1233 = vadd.s32 %v1232, 24
    %1234 = vset.pattern.permute.xlu0 %v1233
    %1235 = vperm.xlu0 %1234, %v1200
    %v1236 = vpop.permute.xlu0 %1235
    %v1237 = vsel %vm221, %v1193, %v1218
    %v1238 = vsel %vm221, %v1199, %v1224
    %v1239 = vsel %vm221, %v1206, %v1230
    %v1240 = vsel %vm221, %v1212, %v1236
    %v1241 = vlaneseq
    %v1242 = vshrl.u32 %v1241, 7
    %v1243 = vadd.s32 %v1242, 32
    %1244 = vset.pattern.permute.xlu0 %v1243
    %1245 = vperm.xlu0 %1244, %v1187
    %v1246 = vpop.permute.xlu0 %1245
    %v1247 = vlaneseq
    %v1248 = vshrl.u32 %v1247, 7
    %v1249 = vadd.s32 %v1248, 40
    %1250 = vset.pattern.permute.xlu0 %v1249
    %1251 = vperm.xlu0 %1250, %v1187
    %v1252 = vpop.permute.xlu0 %1251
    %v1253 = vlaneseq
    %v1254 = vshrl.u32 %v1253, 7
    %v1255 = vadd.s32 %v1254, 32
    %1256 = vset.pattern.permute.xlu0 %v1255
    %1257 = vperm.xlu0 %1256, %v1200
    %v1258 = vpop.permute.xlu0 %1257
    %v1259 = vlaneseq
    %v1260 = vshrl.u32 %v1259, 7
    %v1261 = vadd.s32 %v1260, 40
    %1262 = vset.pattern.permute.xlu0 %v1261
    %1263 = vperm.xlu0 %1262, %v1200
    %v1264 = vpop.permute.xlu0 %1263
    %v1265 = vlaneseq
    %v1266 = vshrl.u32 %v1265, 7
    %v1267 = vadd.s32 %v1266, 48
    %1268 = vset.pattern.permute.xlu0 %v1267
    %1269 = vperm.xlu0 %1268, %v1187
    %v1270 = vpop.permute.xlu0 %1269
    %v1271 = vlaneseq
    %v1272 = vshrl.u32 %v1271, 7
    %v1273 = vadd.s32 %v1272, 56
    %1274 = vset.pattern.permute.xlu0 %v1273
    %1275 = vperm.xlu0 %1274, %v1187
    %v1276 = vpop.permute.xlu0 %1275
    %v1277 = vlaneseq
    %v1278 = vshrl.u32 %v1277, 7
    %v1279 = vadd.s32 %v1278, 48
    %1280 = vset.pattern.permute.xlu0 %v1279
    %1281 = vperm.xlu0 %1280, %v1200
    %v1282 = vpop.permute.xlu0 %1281
    %v1283 = vlaneseq
    %v1284 = vshrl.u32 %v1283, 7
    %v1285 = vadd.s32 %v1284, 56
    %1286 = vset.pattern.permute.xlu0 %v1285
    %1287 = vperm.xlu0 %1286, %v1200
    %v1288 = vpop.permute.xlu0 %1287
    %v1289 = vsel %vm221, %v1246, %v1270
    %v1290 = vsel %vm221, %v1252, %v1276
    %v1291 = vsel %vm221, %v1258, %v1282
    %v1292 = vsel %vm221, %v1264, %v1288
    %v1293 = vmul.f32 %v1180, %v1149
    %v1294 = vmul.f32 %v1182, %v1150
    %v1295 = vmul.f32 %v1184, %v1151
    %v1296 = vmul.f32 %v1186, %v1152
    %v1297 = vperm.slane %v401, 5
    %v1298 = vperm.slane %v402, 5
    %v1299 = vmul.f32 %v1297, %v1237
    %v1300 = vmul.f32 %v1297, %v1238
    %v1301 = vmul.f32 %v1298, %v1239
    %v1302 = vmul.f32 %v1298, %v1240
    %v1303 = vadd.f32 %v1293, %v1299
    %v1304 = vadd.f32 %v1294, %v1300
    %v1305 = vadd.f32 %v1295, %v1301
    %v1306 = vadd.f32 %v1296, %v1302
    %v1307 = vmul.f32 %v1289, %v1303
    %v1308 = vmul.f32 %v1290, %v1304
    %v1309 = vmul.f32 %v1291, %v1305
    %v1310 = vmul.f32 %v1292, %v1306
    %v1311 = vadd.f32 %v1307, %v1308
    %v1312 = vrot.slane %v1311, 4
    %v1313 = vadd.f32 %v1311, %v1312
    %v1314 = vrot.slane %v1313, 2
    %v1315 = vadd.f32 %v1313, %v1314
    %v1316 = vrot.slane %v1315, 1
    %v1317 = vadd.f32 %v1315, %v1316
    %v1318 = vadd.f32 %v1309, %v1310
    %v1319 = vrot.slane %v1318, 4
    %v1320 = vadd.f32 %v1318, %v1319
    %v1321 = vrot.slane %v1320, 2
    %v1322 = vadd.f32 %v1320, %v1321
    %v1323 = vrot.slane %v1322, 1
    %v1324 = vadd.f32 %v1322, %v1323
    %1325 = vst [vmem:[#allocation2 + $0x5] sm:$0x1] %v1317
    %1326 = vst [vmem:[#allocation2 + $0xd] sm:$0x1] %v1324
    %v1327 = vperm.slane %v397, 6
    %v1328 = vperm.slane %v398, 6
    %v1329 = vmul.f32 %v1327, %v399
    %v1330 = vmul.f32 %v1327, %v400
    %v1331 = vmul.f32 %v1328, %v399
    %v1332 = vmul.f32 %v1328, %v400
    %v1333 = vmul.f32 %v1329, 1.442695
    %v1334 = vpow.pop %v1333
    %v1335 = vmul.f32 %v1330, 1.442695
    %v1336 = vpow.pop %v1335
    %v1337 = vmul.f32 %v1331, 1.442695
    %v1338 = vpow.pop %v1337
    %v1339 = vmul.f32 %v1332, 1.442695
    %v1340 = vpow.pop %v1339
    %v1341 = vperm.slane %v358, 6
    %v1342 = vlaneseq
    %v1343 = vshrl.u32 %v1342, 7
    %1345 = vset.pattern.permute.xlu0 %v1343
    %1346 = vperm.xlu0 %1345, %v1341
    %v1347 = vpop.permute.xlu0 %1346
    %v1348 = vlaneseq
    %v1349 = vshrl.u32 %v1348, 7
    %v1350 = vadd.s32 %v1349, 8
    %1351 = vset.pattern.permute.xlu0 %v1350
    %1352 = vperm.xlu0 %1351, %v1341
    %v1353 = vpop.permute.xlu0 %1352
    %v1354 = vperm.slane %v361, 6
    %v1355 = vlaneseq
    %v1356 = vshrl.u32 %v1355, 7
    %1358 = vset.pattern.permute.xlu0 %v1356
    %1359 = vperm.xlu0 %1358, %v1354
    %v1360 = vpop.permute.xlu0 %1359
    %v1361 = vlaneseq
    %v1362 = vshrl.u32 %v1361, 7
    %v1363 = vadd.s32 %v1362, 8
    %1364 = vset.pattern.permute.xlu0 %v1363
    %1365 = vperm.xlu0 %1364, %v1354
    %v1366 = vpop.permute.xlu0 %1365
    %v1367 = vlaneseq
    %v1368 = vshrl.u32 %v1367, 7
    %v1369 = vadd.s32 %v1368, 16
    %1370 = vset.pattern.permute.xlu0 %v1369
    %1371 = vperm.xlu0 %1370, %v1341
    %v1372 = vpop.permute.xlu0 %1371
    %v1373 = vlaneseq
    %v1374 = vshrl.u32 %v1373, 7
    %v1375 = vadd.s32 %v1374, 24
    %1376 = vset.pattern.permute.xlu0 %v1375
    %1377 = vperm.xlu0 %1376, %v1341
    %v1378 = vpop.permute.xlu0 %1377
    %v1379 = vlaneseq
    %v1380 = vshrl.u32 %v1379, 7
    %v1381 = vadd.s32 %v1380, 16
    %1382 = vset.pattern.permute.xlu0 %v1381
    %1383 = vperm.xlu0 %1382, %v1354
    %v1384 = vpop.permute.xlu0 %1383
    %v1385 = vlaneseq
    %v1386 = vshrl.u32 %v1385, 7
    %v1387 = vadd.s32 %v1386, 24
    %1388 = vset.pattern.permute.xlu0 %v1387
    %1389 = vperm.xlu0 %1388, %v1354
    %v1390 = vpop.permute.xlu0 %1389
    %v1391 = vsel %vm221, %v1347, %v1372
    %v1392 = vsel %vm221, %v1353, %v1378
    %v1393 = vsel %vm221, %v1360, %v1384
    %v1394 = vsel %vm221, %v1366, %v1390
    %v1395 = vlaneseq
    %v1396 = vshrl.u32 %v1395, 7
    %v1397 = vadd.s32 %v1396, 32
    %1398 = vset.pattern.permute.xlu0 %v1397
    %1399 = vperm.xlu0 %1398, %v1341
    %v1400 = vpop.permute.xlu0 %1399
    %v1401 = vlaneseq
    %v1402 = vshrl.u32 %v1401, 7
    %v1403 = vadd.s32 %v1402, 40
    %1404 = vset.pattern.permute.xlu0 %v1403
    %1405 = vperm.xlu0 %1404, %v1341
    %v1406 = vpop.permute.xlu0 %1405
    %v1407 = vlaneseq
    %v1408 = vshrl.u32 %v1407, 7
    %v1409 = vadd.s32 %v1408, 32
    %1410 = vset.pattern.permute.xlu0 %v1409
    %1411 = vperm.xlu0 %1410, %v1354
    %v1412 = vpop.permute.xlu0 %1411
    %v1413 = vlaneseq
    %v1414 = vshrl.u32 %v1413, 7
    %v1415 = vadd.s32 %v1414, 40
    %1416 = vset.pattern.permute.xlu0 %v1415
    %1417 = vperm.xlu0 %1416, %v1354
    %v1418 = vpop.permute.xlu0 %1417
    %v1419 = vlaneseq
    %v1420 = vshrl.u32 %v1419, 7
    %v1421 = vadd.s32 %v1420, 48
    %1422 = vset.pattern.permute.xlu0 %v1421
    %1423 = vperm.xlu0 %1422, %v1341
    %v1424 = vpop.permute.xlu0 %1423
    %v1425 = vlaneseq
    %v1426 = vshrl.u32 %v1425, 7
    %v1427 = vadd.s32 %v1426, 56
    %1428 = vset.pattern.permute.xlu0 %v1427
    %1429 = vperm.xlu0 %1428, %v1341
    %v1430 = vpop.permute.xlu0 %1429
    %v1431 = vlaneseq
    %v1432 = vshrl.u32 %v1431, 7
    %v1433 = vadd.s32 %v1432, 48
    %1434 = vset.pattern.permute.xlu0 %v1433
    %1435 = vperm.xlu0 %1434, %v1354
    %v1436 = vpop.permute.xlu0 %1435
    %v1437 = vlaneseq
    %v1438 = vshrl.u32 %v1437, 7
    %v1439 = vadd.s32 %v1438, 56
    %1440 = vset.pattern.permute.xlu0 %v1439
    %1441 = vperm.xlu0 %1440, %v1354
    %v1442 = vpop.permute.xlu0 %1441
    %v1443 = vsel %vm221, %v1400, %v1424
    %v1444 = vsel %vm221, %v1406, %v1430
    %v1445 = vsel %vm221, %v1412, %v1436
    %v1446 = vsel %vm221, %v1418, %v1442
    %v1447 = vmul.f32 %v1334, %v1303
    %v1448 = vmul.f32 %v1336, %v1304
    %v1449 = vmul.f32 %v1338, %v1305
    %v1450 = vmul.f32 %v1340, %v1306
    %v1451 = vperm.slane %v401, 6
    %v1452 = vperm.slane %v402, 6
    %v1453 = vmul.f32 %v1451, %v1391
    %v1454 = vmul.f32 %v1451, %v1392
    %v1455 = vmul.f32 %v1452, %v1393
    %v1456 = vmul.f32 %v1452, %v1394
    %v1457 = vadd.f32 %v1447, %v1453
    %v1458 = vadd.f32 %v1448, %v1454
    %v1459 = vadd.f32 %v1449, %v1455
    %v1460 = vadd.f32 %v1450, %v1456
    %v1461 = vmul.f32 %v1443, %v1457
    %v1462 = vmul.f32 %v1444, %v1458
    %v1463 = vmul.f32 %v1445, %v1459
    %v1464 = vmul.f32 %v1446, %v1460
    %v1465 = vadd.f32 %v1461, %v1462
    %v1466 = vrot.slane %v1465, 4
    %v1467 = vadd.f32 %v1465, %v1466
    %v1468 = vrot.slane %v1467, 2
    %v1469 = vadd.f32 %v1467, %v1468
    %v1470 = vrot.slane %v1469, 1
    %v1471 = vadd.f32 %v1469, %v1470
    %v1472 = vadd.f32 %v1463, %v1464
    %v1473 = vrot.slane %v1472, 4
    %v1474 = vadd.f32 %v1472, %v1473
    %v1475 = vrot.slane %v1474, 2
    %v1476 = vadd.f32 %v1474, %v1475
    %v1477 = vrot.slane %v1476, 1
    %v1478 = vadd.f32 %v1476, %v1477
    %1479 = vst [vmem:[#allocation2 + $0x6] sm:$0x1] %v1471
    %1480 = vst [vmem:[#allocation2 + $0xe] sm:$0x1] %v1478
    %v1481 = vperm.slane %v397, 7
    %v1482 = vperm.slane %v398, 7
    %v1483 = vmul.f32 %v1481, %v399
    %v1484 = vmul.f32 %v1481, %v400
    %v1485 = vmul.f32 %v1482, %v399
    %v1486 = vmul.f32 %v1482, %v400
    %v1487 = vmul.f32 %v1483, 1.442695
    %v1488 = vpow.pop %v1487
    %v1489 = vmul.f32 %v1484, 1.442695
    %v1490 = vpow.pop %v1489
    %v1491 = vmul.f32 %v1485, 1.442695
    %v1492 = vpow.pop %v1491
    %v1493 = vmul.f32 %v1486, 1.442695
    %v1494 = vpow.pop %v1493
    %v1495 = vperm.slane %v358, 7
    %v1496 = vlaneseq
    %v1497 = vshrl.u32 %v1496, 7
    %1499 = vset.pattern.permute.xlu0 %v1497
    %1500 = vperm.xlu0 %1499, %v1495
    %v1501 = vpop.permute.xlu0 %1500
    %v1502 = vlaneseq
    %v1503 = vshrl.u32 %v1502, 7
    %v1504 = vadd.s32 %v1503, 8
    %1505 = vset.pattern.permute.xlu0 %v1504
    %1506 = vperm.xlu0 %1505, %v1495
    %v1507 = vpop.permute.xlu0 %1506
    %v1508 = vperm.slane %v361, 7
    %v1509 = vlaneseq
    %v1510 = vshrl.u32 %v1509, 7
    %1512 = vset.pattern.permute.xlu0 %v1510
    %1513 = vperm.xlu0 %1512, %v1508
    %v1514 = vpop.permute.xlu0 %1513
    %v1515 = vlaneseq
    %v1516 = vshrl.u32 %v1515, 7
    %v1517 = vadd.s32 %v1516, 8
    %1518 = vset.pattern.permute.xlu0 %v1517
    %1519 = vperm.xlu0 %1518, %v1508
    %v1520 = vpop.permute.xlu0 %1519
    %v1521 = vlaneseq
    %v1522 = vshrl.u32 %v1521, 7
    %v1523 = vadd.s32 %v1522, 16
    %1524 = vset.pattern.permute.xlu0 %v1523
    %1525 = vperm.xlu0 %1524, %v1495
    %v1526 = vpop.permute.xlu0 %1525
    %v1527 = vlaneseq
    %v1528 = vshrl.u32 %v1527, 7
    %v1529 = vadd.s32 %v1528, 24
    %1530 = vset.pattern.permute.xlu0 %v1529
    %1531 = vperm.xlu0 %1530, %v1495
    %v1532 = vpop.permute.xlu0 %1531
    %v1533 = vlaneseq
    %v1534 = vshrl.u32 %v1533, 7
    %v1535 = vadd.s32 %v1534, 16
    %1536 = vset.pattern.permute.xlu0 %v1535
    %1537 = vperm.xlu0 %1536, %v1508
    %v1538 = vpop.permute.xlu0 %1537
    %v1539 = vlaneseq
    %v1540 = vshrl.u32 %v1539, 7
    %v1541 = vadd.s32 %v1540, 24
    %1542 = vset.pattern.permute.xlu0 %v1541
    %1543 = vperm.xlu0 %1542, %v1508
    %v1544 = vpop.permute.xlu0 %1543
    %v1545 = vsel %vm221, %v1501, %v1526
    %v1546 = vsel %vm221, %v1507, %v1532
    %v1547 = vsel %vm221, %v1514, %v1538
    %v1548 = vsel %vm221, %v1520, %v1544
    %v1549 = vlaneseq
    %v1550 = vshrl.u32 %v1549, 7
    %v1551 = vadd.s32 %v1550, 32
    %1552 = vset.pattern.permute.xlu0 %v1551
    %1553 = vperm.xlu0 %1552, %v1495
    %v1554 = vpop.permute.xlu0 %1553
    %v1555 = vlaneseq
    %v1556 = vshrl.u32 %v1555, 7
    %v1557 = vadd.s32 %v1556, 40
    %1558 = vset.pattern.permute.xlu0 %v1557
    %1559 = vperm.xlu0 %1558, %v1495
    %v1560 = vpop.permute.xlu0 %1559
    %v1561 = vlaneseq
    %v1562 = vshrl.u32 %v1561, 7
    %v1563 = vadd.s32 %v1562, 32
    %1564 = vset.pattern.permute.xlu0 %v1563
    %1565 = vperm.xlu0 %1564, %v1508
    %v1566 = vpop.permute.xlu0 %1565
    %v1567 = vlaneseq
    %v1568 = vshrl.u32 %v1567, 7
    %v1569 = vadd.s32 %v1568, 40
    %1570 = vset.pattern.permute.xlu0 %v1569
    %1571 = vperm.xlu0 %1570, %v1508
    %v1572 = vpop.permute.xlu0 %1571
    %v1573 = vlaneseq
    %v1574 = vshrl.u32 %v1573, 7
    %v1575 = vadd.s32 %v1574, 48
    %1576 = vset.pattern.permute.xlu0 %v1575
    %1577 = vperm.xlu0 %1576, %v1495
    %v1578 = vpop.permute.xlu0 %1577
    %v1579 = vlaneseq
    %v1580 = vshrl.u32 %v1579, 7
    %v1581 = vadd.s32 %v1580, 56
    %1582 = vset.pattern.permute.xlu0 %v1581
    %1583 = vperm.xlu0 %1582, %v1495
    %v1584 = vpop.permute.xlu0 %1583
    %v1585 = vlaneseq
    %v1586 = vshrl.u32 %v1585, 7
    %v1587 = vadd.s32 %v1586, 48
    %1588 = vset.pattern.permute.xlu0 %v1587
    %1589 = vperm.xlu0 %1588, %v1508
    %v1590 = vpop.permute.xlu0 %1589
    %v1591 = vlaneseq
    %v1592 = vshrl.u32 %v1591, 7
    %v1593 = vadd.s32 %v1592, 56
    %1594 = vset.pattern.permute.xlu0 %v1593
    %1595 = vperm.xlu0 %1594, %v1508
    %v1596 = vpop.permute.xlu0 %1595
    %v1597 = vsel %vm221, %v1554, %v1578
    %v1598 = vsel %vm221, %v1560, %v1584
    %v1599 = vsel %vm221, %v1566, %v1590
    %v1600 = vsel %vm221, %v1572, %v1596
    %v1601 = vmul.f32 %v1488, %v1457
    %v1602 = vmul.f32 %v1490, %v1458
    %v1603 = vmul.f32 %v1492, %v1459
    %v1604 = vmul.f32 %v1494, %v1460
    %v1605 = vperm.slane %v401, 7
    %v1606 = vperm.slane %v402, 7
    %v1607 = vmul.f32 %v1605, %v1545
    %v1608 = vmul.f32 %v1605, %v1546
    %v1609 = vmul.f32 %v1606, %v1547
    %v1610 = vmul.f32 %v1606, %v1548
    %v1611 = vadd.f32 %v1601, %v1607
    %v1612 = vadd.f32 %v1602, %v1608
    %v1613 = vadd.f32 %v1603, %v1609
    %v1614 = vadd.f32 %v1604, %v1610
    %v1615 = vmul.f32 %v1597, %v1611
    %v1616 = vmul.f32 %v1598, %v1612
    %v1617 = vmul.f32 %v1599, %v1613
    %v1618 = vmul.f32 %v1600, %v1614
    %v1619 = vadd.f32 %v1615, %v1616
    %v1620 = vrot.slane %v1619, 4
    %v1621 = vadd.f32 %v1619, %v1620
    %v1622 = vrot.slane %v1621, 2
    %v1623 = vadd.f32 %v1621, %v1622
    %v1624 = vrot.slane %v1623, 1
    %v1625 = vadd.f32 %v1623, %v1624
    %v1626 = vadd.f32 %v1617, %v1618
    %v1627 = vrot.slane %v1626, 4
    %v1628 = vadd.f32 %v1626, %v1627
    %v1629 = vrot.slane %v1628, 2
    %v1630 = vadd.f32 %v1628, %v1629
    %v1631 = vrot.slane %v1630, 1
    %v1632 = vadd.f32 %v1630, %v1631
    %1633 = vst [vmem:[#allocation2 + $0x7] sm:$0x1] %v1625
    %1634 = vst [vmem:[#allocation2 + $0xf] sm:$0x1] %v1632
    %v1635 = vld [vmem:[#allocation2] sm:$0xff]
    %v1636 = vld [vmem:[#allocation2 + $0x8] sm:$0xff]
    %v1637 = vld [vmem:[%s10] sm:$0x1]
    %v1639 = vperm.slane %v1637, 0
    %v1641 = vmul.f32 %v283, %v1639
    %v1642 = vmul.f32 %v284, %v1639
    %v1643 = vadd.f32 %v1635, %v1641
    %v1644 = vadd.f32 %v1636, %v1642
    %v1647 = vrot.slane %v1643, 7
    %v1648 = vrot.slane %v1644, 7
    %v1651 = vrot.slane %v1643, 5
    %v1652 = vrot.slane %v1644, 5
    %v1655 = vrot.slane %v1643, 3
    %v1656 = vrot.slane %v1644, 3
    %v1659 = vrot.slane %v1643, 1
    %v1660 = vrot.slane %v1644, 1
    %v1663 = vsel %vm192, %v1647, %v1651
    %v1664 = vsel %vm192, %v1648, %v1652
    %v1665 = vsel %vm195, %v1663, %v1655
    %v1666 = vsel %vm195, %v1664, %v1656
    %v1667 = vsel %vm198, %v1665, %v1659
    %v1668 = vsel %vm198, %v1666, %v1660
    %v1669 = vsel %vm201, %v1667, %v1647
    %v1670 = vsel %vm201, %v1668, %v1648
    %v1671 = vsel %vm204, %v1669, %v1651
    %v1672 = vsel %vm204, %v1670, %v1652
    %v1673 = vsel %vm207, %v1671, %v1655
    %v1674 = vsel %vm207, %v1672, %v1656
    %v1675 = vsel %vm210, %v1673, %v1659
    %v1676 = vsel %vm210, %v1674, %v1660
    %v1677 = vsel %vm74, %v1643, %v1675
    %v1678 = vsel %vm74, %v1644, %v1676
    %v1679 = vsub.f32 0.0, %v169
    %v1680 = vsub.f32 0.0, %v172
    %v1681 = vmul.f32 %v1679, 1.442695
    %v1682 = vpow.pop %v1681
    %v1683 = vmul.f32 %v1680, 1.442695
    %v1684 = vpow.pop %v1683
    %v1685 = vadd.f32 %v1682, 1.0
    %v1686 = vadd.f32 %v1684, 1.0
    %v1687 = vrcp.pop %v1685
    %v1688 = vrcp.pop %v1686
    %v1689 = vmul.f32 %v169, %v1687
    %v1690 = vmul.f32 %v172, %v1688
    %1693 = vrot.lane.b32.xlu0 %v1689, 64
    %v1694 = vpop.permute.xlu0 %1693
    %1695 = vrot.lane.b32.xlu0 %v1690, 64
    %v1696 = vpop.permute.xlu0 %1695
    %v1699 = vsel %vm221, %v1694, %v1689
    %v1700 = vsel %vm221, %v1696, %v1690
    %v1701 = vmul.f32 %v1677, %v1699
    %v1702 = vmul.f32 %v1678, %v1700
    %v1703 = vld [vmem:[%s11] sm:$0xff]
    %v1704 = vld [vmem:[%s11 + $0x8] sm:$0xff]
    %v1705 = vld [vmem:[%s11 + $0x10] sm:$0xff]
    %v1706 = vld [vmem:[%s11 + $0x18] sm:$0xff]
    %v1707 = vld [vmem:[%s11 + $0x20] sm:$0xff]
    %v1708 = vld [vmem:[%s11 + $0x28] sm:$0xff]
    %v1709 = vld [vmem:[%s11 + $0x30] sm:$0xff]
    %v1710 = vld [vmem:[%s11 + $0x38] sm:$0xff]
    %v1711 = vld [vmem:[%s11 + $0x40] sm:$0xff]
    %v1712 = vld [vmem:[%s11 + $0x48] sm:$0xff]
    %v1713 = vld [vmem:[%s11 + $0x50] sm:$0xff]
    %v1714 = vld [vmem:[%s11 + $0x58] sm:$0xff]
    %v1715 = vld [vmem:[%s11 + $0x60] sm:$0xff]
    %v1716 = vld [vmem:[%s11 + $0x68] sm:$0xff]
    %v1717 = vld [vmem:[%s11 + $0x70] sm:$0xff]
    %v1718 = vld [vmem:[%s11 + $0x78] sm:$0xff]
    %1719 = vmatpush.msra.mxu0 %v1718
    %1720 = vmatpush.msra.mxu0 %v1717
    %1721 = vmatpush.msra.mxu0 %v1716
    %1722 = vmatpush.msra.mxu0 %v1715
    %1723 = vmatpush.msra.mxu0 %v1714
    %1724 = vmatpush.msra.mxu0 %v1713
    %1725 = vmatpush.msra.mxu0 %v1712
    %1726 = vmatpush.msra.mxu0 %v1711
    %1727 = vmatpush.msra.mxu0 %v1710
    %1728 = vmatpush.msra.mxu0 %v1709
    %1729 = vmatpush.msra.mxu0 %v1708
    %1730 = vmatpush.msra.mxu0 %v1707
    %1731 = vmatpush.msra.mxu0 %v1706
    %1732 = vmatpush.msra.mxu0 %v1705
    %1733 = vmatpush.msra.mxu0 %v1704
    %1734 = vmatpush.msra.mxu0 %v1703
    %1735 = vmatmul.f32.gmra.mxu0 %v1701
    %v1736 = vpop.f32.mrf.mxu0
    %v1737 = vadd.f32 %v75, %v1736
    %1738 = vmatmul.f32.gmra.mxu0 %v1702
    %v1739 = vpop.f32.mrf.mxu0
    %v1740 = vadd.f32 %v76, %v1739
    %1741 = vdwg.mxu0
    %s1742 = scalar_lea.vmem %s2, 1
    %v1743 = vld [vmem:[%s1742] sm:$0x1]
    %s1744 = scalar_lea.vmem %s3, 1
    %v1745 = vld [vmem:[%s1744] sm:$0x1]
    %v1746 = vsel %vm79, %v1737, 0.0
    %1747 = vadd.xlane.f32.xlu0 %v1746
    %v1748 = vpop.xlane.xlu0 %1747
    %v1749 = vsel %vm79, %v1740, 0.0
    %1750 = vadd.xlane.f32.xlu0 %v1749
    %v1751 = vpop.xlane.xlu0 %1750
    %v1752 = vmul.f32 %v1748, %v92
    %v1753 = vmul.f32 %v1751, %v92
    %v1754 = vsub.f32 %v1737, %v1752
    %v1755 = vsub.f32 %v1740, %v1753
    %v1756 = vmul.f32 %v1754, %v1754
    %v1757 = vmul.f32 %v1755, %v1755
    %v1758 = vsel %vm79, %v1756, 0.0
    %1759 = vadd.xlane.f32.xlu0 %v1758
    %v1760 = vpop.xlane.xlu0 %1759
    %v1761 = vsel %vm79, %v1757, 0.0
    %1762 = vadd.xlane.f32.xlu0 %v1761
    %v1763 = vpop.xlane.xlu0 %1762
    %v1764 = vmul.f32 %v1760, %v92
    %v1765 = vmul.f32 %v1763, %v92
    %v1766 = vadd.f32 %v1764, 1e-05
    %v1767 = vadd.f32 %v1765, 1e-05
    %v1768 = vrsqrt.pop %v1766
    %v1769 = vmul.f32 %v1768, %v1766
    %v1770 = vmul.f32 %v1769, %v1768
    %v1771 = vmul.f32 0.5, %v1770
    %v1772 = vsub.f32 1.5, %v1771
    %v1773 = vmul.f32 %v1768, %v1772
    %vm1774 = vweird.f32 %v1766
    %vm1775 = vweird.f32 %v1768
    %vm1776 = vmor %vm1774, %vm1775
    %v1777 = vsel %vm1776, %v1768, %v1773
    %v1778 = vrsqrt.pop %v1767
    %v1779 = vmul.f32 %v1778, %v1767
    %v1780 = vmul.f32 %v1779, %v1778
    %v1781 = vmul.f32 0.5, %v1780
    %v1782 = vsub.f32 1.5, %v1781
    %v1783 = vmul.f32 %v1778, %v1782
    %vm1784 = vweird.f32 %v1767
    %vm1785 = vweird.f32 %v1778
    %vm1786 = vmor %vm1784, %vm1785
    %v1787 = vsel %vm1786, %v1778, %v1783
    %v1788 = vmul.f32 %v1754, %v1777
    %v1789 = vmul.f32 %v1755, %v1787
    %v1791 = vperm.slane %v1743, 0
    %v1793 = vmul.f32 %v1788, %v1791
    %v1794 = vmul.f32 %v1789, %v1791
    %v1796 = vperm.slane %v1745, 0
    %v1798 = vadd.f32 %v1793, %v1796
    %v1799 = vadd.f32 %v1794, %v1796
    %s1800 = scalar_lea.vmem %s4, 32
    %v1801 = vld [vmem:[%s1800] sm:$0xff]
    %v1802 = vld [vmem:[%s1800 + $0x8] sm:$0xff]
    %v1803 = vld [vmem:[%s1800 + $0x10] sm:$0xff]
    %v1804 = vld [vmem:[%s1800 + $0x18] sm:$0xff]
    %v1806 = vsel %vm79, %v1798, 0
    %v1809 = vsel %vm79, %v1799, 0
    %1811 = vmatpush.msra.mxu0 0.0
    %1812 = vmatpush.msra.mxu0 0.0
    %1813 = vmatpush.msra.mxu0 0.0
    %1814 = vmatpush.msra.mxu0 0.0
    %1815 = vmatpush.msra.mxu0 0.0
    %1816 = vmatpush.msra.mxu0 0.0
    %1817 = vmatpush.msra.mxu0 0.0
    %1818 = vmatpush.msra.mxu0 0.0
    %1819 = vmatpush.msra.mxu0 0.0
    %1820 = vmatpush.msra.mxu0 0.0
    %1821 = vmatpush.msra.mxu0 0.0
    %1822 = vmatpush.msra.mxu0 0.0
    %1823 = vmatpush.msra.mxu0 %v1804
    %1824 = vmatpush.msra.mxu0 %v1803
    %1825 = vmatpush.msra.mxu0 %v1802
    %1826 = vmatpush.msra.mxu0 %v1801
    %1827 = vmatmul.f32.gmra.mxu0 %v1806
    %v1828 = vpop.f32.mrf.mxu0
    %v1829 = vadd.f32 0.0, %v1828
    %1830 = vmatmul.f32.gmra.mxu0 %v1809
    %v1831 = vpop.f32.mrf.mxu0
    %v1832 = vadd.f32 0.0, %v1831
    %1833 = vdwg.mxu0
    %v1836 = vrot.slane %v1829, 7
    %v1837 = vrot.slane %v1832, 7
    %v1840 = vrot.slane %v1829, 5
    %v1841 = vrot.slane %v1832, 5
    %v1844 = vrot.slane %v1829, 3
    %v1845 = vrot.slane %v1832, 3
    %v1848 = vrot.slane %v1829, 1
    %v1849 = vrot.slane %v1832, 1
    %v1852 = vsel %vm192, %v1836, %v1840
    %v1853 = vsel %vm192, %v1837, %v1841
    %v1854 = vsel %vm195, %v1852, %v1844
    %v1855 = vsel %vm195, %v1853, %v1845
    %v1856 = vsel %vm198, %v1854, %v1848
    %v1857 = vsel %vm198, %v1855, %v1849
    %v1858 = vsel %vm201, %v1856, %v1836
    %v1859 = vsel %vm201, %v1857, %v1837
    %v1860 = vsel %vm204, %v1858, %v1840
    %v1861 = vsel %vm204, %v1859, %v1841
    %v1862 = vsel %vm207, %v1860, %v1844
    %v1863 = vsel %vm207, %v1861, %v1845
    %v1864 = vsel %vm210, %v1862, %v1848
    %v1865 = vsel %vm210, %v1863, %v1849
    %1868 = vrot.lane.b32.xlu0 %v1864, 64
    %v1869 = vpop.permute.xlu0 %1868
    %1870 = vrot.lane.b32.xlu0 %v1865, 64
    %v1871 = vpop.permute.xlu0 %1870
    %v1874 = vsel %vm221, %v1829, %v1869
    %v1875 = vsel %vm221, %v1832, %v1871
    %s1876 = scalar_lea.vmem %s5, 4
    %v1877 = vld [vmem:[%s1876] sm:$0xf]
    %v1878 = vperm.slane %v1877, 3
    %v1879 = vmul.f32 %v1874, %v1878
    %v1880 = vmul.f32 %v1875, %v1878
    %s1881 = scalar_lea.vmem %s6, 1
    %v1882 = vld [vmem:[%s1881] sm:$0x1]
    %v1884 = vperm.slane %v1882, 0
    %v1886 = vadd.f32 %v1879, %v1884
    %v1887 = vadd.f32 %v1880, %v1884
    %v1888 = vrot.slane %v1874, 7
    %v1889 = vrot.slane %v1875, 7
    %v1890 = vsel %vm237, %v1888, %v1889
    %v1891 = vsel %vm237, %v1889, %v1888
    %v1892 = vsel %vm234, %v1891, 0.0
    %v1893 = vsel %vm234, %v1890, 0.0
    %v1894 = vperm.slane %v1877, 2
    %v1895 = vmul.f32 %v1892, %v1894
    %v1896 = vmul.f32 %v1893, %v1894
    %v1897 = vadd.f32 %v1886, %v1895
    %v1898 = vadd.f32 %v1887, %v1896
    %v1899 = vrot.slane %v1874, 6
    %v1900 = vrot.slane %v1875, 6
    %v1901 = vsel %vm250, %v1899, %v1900
    %v1902 = vsel %vm250, %v1900, %v1899
    %v1903 = vsel %vm247, %v1902, 0.0
    %v1904 = vsel %vm247, %v1901, 0.0
    %v1905 = vperm.slane %v1877, 1
    %v1906 = vmul.f32 %v1903, %v1905
    %v1907 = vmul.f32 %v1904, %v1905
    %v1908 = vadd.f32 %v1897, %v1906
    %v1909 = vadd.f32 %v1898, %v1907
    %v1910 = vrot.slane %v1874, 5
    %v1911 = vrot.slane %v1875, 5
    %v1912 = vsel %vm263, %v1910, %v1911
    %v1913 = vsel %vm263, %v1911, %v1910
    %v1914 = vsel %vm260, %v1913, 0.0
    %v1915 = vsel %vm260, %v1912, 0.0
    %v1916 = vperm.slane %v1877, 0
    %v1917 = vmul.f32 %v1914, %v1916
    %v1918 = vmul.f32 %v1915, %v1916
    %v1919 = vadd.f32 %v1908, %v1917
    %v1920 = vadd.f32 %v1909, %v1918
    %v1921 = vsub.f32 0.0, %v1919
    %v1922 = vsub.f32 0.0, %v1920
    %v1923 = vmul.f32 %v1921, 1.442695
    %v1924 = vpow.pop %v1923
    %v1925 = vmul.f32 %v1922, 1.442695
    %v1926 = vpow.pop %v1925
    %v1927 = vadd.f32 %v1924, 1.0
    %v1928 = vadd.f32 %v1926, 1.0
    %v1929 = vrcp.pop %v1927
    %v1930 = vrcp.pop %v1928
    %v1931 = vmul.f32 %v1919, %v1929
    %v1932 = vmul.f32 %v1920, %v1930
    %s1933 = scalar_lea.vmem [#allocation3], 256
    %v1934 = vld [vmem:[%s1933] sm:$0xff]
    %v1935 = vld [vmem:[%s1933 + $0x8] sm:$0xff]
    %v1936 = vld [vmem:[%s1933 + $0x10] sm:$0xff]
    %v1937 = vld [vmem:[%s1933 + $0x18] sm:$0xff]
    %v1938 = vld [vmem:[%s1933 + $0x20] sm:$0xff]
    %v1939 = vld [vmem:[%s1933 + $0x28] sm:$0xff]
    %v1940 = vld [vmem:[%s1933 + $0x30] sm:$0xff]
    %v1941 = vld [vmem:[%s1933 + $0x38] sm:$0xff]
    %v1942 = vld [vmem:[%s1933 + $0x40] sm:$0xff]
    %v1943 = vld [vmem:[%s1933 + $0x48] sm:$0xff]
    %v1944 = vld [vmem:[%s1933 + $0x50] sm:$0xff]
    %v1945 = vld [vmem:[%s1933 + $0x58] sm:$0xff]
    %v1946 = vld [vmem:[%s1933 + $0x60] sm:$0xff]
    %v1947 = vld [vmem:[%s1933 + $0x68] sm:$0xff]
    %v1948 = vld [vmem:[%s1933 + $0x70] sm:$0xff]
    %v1949 = vld [vmem:[%s1933 + $0x78] sm:$0xff]
    %v1950 = vld [vmem:[%s1933 + $0x80] sm:$0xff]
    %v1951 = vld [vmem:[%s1933 + $0x88] sm:$0xff]
    %v1952 = vld [vmem:[%s1933 + $0x90] sm:$0xff]
    %v1953 = vld [vmem:[%s1933 + $0x98] sm:$0xff]
    %v1954 = vld [vmem:[%s1933 + $0xa0] sm:$0xff]
    %v1955 = vld [vmem:[%s1933 + $0xa8] sm:$0xff]
    %v1956 = vld [vmem:[%s1933 + $0xb0] sm:$0xff]
    %v1957 = vld [vmem:[%s1933 + $0xb8] sm:$0xff]
    %v1958 = vld [vmem:[%s1933 + $0xc0] sm:$0xff]
    %v1959 = vld [vmem:[%s1933 + $0xc8] sm:$0xff]
    %v1960 = vld [vmem:[%s1933 + $0xd0] sm:$0xff]
    %v1961 = vld [vmem:[%s1933 + $0xd8] sm:$0xff]
    %v1962 = vld [vmem:[%s1933 + $0xe0] sm:$0xff]
    %v1963 = vld [vmem:[%s1933 + $0xe8] sm:$0xff]
    %v1964 = vld [vmem:[%s1933 + $0xf0] sm:$0xff]
    %v1965 = vld [vmem:[%s1933 + $0xf8] sm:$0xff]
    %1966 = vmatpush.msra.mxu0 %v1964
    %1967 = vmatpush.msra.mxu0 %v1962
    %1968 = vmatpush.msra.mxu0 %v1960
    %1969 = vmatpush.msra.mxu0 %v1958
    %1970 = vmatpush.msra.mxu0 %v1956
    %1971 = vmatpush.msra.mxu0 %v1954
    %1972 = vmatpush.msra.mxu0 %v1952
    %1973 = vmatpush.msra.mxu0 %v1950
    %1974 = vmatpush.msra.mxu0 %v1948
    %1975 = vmatpush.msra.mxu0 %v1946
    %1976 = vmatpush.msra.mxu0 %v1944
    %1977 = vmatpush.msra.mxu0 %v1942
    %1978 = vmatpush.msra.mxu0 %v1940
    %1979 = vmatpush.msra.mxu0 %v1938
    %1980 = vmatpush.msra.mxu0 %v1936
    %1981 = vmatpush.msra.mxu0 %v1934
    %1982 = vmatmul.f32.gmra.mxu0 %v1931
    %v1983 = vpop.f32.mrf.mxu0
    %v1984 = vadd.f32 0.0, %v1983
    %1985 = vmatmul.f32.gmra.mxu0 %v1932
    %v1986 = vpop.f32.mrf.mxu0
    %v1987 = vadd.f32 0.0, %v1986
    %1988 = vdwg.mxu0
    %1989 = vmatpush.msra.mxu0 %v1965
    %1990 = vmatpush.msra.mxu0 %v1963
    %1991 = vmatpush.msra.mxu0 %v1961
    %1992 = vmatpush.msra.mxu0 %v1959
    %1993 = vmatpush.msra.mxu0 %v1957
    %1994 = vmatpush.msra.mxu0 %v1955
    %1995 = vmatpush.msra.mxu0 %v1953
    %1996 = vmatpush.msra.mxu0 %v1951
    %1997 = vmatpush.msra.mxu0 %v1949
    %1998 = vmatpush.msra.mxu0 %v1947
    %1999 = vmatpush.msra.mxu0 %v1945
    %2000 = vmatpush.msra.mxu0 %v1943
    %2001 = vmatpush.msra.mxu0 %v1941
    %2002 = vmatpush.msra.mxu0 %v1939
    %2003 = vmatpush.msra.mxu0 %v1937
    %2004 = vmatpush.msra.mxu0 %v1935
    %2005 = vmatmul.f32.gmra.mxu0 %v1931
    %v2006 = vpop.f32.mrf.mxu0
    %v2007 = vadd.f32 0.0, %v2006
    %2008 = vmatmul.f32.gmra.mxu0 %v1932
    %v2009 = vpop.f32.mrf.mxu0
    %v2010 = vadd.f32 0.0, %v2009
    %2011 = vdwg.mxu0
    %s2012 = scalar_lea.vmem %s8, 1
    %v2013 = vld [vmem:[%s2012] sm:$0x1]
    %v2015 = vperm.slane %v2013, 0
    %v2017 = vadd.f32 %v1984, %v2015
    %v2018 = vadd.f32 %v1987, %v2015
    %v2019 = vmax.f32 %v2017, 0.0
    %v2020 = vmax.f32 %v2018, 0.0
    %v2021 = vand.u32 2147483647, %v2017
    %v2022 = vand.u32 2147483647, %v2018
    %v2023 = vsub.f32 0.0, %v2021
    %v2024 = vsub.f32 0.0, %v2022
    %v2025 = vmul.f32 %v2023, 1.442695
    %v2026 = vpow.pop %v2025
    %v2027 = vmul.f32 %v2024, 1.442695
    %v2028 = vpow.pop %v2027
    %v2029 = vadd.f32 %v2026, 1.0
    %v2030 = vlog2.pop %v2029
    %v2031 = vmul.f32 %v2030, 0.6931472
    %v2032 = vmul.f32 -0.5, %v2026
    %v2033 = vadd.f32 %v2032, 1.0
    %v2034 = vmul.f32 %v2033, %v2026
    %v2035 = vand.u32 2147483647, %v2026
    %vm2036 = vcmp.lt.f32.partialorder %v2035, 0.0004427343
    %v2037 = vsel %vm2036, %v2034, %v2031
    %v2038 = vadd.f32 %v2028, 1.0
    %v2039 = vlog2.pop %v2038
    %v2040 = vmul.f32 %v2039, 0.6931472
    %v2041 = vmul.f32 -0.5, %v2028
    %v2042 = vadd.f32 %v2041, 1.0
    %v2043 = vmul.f32 %v2042, %v2028
    %v2044 = vand.u32 2147483647, %v2028
    %vm2045 = vcmp.lt.f32.partialorder %v2044, 0.0004427343
    %v2046 = vsel %vm2045, %v2043, %v2040
    %v2047 = vadd.f32 %v2019, %v2037
    %v2048 = vadd.f32 %v2020, %v2046
    %s2049 = scalar_lea.vmem %s9, 16
    %v2050 = vld [vmem:[%s2049] sm:$0xff]
    %v2051 = vld [vmem:[%s2049 + $0x8] sm:$0xff]
    %v2052 = vmul.f32 %v2047, %v1931
    %v2053 = vmul.f32 %v2048, %v1932
    %v2054 = vperm.slane %v2047, 0
    %v2055 = vperm.slane %v2048, 0
    %v2056 = vmul.f32 %v2054, %v2050
    %v2057 = vmul.f32 %v2054, %v2051
    %v2058 = vmul.f32 %v2055, %v2050
    %v2059 = vmul.f32 %v2055, %v2051
    %v2060 = vmul.f32 %v2056, 1.442695
    %v2061 = vpow.pop %v2060
    %v2062 = vmul.f32 %v2057, 1.442695
    %v2063 = vpow.pop %v2062
    %v2064 = vmul.f32 %v2058, 1.442695
    %v2065 = vpow.pop %v2064
    %v2066 = vmul.f32 %v2059, 1.442695
    %v2067 = vpow.pop %v2066
    %v2068 = vperm.slane %v2007, 0
    %v2069 = vlaneseq
    %v2070 = vshrl.u32 %v2069, 7
    %2072 = vset.pattern.permute.xlu0 %v2070
    %2073 = vperm.xlu0 %2072, %v2068
    %v2074 = vpop.permute.xlu0 %2073
    %v2075 = vlaneseq
    %v2076 = vshrl.u32 %v2075, 7
    %v2077 = vadd.s32 %v2076, 8
    %2078 = vset.pattern.permute.xlu0 %v2077
    %2079 = vperm.xlu0 %2078, %v2068
    %v2080 = vpop.permute.xlu0 %2079
    %v2081 = vperm.slane %v2010, 0
    %v2082 = vlaneseq
    %v2083 = vshrl.u32 %v2082, 7
    %2085 = vset.pattern.permute.xlu0 %v2083
    %2086 = vperm.xlu0 %2085, %v2081
    %v2087 = vpop.permute.xlu0 %2086
    %v2088 = vlaneseq
    %v2089 = vshrl.u32 %v2088, 7
    %v2090 = vadd.s32 %v2089, 8
    %2091 = vset.pattern.permute.xlu0 %v2090
    %2092 = vperm.xlu0 %2091, %v2081
    %v2093 = vpop.permute.xlu0 %2092
    %v2094 = vlaneseq
    %v2095 = vshrl.u32 %v2094, 7
    %v2096 = vadd.s32 %v2095, 16
    %2097 = vset.pattern.permute.xlu0 %v2096
    %2098 = vperm.xlu0 %2097, %v2068
    %v2099 = vpop.permute.xlu0 %2098
    %v2100 = vlaneseq
    %v2101 = vshrl.u32 %v2100, 7
    %v2102 = vadd.s32 %v2101, 24
    %2103 = vset.pattern.permute.xlu0 %v2102
    %2104 = vperm.xlu0 %2103, %v2068
    %v2105 = vpop.permute.xlu0 %2104
    %v2106 = vlaneseq
    %v2107 = vshrl.u32 %v2106, 7
    %v2108 = vadd.s32 %v2107, 16
    %2109 = vset.pattern.permute.xlu0 %v2108
    %2110 = vperm.xlu0 %2109, %v2081
    %v2111 = vpop.permute.xlu0 %2110
    %v2112 = vlaneseq
    %v2113 = vshrl.u32 %v2112, 7
    %v2114 = vadd.s32 %v2113, 24
    %2115 = vset.pattern.permute.xlu0 %v2114
    %2116 = vperm.xlu0 %2115, %v2081
    %v2117 = vpop.permute.xlu0 %2116
    %v2118 = vsel %vm221, %v2074, %v2099
    %v2119 = vsel %vm221, %v2080, %v2105
    %v2120 = vsel %vm221, %v2087, %v2111
    %v2121 = vsel %vm221, %v2093, %v2117
    %v2122 = vlaneseq
    %v2123 = vshrl.u32 %v2122, 7
    %v2124 = vadd.s32 %v2123, 32
    %2125 = vset.pattern.permute.xlu0 %v2124
    %2126 = vperm.xlu0 %2125, %v2068
    %v2127 = vpop.permute.xlu0 %2126
    %v2128 = vlaneseq
    %v2129 = vshrl.u32 %v2128, 7
    %v2130 = vadd.s32 %v2129, 40
    %2131 = vset.pattern.permute.xlu0 %v2130
    %2132 = vperm.xlu0 %2131, %v2068
    %v2133 = vpop.permute.xlu0 %2132
    %v2134 = vlaneseq
    %v2135 = vshrl.u32 %v2134, 7
    %v2136 = vadd.s32 %v2135, 32
    %2137 = vset.pattern.permute.xlu0 %v2136
    %2138 = vperm.xlu0 %2137, %v2081
    %v2139 = vpop.permute.xlu0 %2138
    %v2140 = vlaneseq
    %v2141 = vshrl.u32 %v2140, 7
    %v2142 = vadd.s32 %v2141, 40
    %2143 = vset.pattern.permute.xlu0 %v2142
    %2144 = vperm.xlu0 %2143, %v2081
    %v2145 = vpop.permute.xlu0 %2144
    %v2146 = vlaneseq
    %v2147 = vshrl.u32 %v2146, 7
    %v2148 = vadd.s32 %v2147, 48
    %2149 = vset.pattern.permute.xlu0 %v2148
    %2150 = vperm.xlu0 %2149, %v2068
    %v2151 = vpop.permute.xlu0 %2150
    %v2152 = vlaneseq
    %v2153 = vshrl.u32 %v2152, 7
    %v2154 = vadd.s32 %v2153, 56
    %2155 = vset.pattern.permute.xlu0 %v2154
    %2156 = vperm.xlu0 %2155, %v2068
    %v2157 = vpop.permute.xlu0 %2156
    %v2158 = vlaneseq
    %v2159 = vshrl.u32 %v2158, 7
    %v2160 = vadd.s32 %v2159, 48
    %2161 = vset.pattern.permute.xlu0 %v2160
    %2162 = vperm.xlu0 %2161, %v2081
    %v2163 = vpop.permute.xlu0 %2162
    %v2164 = vlaneseq
    %v2165 = vshrl.u32 %v2164, 7
    %v2166 = vadd.s32 %v2165, 56
    %2167 = vset.pattern.permute.xlu0 %v2166
    %2168 = vperm.xlu0 %2167, %v2081
    %v2169 = vpop.permute.xlu0 %2168
    %v2170 = vsel %vm221, %v2127, %v2151
    %v2171 = vsel %vm221, %v2133, %v2157
    %v2172 = vsel %vm221, %v2139, %v2163
    %v2173 = vsel %vm221, %v2145, %v2169
    %v2174 = vmul.f32 %v2061, 0.0
    %v2175 = vmul.f32 %v2063, 0.0
    %v2176 = vmul.f32 %v2065, 0.0
    %v2177 = vmul.f32 %v2067, 0.0
    %v2178 = vperm.slane %v2052, 0
    %v2179 = vperm.slane %v2053, 0
    %v2180 = vmul.f32 %v2178, %v2118
    %v2181 = vmul.f32 %v2178, %v2119
    %v2182 = vmul.f32 %v2179, %v2120
    %v2183 = vmul.f32 %v2179, %v2121
    %v2184 = vadd.f32 %v2174, %v2180
    %v2185 = vadd.f32 %v2175, %v2181
    %v2186 = vadd.f32 %v2176, %v2182
    %v2187 = vadd.f32 %v2177, %v2183
    %v2188 = vmul.f32 %v2170, %v2184
    %v2189 = vmul.f32 %v2171, %v2185
    %v2190 = vmul.f32 %v2172, %v2186
    %v2191 = vmul.f32 %v2173, %v2187
    %v2192 = vadd.f32 %v2188, %v2189
    %v2193 = vrot.slane %v2192, 4
    %v2194 = vadd.f32 %v2192, %v2193
    %v2195 = vrot.slane %v2194, 2
    %v2196 = vadd.f32 %v2194, %v2195
    %v2197 = vrot.slane %v2196, 1
    %v2198 = vadd.f32 %v2196, %v2197
    %v2199 = vadd.f32 %v2190, %v2191
    %v2200 = vrot.slane %v2199, 4
    %v2201 = vadd.f32 %v2199, %v2200
    %v2202 = vrot.slane %v2201, 2
    %v2203 = vadd.f32 %v2201, %v2202
    %v2204 = vrot.slane %v2203, 1
    %v2205 = vadd.f32 %v2203, %v2204
    %2206 = vst [vmem:[#allocation2] sm:$0x1] %v2198
    %2207 = vst [vmem:[#allocation2 + $0x8] sm:$0x1] %v2205
    %v2208 = vperm.slane %v2047, 1
    %v2209 = vperm.slane %v2048, 1
    %v2210 = vmul.f32 %v2208, %v2050
    %v2211 = vmul.f32 %v2208, %v2051
    %v2212 = vmul.f32 %v2209, %v2050
    %v2213 = vmul.f32 %v2209, %v2051
    %v2214 = vmul.f32 %v2210, 1.442695
    %v2215 = vpow.pop %v2214
    %v2216 = vmul.f32 %v2211, 1.442695
    %v2217 = vpow.pop %v2216
    %v2218 = vmul.f32 %v2212, 1.442695
    %v2219 = vpow.pop %v2218
    %v2220 = vmul.f32 %v2213, 1.442695
    %v2221 = vpow.pop %v2220
    %v2222 = vperm.slane %v2007, 1
    %v2223 = vlaneseq
    %v2224 = vshrl.u32 %v2223, 7
    %2226 = vset.pattern.permute.xlu0 %v2224
    %2227 = vperm.xlu0 %2226, %v2222
    %v2228 = vpop.permute.xlu0 %2227
    %v2229 = vlaneseq
    %v2230 = vshrl.u32 %v2229, 7
    %v2231 = vadd.s32 %v2230, 8
    %2232 = vset.pattern.permute.xlu0 %v2231
    %2233 = vperm.xlu0 %2232, %v2222
    %v2234 = vpop.permute.xlu0 %2233
    %v2235 = vperm.slane %v2010, 1
    %v2236 = vlaneseq
    %v2237 = vshrl.u32 %v2236, 7
    %2239 = vset.pattern.permute.xlu0 %v2237
    %2240 = vperm.xlu0 %2239, %v2235
    %v2241 = vpop.permute.xlu0 %2240
    %v2242 = vlaneseq
    %v2243 = vshrl.u32 %v2242, 7
    %v2244 = vadd.s32 %v2243, 8
    %2245 = vset.pattern.permute.xlu0 %v2244
    %2246 = vperm.xlu0 %2245, %v2235
    %v2247 = vpop.permute.xlu0 %2246
    %v2248 = vlaneseq
    %v2249 = vshrl.u32 %v2248, 7
    %v2250 = vadd.s32 %v2249, 16
    %2251 = vset.pattern.permute.xlu0 %v2250
    %2252 = vperm.xlu0 %2251, %v2222
    %v2253 = vpop.permute.xlu0 %2252
    %v2254 = vlaneseq
    %v2255 = vshrl.u32 %v2254, 7
    %v2256 = vadd.s32 %v2255, 24
    %2257 = vset.pattern.permute.xlu0 %v2256
    %2258 = vperm.xlu0 %2257, %v2222
    %v2259 = vpop.permute.xlu0 %2258
    %v2260 = vlaneseq
    %v2261 = vshrl.u32 %v2260, 7
    %v2262 = vadd.s32 %v2261, 16
    %2263 = vset.pattern.permute.xlu0 %v2262
    %2264 = vperm.xlu0 %2263, %v2235
    %v2265 = vpop.permute.xlu0 %2264
    %v2266 = vlaneseq
    %v2267 = vshrl.u32 %v2266, 7
    %v2268 = vadd.s32 %v2267, 24
    %2269 = vset.pattern.permute.xlu0 %v2268
    %2270 = vperm.xlu0 %2269, %v2235
    %v2271 = vpop.permute.xlu0 %2270
    %v2272 = vsel %vm221, %v2228, %v2253
    %v2273 = vsel %vm221, %v2234, %v2259
    %v2274 = vsel %vm221, %v2241, %v2265
    %v2275 = vsel %vm221, %v2247, %v2271
    %v2276 = vlaneseq
    %v2277 = vshrl.u32 %v2276, 7
    %v2278 = vadd.s32 %v2277, 32
    %2279 = vset.pattern.permute.xlu0 %v2278
    %2280 = vperm.xlu0 %2279, %v2222
    %v2281 = vpop.permute.xlu0 %2280
    %v2282 = vlaneseq
    %v2283 = vshrl.u32 %v2282, 7
    %v2284 = vadd.s32 %v2283, 40
    %2285 = vset.pattern.permute.xlu0 %v2284
    %2286 = vperm.xlu0 %2285, %v2222
    %v2287 = vpop.permute.xlu0 %2286
    %v2288 = vlaneseq
    %v2289 = vshrl.u32 %v2288, 7
    %v2290 = vadd.s32 %v2289, 32
    %2291 = vset.pattern.permute.xlu0 %v2290
    %2292 = vperm.xlu0 %2291, %v2235
    %v2293 = vpop.permute.xlu0 %2292
    %v2294 = vlaneseq
    %v2295 = vshrl.u32 %v2294, 7
    %v2296 = vadd.s32 %v2295, 40
    %2297 = vset.pattern.permute.xlu0 %v2296
    %2298 = vperm.xlu0 %2297, %v2235
    %v2299 = vpop.permute.xlu0 %2298
    %v2300 = vlaneseq
    %v2301 = vshrl.u32 %v2300, 7
    %v2302 = vadd.s32 %v2301, 48
    %2303 = vset.pattern.permute.xlu0 %v2302
    %2304 = vperm.xlu0 %2303, %v2222
    %v2305 = vpop.permute.xlu0 %2304
    %v2306 = vlaneseq
    %v2307 = vshrl.u32 %v2306, 7
    %v2308 = vadd.s32 %v2307, 56
    %2309 = vset.pattern.permute.xlu0 %v2308
    %2310 = vperm.xlu0 %2309, %v2222
    %v2311 = vpop.permute.xlu0 %2310
    %v2312 = vlaneseq
    %v2313 = vshrl.u32 %v2312, 7
    %v2314 = vadd.s32 %v2313, 48
    %2315 = vset.pattern.permute.xlu0 %v2314
    %2316 = vperm.xlu0 %2315, %v2235
    %v2317 = vpop.permute.xlu0 %2316
    %v2318 = vlaneseq
    %v2319 = vshrl.u32 %v2318, 7
    %v2320 = vadd.s32 %v2319, 56
    %2321 = vset.pattern.permute.xlu0 %v2320
    %2322 = vperm.xlu0 %2321, %v2235
    %v2323 = vpop.permute.xlu0 %2322
    %v2324 = vsel %vm221, %v2281, %v2305
    %v2325 = vsel %vm221, %v2287, %v2311
    %v2326 = vsel %vm221, %v2293, %v2317
    %v2327 = vsel %vm221, %v2299, %v2323
    %v2328 = vmul.f32 %v2215, %v2184
    %v2329 = vmul.f32 %v2217, %v2185
    %v2330 = vmul.f32 %v2219, %v2186
    %v2331 = vmul.f32 %v2221, %v2187
    %v2332 = vperm.slane %v2052, 1
    %v2333 = vperm.slane %v2053, 1
    %v2334 = vmul.f32 %v2332, %v2272
    %v2335 = vmul.f32 %v2332, %v2273
    %v2336 = vmul.f32 %v2333, %v2274
    %v2337 = vmul.f32 %v2333, %v2275
    %v2338 = vadd.f32 %v2328, %v2334
    %v2339 = vadd.f32 %v2329, %v2335
    %v2340 = vadd.f32 %v2330, %v2336
    %v2341 = vadd.f32 %v2331, %v2337
    %v2342 = vmul.f32 %v2324, %v2338
    %v2343 = vmul.f32 %v2325, %v2339
    %v2344 = vmul.f32 %v2326, %v2340
    %v2345 = vmul.f32 %v2327, %v2341
    %v2346 = vadd.f32 %v2342, %v2343
    %v2347 = vrot.slane %v2346, 4
    %v2348 = vadd.f32 %v2346, %v2347
    %v2349 = vrot.slane %v2348, 2
    %v2350 = vadd.f32 %v2348, %v2349
    %v2351 = vrot.slane %v2350, 1
    %v2352 = vadd.f32 %v2350, %v2351
    %v2353 = vadd.f32 %v2344, %v2345
    %v2354 = vrot.slane %v2353, 4
    %v2355 = vadd.f32 %v2353, %v2354
    %v2356 = vrot.slane %v2355, 2
    %v2357 = vadd.f32 %v2355, %v2356
    %v2358 = vrot.slane %v2357, 1
    %v2359 = vadd.f32 %v2357, %v2358
    %2360 = vst [vmem:[#allocation2 + $0x1] sm:$0x1] %v2352
    %2361 = vst [vmem:[#allocation2 + $0x9] sm:$0x1] %v2359
    %v2362 = vperm.slane %v2047, 2
    %v2363 = vperm.slane %v2048, 2
    %v2364 = vmul.f32 %v2362, %v2050
    %v2365 = vmul.f32 %v2362, %v2051
    %v2366 = vmul.f32 %v2363, %v2050
    %v2367 = vmul.f32 %v2363, %v2051
    %v2368 = vmul.f32 %v2364, 1.442695
    %v2369 = vpow.pop %v2368
    %v2370 = vmul.f32 %v2365, 1.442695
    %v2371 = vpow.pop %v2370
    %v2372 = vmul.f32 %v2366, 1.442695
    %v2373 = vpow.pop %v2372
    %v2374 = vmul.f32 %v2367, 1.442695
    %v2375 = vpow.pop %v2374
    %v2376 = vperm.slane %v2007, 2
    %v2377 = vlaneseq
    %v2378 = vshrl.u32 %v2377, 7
    %2380 = vset.pattern.permute.xlu0 %v2378
    %2381 = vperm.xlu0 %2380, %v2376
    %v2382 = vpop.permute.xlu0 %2381
    %v2383 = vlaneseq
    %v2384 = vshrl.u32 %v2383, 7
    %v2385 = vadd.s32 %v2384, 8
    %2386 = vset.pattern.permute.xlu0 %v2385
    %2387 = vperm.xlu0 %2386, %v2376
    %v2388 = vpop.permute.xlu0 %2387
    %v2389 = vperm.slane %v2010, 2
    %v2390 = vlaneseq
    %v2391 = vshrl.u32 %v2390, 7
    %2393 = vset.pattern.permute.xlu0 %v2391
    %2394 = vperm.xlu0 %2393, %v2389
    %v2395 = vpop.permute.xlu0 %2394
    %v2396 = vlaneseq
    %v2397 = vshrl.u32 %v2396, 7
    %v2398 = vadd.s32 %v2397, 8
    %2399 = vset.pattern.permute.xlu0 %v2398
    %2400 = vperm.xlu0 %2399, %v2389
    %v2401 = vpop.permute.xlu0 %2400
    %v2402 = vlaneseq
    %v2403 = vshrl.u32 %v2402, 7
    %v2404 = vadd.s32 %v2403, 16
    %2405 = vset.pattern.permute.xlu0 %v2404
    %2406 = vperm.xlu0 %2405, %v2376
    %v2407 = vpop.permute.xlu0 %2406
    %v2408 = vlaneseq
    %v2409 = vshrl.u32 %v2408, 7
    %v2410 = vadd.s32 %v2409, 24
    %2411 = vset.pattern.permute.xlu0 %v2410
    %2412 = vperm.xlu0 %2411, %v2376
    %v2413 = vpop.permute.xlu0 %2412
    %v2414 = vlaneseq
    %v2415 = vshrl.u32 %v2414, 7
    %v2416 = vadd.s32 %v2415, 16
    %2417 = vset.pattern.permute.xlu0 %v2416
    %2418 = vperm.xlu0 %2417, %v2389
    %v2419 = vpop.permute.xlu0 %2418
    %v2420 = vlaneseq
    %v2421 = vshrl.u32 %v2420, 7
    %v2422 = vadd.s32 %v2421, 24
    %2423 = vset.pattern.permute.xlu0 %v2422
    %2424 = vperm.xlu0 %2423, %v2389
    %v2425 = vpop.permute.xlu0 %2424
    %v2426 = vsel %vm221, %v2382, %v2407
    %v2427 = vsel %vm221, %v2388, %v2413
    %v2428 = vsel %vm221, %v2395, %v2419
    %v2429 = vsel %vm221, %v2401, %v2425
    %v2430 = vlaneseq
    %v2431 = vshrl.u32 %v2430, 7
    %v2432 = vadd.s32 %v2431, 32
    %2433 = vset.pattern.permute.xlu0 %v2432
    %2434 = vperm.xlu0 %2433, %v2376
    %v2435 = vpop.permute.xlu0 %2434
    %v2436 = vlaneseq
    %v2437 = vshrl.u32 %v2436, 7
    %v2438 = vadd.s32 %v2437, 40
    %2439 = vset.pattern.permute.xlu0 %v2438
    %2440 = vperm.xlu0 %2439, %v2376
    %v2441 = vpop.permute.xlu0 %2440
    %v2442 = vlaneseq
    %v2443 = vshrl.u32 %v2442, 7
    %v2444 = vadd.s32 %v2443, 32
    %2445 = vset.pattern.permute.xlu0 %v2444
    %2446 = vperm.xlu0 %2445, %v2389
    %v2447 = vpop.permute.xlu0 %2446
    %v2448 = vlaneseq
    %v2449 = vshrl.u32 %v2448, 7
    %v2450 = vadd.s32 %v2449, 40
    %2451 = vset.pattern.permute.xlu0 %v2450
    %2452 = vperm.xlu0 %2451, %v2389
    %v2453 = vpop.permute.xlu0 %2452
    %v2454 = vlaneseq
    %v2455 = vshrl.u32 %v2454, 7
    %v2456 = vadd.s32 %v2455, 48
    %2457 = vset.pattern.permute.xlu0 %v2456
    %2458 = vperm.xlu0 %2457, %v2376
    %v2459 = vpop.permute.xlu0 %2458
    %v2460 = vlaneseq
    %v2461 = vshrl.u32 %v2460, 7
    %v2462 = vadd.s32 %v2461, 56
    %2463 = vset.pattern.permute.xlu0 %v2462
    %2464 = vperm.xlu0 %2463, %v2376
    %v2465 = vpop.permute.xlu0 %2464
    %v2466 = vlaneseq
    %v2467 = vshrl.u32 %v2466, 7
    %v2468 = vadd.s32 %v2467, 48
    %2469 = vset.pattern.permute.xlu0 %v2468
    %2470 = vperm.xlu0 %2469, %v2389
    %v2471 = vpop.permute.xlu0 %2470
    %v2472 = vlaneseq
    %v2473 = vshrl.u32 %v2472, 7
    %v2474 = vadd.s32 %v2473, 56
    %2475 = vset.pattern.permute.xlu0 %v2474
    %2476 = vperm.xlu0 %2475, %v2389
    %v2477 = vpop.permute.xlu0 %2476
    %v2478 = vsel %vm221, %v2435, %v2459
    %v2479 = vsel %vm221, %v2441, %v2465
    %v2480 = vsel %vm221, %v2447, %v2471
    %v2481 = vsel %vm221, %v2453, %v2477
    %v2482 = vmul.f32 %v2369, %v2338
    %v2483 = vmul.f32 %v2371, %v2339
    %v2484 = vmul.f32 %v2373, %v2340
    %v2485 = vmul.f32 %v2375, %v2341
    %v2486 = vperm.slane %v2052, 2
    %v2487 = vperm.slane %v2053, 2
    %v2488 = vmul.f32 %v2486, %v2426
    %v2489 = vmul.f32 %v2486, %v2427
    %v2490 = vmul.f32 %v2487, %v2428
    %v2491 = vmul.f32 %v2487, %v2429
    %v2492 = vadd.f32 %v2482, %v2488
    %v2493 = vadd.f32 %v2483, %v2489
    %v2494 = vadd.f32 %v2484, %v2490
    %v2495 = vadd.f32 %v2485, %v2491
    %v2496 = vmul.f32 %v2478, %v2492
    %v2497 = vmul.f32 %v2479, %v2493
    %v2498 = vmul.f32 %v2480, %v2494
    %v2499 = vmul.f32 %v2481, %v2495
    %v2500 = vadd.f32 %v2496, %v2497
    %v2501 = vrot.slane %v2500, 4
    %v2502 = vadd.f32 %v2500, %v2501
    %v2503 = vrot.slane %v2502, 2
    %v2504 = vadd.f32 %v2502, %v2503
    %v2505 = vrot.slane %v2504, 1
    %v2506 = vadd.f32 %v2504, %v2505
    %v2507 = vadd.f32 %v2498, %v2499
    %v2508 = vrot.slane %v2507, 4
    %v2509 = vadd.f32 %v2507, %v2508
    %v2510 = vrot.slane %v2509, 2
    %v2511 = vadd.f32 %v2509, %v2510
    %v2512 = vrot.slane %v2511, 1
    %v2513 = vadd.f32 %v2511, %v2512
    %2514 = vst [vmem:[#allocation2 + $0x2] sm:$0x1] %v2506
    %2515 = vst [vmem:[#allocation2 + $0xa] sm:$0x1] %v2513
    %v2516 = vperm.slane %v2047, 3
    %v2517 = vperm.slane %v2048, 3
    %v2518 = vmul.f32 %v2516, %v2050
    %v2519 = vmul.f32 %v2516, %v2051
    %v2520 = vmul.f32 %v2517, %v2050
    %v2521 = vmul.f32 %v2517, %v2051
    %v2522 = vmul.f32 %v2518, 1.442695
    %v2523 = vpow.pop %v2522
    %v2524 = vmul.f32 %v2519, 1.442695
    %v2525 = vpow.pop %v2524
    %v2526 = vmul.f32 %v2520, 1.442695
    %v2527 = vpow.pop %v2526
    %v2528 = vmul.f32 %v2521, 1.442695
    %v2529 = vpow.pop %v2528
    %v2530 = vperm.slane %v2007, 3
    %v2531 = vlaneseq
    %v2532 = vshrl.u32 %v2531, 7
    %2534 = vset.pattern.permute.xlu0 %v2532
    %2535 = vperm.xlu0 %2534, %v2530
    %v2536 = vpop.permute.xlu0 %2535
    %v2537 = vlaneseq
    %v2538 = vshrl.u32 %v2537, 7
    %v2539 = vadd.s32 %v2538, 8
    %2540 = vset.pattern.permute.xlu0 %v2539
    %2541 = vperm.xlu0 %2540, %v2530
    %v2542 = vpop.permute.xlu0 %2541
    %v2543 = vperm.slane %v2010, 3
    %v2544 = vlaneseq
    %v2545 = vshrl.u32 %v2544, 7
    %2547 = vset.pattern.permute.xlu0 %v2545
    %2548 = vperm.xlu0 %2547, %v2543
    %v2549 = vpop.permute.xlu0 %2548
    %v2550 = vlaneseq
    %v2551 = vshrl.u32 %v2550, 7
    %v2552 = vadd.s32 %v2551, 8
    %2553 = vset.pattern.permute.xlu0 %v2552
    %2554 = vperm.xlu0 %2553, %v2543
    %v2555 = vpop.permute.xlu0 %2554
    %v2556 = vlaneseq
    %v2557 = vshrl.u32 %v2556, 7
    %v2558 = vadd.s32 %v2557, 16
    %2559 = vset.pattern.permute.xlu0 %v2558
    %2560 = vperm.xlu0 %2559, %v2530
    %v2561 = vpop.permute.xlu0 %2560
    %v2562 = vlaneseq
    %v2563 = vshrl.u32 %v2562, 7
    %v2564 = vadd.s32 %v2563, 24
    %2565 = vset.pattern.permute.xlu0 %v2564
    %2566 = vperm.xlu0 %2565, %v2530
    %v2567 = vpop.permute.xlu0 %2566
    %v2568 = vlaneseq
    %v2569 = vshrl.u32 %v2568, 7
    %v2570 = vadd.s32 %v2569, 16
    %2571 = vset.pattern.permute.xlu0 %v2570
    %2572 = vperm.xlu0 %2571, %v2543
    %v2573 = vpop.permute.xlu0 %2572
    %v2574 = vlaneseq
    %v2575 = vshrl.u32 %v2574, 7
    %v2576 = vadd.s32 %v2575, 24
    %2577 = vset.pattern.permute.xlu0 %v2576
    %2578 = vperm.xlu0 %2577, %v2543
    %v2579 = vpop.permute.xlu0 %2578
    %v2580 = vsel %vm221, %v2536, %v2561
    %v2581 = vsel %vm221, %v2542, %v2567
    %v2582 = vsel %vm221, %v2549, %v2573
    %v2583 = vsel %vm221, %v2555, %v2579
    %v2584 = vlaneseq
    %v2585 = vshrl.u32 %v2584, 7
    %v2586 = vadd.s32 %v2585, 32
    %2587 = vset.pattern.permute.xlu0 %v2586
    %2588 = vperm.xlu0 %2587, %v2530
    %v2589 = vpop.permute.xlu0 %2588
    %v2590 = vlaneseq
    %v2591 = vshrl.u32 %v2590, 7
    %v2592 = vadd.s32 %v2591, 40
    %2593 = vset.pattern.permute.xlu0 %v2592
    %2594 = vperm.xlu0 %2593, %v2530
    %v2595 = vpop.permute.xlu0 %2594
    %v2596 = vlaneseq
    %v2597 = vshrl.u32 %v2596, 7
    %v2598 = vadd.s32 %v2597, 32
    %2599 = vset.pattern.permute.xlu0 %v2598
    %2600 = vperm.xlu0 %2599, %v2543
    %v2601 = vpop.permute.xlu0 %2600
    %v2602 = vlaneseq
    %v2603 = vshrl.u32 %v2602, 7
    %v2604 = vadd.s32 %v2603, 40
    %2605 = vset.pattern.permute.xlu0 %v2604
    %2606 = vperm.xlu0 %2605, %v2543
    %v2607 = vpop.permute.xlu0 %2606
    %v2608 = vlaneseq
    %v2609 = vshrl.u32 %v2608, 7
    %v2610 = vadd.s32 %v2609, 48
    %2611 = vset.pattern.permute.xlu0 %v2610
    %2612 = vperm.xlu0 %2611, %v2530
    %v2613 = vpop.permute.xlu0 %2612
    %v2614 = vlaneseq
    %v2615 = vshrl.u32 %v2614, 7
    %v2616 = vadd.s32 %v2615, 56
    %2617 = vset.pattern.permute.xlu0 %v2616
    %2618 = vperm.xlu0 %2617, %v2530
    %v2619 = vpop.permute.xlu0 %2618
    %v2620 = vlaneseq
    %v2621 = vshrl.u32 %v2620, 7
    %v2622 = vadd.s32 %v2621, 48
    %2623 = vset.pattern.permute.xlu0 %v2622
    %2624 = vperm.xlu0 %2623, %v2543
    %v2625 = vpop.permute.xlu0 %2624
    %v2626 = vlaneseq
    %v2627 = vshrl.u32 %v2626, 7
    %v2628 = vadd.s32 %v2627, 56
    %2629 = vset.pattern.permute.xlu0 %v2628
    %2630 = vperm.xlu0 %2629, %v2543
    %v2631 = vpop.permute.xlu0 %2630
    %v2632 = vsel %vm221, %v2589, %v2613
    %v2633 = vsel %vm221, %v2595, %v2619
    %v2634 = vsel %vm221, %v2601, %v2625
    %v2635 = vsel %vm221, %v2607, %v2631
    %v2636 = vmul.f32 %v2523, %v2492
    %v2637 = vmul.f32 %v2525, %v2493
    %v2638 = vmul.f32 %v2527, %v2494
    %v2639 = vmul.f32 %v2529, %v2495
    %v2640 = vperm.slane %v2052, 3
    %v2641 = vperm.slane %v2053, 3
    %v2642 = vmul.f32 %v2640, %v2580
    %v2643 = vmul.f32 %v2640, %v2581
    %v2644 = vmul.f32 %v2641, %v2582
    %v2645 = vmul.f32 %v2641, %v2583
    %v2646 = vadd.f32 %v2636, %v2642
    %v2647 = vadd.f32 %v2637, %v2643
    %v2648 = vadd.f32 %v2638, %v2644
    %v2649 = vadd.f32 %v2639, %v2645
    %v2650 = vmul.f32 %v2632, %v2646
    %v2651 = vmul.f32 %v2633, %v2647
    %v2652 = vmul.f32 %v2634, %v2648
    %v2653 = vmul.f32 %v2635, %v2649
    %v2654 = vadd.f32 %v2650, %v2651
    %v2655 = vrot.slane %v2654, 4
    %v2656 = vadd.f32 %v2654, %v2655
    %v2657 = vrot.slane %v2656, 2
    %v2658 = vadd.f32 %v2656, %v2657
    %v2659 = vrot.slane %v2658, 1
    %v2660 = vadd.f32 %v2658, %v2659
    %v2661 = vadd.f32 %v2652, %v2653
    %v2662 = vrot.slane %v2661, 4
    %v2663 = vadd.f32 %v2661, %v2662
    %v2664 = vrot.slane %v2663, 2
    %v2665 = vadd.f32 %v2663, %v2664
    %v2666 = vrot.slane %v2665, 1
    %v2667 = vadd.f32 %v2665, %v2666
    %2668 = vst [vmem:[#allocation2 + $0x3] sm:$0x1] %v2660
    %2669 = vst [vmem:[#allocation2 + $0xb] sm:$0x1] %v2667
    %v2670 = vperm.slane %v2047, 4
    %v2671 = vperm.slane %v2048, 4
    %v2672 = vmul.f32 %v2670, %v2050
    %v2673 = vmul.f32 %v2670, %v2051
    %v2674 = vmul.f32 %v2671, %v2050
    %v2675 = vmul.f32 %v2671, %v2051
    %v2676 = vmul.f32 %v2672, 1.442695
    %v2677 = vpow.pop %v2676
    %v2678 = vmul.f32 %v2673, 1.442695
    %v2679 = vpow.pop %v2678
    %v2680 = vmul.f32 %v2674, 1.442695
    %v2681 = vpow.pop %v2680
    %v2682 = vmul.f32 %v2675, 1.442695
    %v2683 = vpow.pop %v2682
    %v2684 = vperm.slane %v2007, 4
    %v2685 = vlaneseq
    %v2686 = vshrl.u32 %v2685, 7
    %2688 = vset.pattern.permute.xlu0 %v2686
    %2689 = vperm.xlu0 %2688, %v2684
    %v2690 = vpop.permute.xlu0 %2689
    %v2691 = vlaneseq
    %v2692 = vshrl.u32 %v2691, 7
    %v2693 = vadd.s32 %v2692, 8
    %2694 = vset.pattern.permute.xlu0 %v2693
    %2695 = vperm.xlu0 %2694, %v2684
    %v2696 = vpop.permute.xlu0 %2695
    %v2697 = vperm.slane %v2010, 4
    %v2698 = vlaneseq
    %v2699 = vshrl.u32 %v2698, 7
    %2701 = vset.pattern.permute.xlu0 %v2699
    %2702 = vperm.xlu0 %2701, %v2697
    %v2703 = vpop.permute.xlu0 %2702
    %v2704 = vlaneseq
    %v2705 = vshrl.u32 %v2704, 7
    %v2706 = vadd.s32 %v2705, 8
    %2707 = vset.pattern.permute.xlu0 %v2706
    %2708 = vperm.xlu0 %2707, %v2697
    %v2709 = vpop.permute.xlu0 %2708
    %v2710 = vlaneseq
    %v2711 = vshrl.u32 %v2710, 7
    %v2712 = vadd.s32 %v2711, 16
    %2713 = vset.pattern.permute.xlu0 %v2712
    %2714 = vperm.xlu0 %2713, %v2684
    %v2715 = vpop.permute.xlu0 %2714
    %v2716 = vlaneseq
    %v2717 = vshrl.u32 %v2716, 7
    %v2718 = vadd.s32 %v2717, 24
    %2719 = vset.pattern.permute.xlu0 %v2718
    %2720 = vperm.xlu0 %2719, %v2684
    %v2721 = vpop.permute.xlu0 %2720
    %v2722 = vlaneseq
    %v2723 = vshrl.u32 %v2722, 7
    %v2724 = vadd.s32 %v2723, 16
    %2725 = vset.pattern.permute.xlu0 %v2724
    %2726 = vperm.xlu0 %2725, %v2697
    %v2727 = vpop.permute.xlu0 %2726
    %v2728 = vlaneseq
    %v2729 = vshrl.u32 %v2728, 7
    %v2730 = vadd.s32 %v2729, 24
    %2731 = vset.pattern.permute.xlu0 %v2730
    %2732 = vperm.xlu0 %2731, %v2697
    %v2733 = vpop.permute.xlu0 %2732
    %v2734 = vsel %vm221, %v2690, %v2715
    %v2735 = vsel %vm221, %v2696, %v2721
    %v2736 = vsel %vm221, %v2703, %v2727
    %v2737 = vsel %vm221, %v2709, %v2733
    %v2738 = vlaneseq
    %v2739 = vshrl.u32 %v2738, 7
    %v2740 = vadd.s32 %v2739, 32
    %2741 = vset.pattern.permute.xlu0 %v2740
    %2742 = vperm.xlu0 %2741, %v2684
    %v2743 = vpop.permute.xlu0 %2742
    %v2744 = vlaneseq
    %v2745 = vshrl.u32 %v2744, 7
    %v2746 = vadd.s32 %v2745, 40
    %2747 = vset.pattern.permute.xlu0 %v2746
    %2748 = vperm.xlu0 %2747, %v2684
    %v2749 = vpop.permute.xlu0 %2748
    %v2750 = vlaneseq
    %v2751 = vshrl.u32 %v2750, 7
    %v2752 = vadd.s32 %v2751, 32
    %2753 = vset.pattern.permute.xlu0 %v2752
    %2754 = vperm.xlu0 %2753, %v2697
    %v2755 = vpop.permute.xlu0 %2754
    %v2756 = vlaneseq
    %v2757 = vshrl.u32 %v2756, 7
    %v2758 = vadd.s32 %v2757, 40
    %2759 = vset.pattern.permute.xlu0 %v2758
    %2760 = vperm.xlu0 %2759, %v2697
    %v2761 = vpop.permute.xlu0 %2760
    %v2762 = vlaneseq
    %v2763 = vshrl.u32 %v2762, 7
    %v2764 = vadd.s32 %v2763, 48
    %2765 = vset.pattern.permute.xlu0 %v2764
    %2766 = vperm.xlu0 %2765, %v2684
    %v2767 = vpop.permute.xlu0 %2766
    %v2768 = vlaneseq
    %v2769 = vshrl.u32 %v2768, 7
    %v2770 = vadd.s32 %v2769, 56
    %2771 = vset.pattern.permute.xlu0 %v2770
    %2772 = vperm.xlu0 %2771, %v2684
    %v2773 = vpop.permute.xlu0 %2772
    %v2774 = vlaneseq
    %v2775 = vshrl.u32 %v2774, 7
    %v2776 = vadd.s32 %v2775, 48
    %2777 = vset.pattern.permute.xlu0 %v2776
    %2778 = vperm.xlu0 %2777, %v2697
    %v2779 = vpop.permute.xlu0 %2778
    %v2780 = vlaneseq
    %v2781 = vshrl.u32 %v2780, 7
    %v2782 = vadd.s32 %v2781, 56
    %2783 = vset.pattern.permute.xlu0 %v2782
    %2784 = vperm.xlu0 %2783, %v2697
    %v2785 = vpop.permute.xlu0 %2784
    %v2786 = vsel %vm221, %v2743, %v2767
    %v2787 = vsel %vm221, %v2749, %v2773
    %v2788 = vsel %vm221, %v2755, %v2779
    %v2789 = vsel %vm221, %v2761, %v2785
    %v2790 = vmul.f32 %v2677, %v2646
    %v2791 = vmul.f32 %v2679, %v2647
    %v2792 = vmul.f32 %v2681, %v2648
    %v2793 = vmul.f32 %v2683, %v2649
    %v2794 = vperm.slane %v2052, 4
    %v2795 = vperm.slane %v2053, 4
    %v2796 = vmul.f32 %v2794, %v2734
    %v2797 = vmul.f32 %v2794, %v2735
    %v2798 = vmul.f32 %v2795, %v2736
    %v2799 = vmul.f32 %v2795, %v2737
    %v2800 = vadd.f32 %v2790, %v2796
    %v2801 = vadd.f32 %v2791, %v2797
    %v2802 = vadd.f32 %v2792, %v2798
    %v2803 = vadd.f32 %v2793, %v2799
    %v2804 = vmul.f32 %v2786, %v2800
    %v2805 = vmul.f32 %v2787, %v2801
    %v2806 = vmul.f32 %v2788, %v2802
    %v2807 = vmul.f32 %v2789, %v2803
    %v2808 = vadd.f32 %v2804, %v2805
    %v2809 = vrot.slane %v2808, 4
    %v2810 = vadd.f32 %v2808, %v2809
    %v2811 = vrot.slane %v2810, 2
    %v2812 = vadd.f32 %v2810, %v2811
    %v2813 = vrot.slane %v2812, 1
    %v2814 = vadd.f32 %v2812, %v2813
    %v2815 = vadd.f32 %v2806, %v2807
    %v2816 = vrot.slane %v2815, 4
    %v2817 = vadd.f32 %v2815, %v2816
    %v2818 = vrot.slane %v2817, 2
    %v2819 = vadd.f32 %v2817, %v2818
    %v2820 = vrot.slane %v2819, 1
    %v2821 = vadd.f32 %v2819, %v2820
    %2822 = vst [vmem:[#allocation2 + $0x4] sm:$0x1] %v2814
    %2823 = vst [vmem:[#allocation2 + $0xc] sm:$0x1] %v2821
    %v2824 = vperm.slane %v2047, 5
    %v2825 = vperm.slane %v2048, 5
    %v2826 = vmul.f32 %v2824, %v2050
    %v2827 = vmul.f32 %v2824, %v2051
    %v2828 = vmul.f32 %v2825, %v2050
    %v2829 = vmul.f32 %v2825, %v2051
    %v2830 = vmul.f32 %v2826, 1.442695
    %v2831 = vpow.pop %v2830
    %v2832 = vmul.f32 %v2827, 1.442695
    %v2833 = vpow.pop %v2832
    %v2834 = vmul.f32 %v2828, 1.442695
    %v2835 = vpow.pop %v2834
    %v2836 = vmul.f32 %v2829, 1.442695
    %v2837 = vpow.pop %v2836
    %v2838 = vperm.slane %v2007, 5
    %v2839 = vlaneseq
    %v2840 = vshrl.u32 %v2839, 7
    %2842 = vset.pattern.permute.xlu0 %v2840
    %2843 = vperm.xlu0 %2842, %v2838
    %v2844 = vpop.permute.xlu0 %2843
    %v2845 = vlaneseq
    %v2846 = vshrl.u32 %v2845, 7
    %v2847 = vadd.s32 %v2846, 8
    %2848 = vset.pattern.permute.xlu0 %v2847
    %2849 = vperm.xlu0 %2848, %v2838
    %v2850 = vpop.permute.xlu0 %2849
    %v2851 = vperm.slane %v2010, 5
    %v2852 = vlaneseq
    %v2853 = vshrl.u32 %v2852, 7
    %2855 = vset.pattern.permute.xlu0 %v2853
    %2856 = vperm.xlu0 %2855, %v2851
    %v2857 = vpop.permute.xlu0 %2856
    %v2858 = vlaneseq
    %v2859 = vshrl.u32 %v2858, 7
    %v2860 = vadd.s32 %v2859, 8
    %2861 = vset.pattern.permute.xlu0 %v2860
    %2862 = vperm.xlu0 %2861, %v2851
    %v2863 = vpop.permute.xlu0 %2862
    %v2864 = vlaneseq
    %v2865 = vshrl.u32 %v2864, 7
    %v2866 = vadd.s32 %v2865, 16
    %2867 = vset.pattern.permute.xlu0 %v2866
    %2868 = vperm.xlu0 %2867, %v2838
    %v2869 = vpop.permute.xlu0 %2868
    %v2870 = vlaneseq
    %v2871 = vshrl.u32 %v2870, 7
    %v2872 = vadd.s32 %v2871, 24
    %2873 = vset.pattern.permute.xlu0 %v2872
    %2874 = vperm.xlu0 %2873, %v2838
    %v2875 = vpop.permute.xlu0 %2874
    %v2876 = vlaneseq
    %v2877 = vshrl.u32 %v2876, 7
    %v2878 = vadd.s32 %v2877, 16
    %2879 = vset.pattern.permute.xlu0 %v2878
    %2880 = vperm.xlu0 %2879, %v2851
    %v2881 = vpop.permute.xlu0 %2880
    %v2882 = vlaneseq
    %v2883 = vshrl.u32 %v2882, 7
    %v2884 = vadd.s32 %v2883, 24
    %2885 = vset.pattern.permute.xlu0 %v2884
    %2886 = vperm.xlu0 %2885, %v2851
    %v2887 = vpop.permute.xlu0 %2886
    %v2888 = vsel %vm221, %v2844, %v2869
    %v2889 = vsel %vm221, %v2850, %v2875
    %v2890 = vsel %vm221, %v2857, %v2881
    %v2891 = vsel %vm221, %v2863, %v2887
    %v2892 = vlaneseq
    %v2893 = vshrl.u32 %v2892, 7
    %v2894 = vadd.s32 %v2893, 32
    %2895 = vset.pattern.permute.xlu0 %v2894
    %2896 = vperm.xlu0 %2895, %v2838
    %v2897 = vpop.permute.xlu0 %2896
    %v2898 = vlaneseq
    %v2899 = vshrl.u32 %v2898, 7
    %v2900 = vadd.s32 %v2899, 40
    %2901 = vset.pattern.permute.xlu0 %v2900
    %2902 = vperm.xlu0 %2901, %v2838
    %v2903 = vpop.permute.xlu0 %2902
    %v2904 = vlaneseq
    %v2905 = vshrl.u32 %v2904, 7
    %v2906 = vadd.s32 %v2905, 32
    %2907 = vset.pattern.permute.xlu0 %v2906
    %2908 = vperm.xlu0 %2907, %v2851
    %v2909 = vpop.permute.xlu0 %2908
    %v2910 = vlaneseq
    %v2911 = vshrl.u32 %v2910, 7
    %v2912 = vadd.s32 %v2911, 40
    %2913 = vset.pattern.permute.xlu0 %v2912
    %2914 = vperm.xlu0 %2913, %v2851
    %v2915 = vpop.permute.xlu0 %2914
    %v2916 = vlaneseq
    %v2917 = vshrl.u32 %v2916, 7
    %v2918 = vadd.s32 %v2917, 48
    %2919 = vset.pattern.permute.xlu0 %v2918
    %2920 = vperm.xlu0 %2919, %v2838
    %v2921 = vpop.permute.xlu0 %2920
    %v2922 = vlaneseq
    %v2923 = vshrl.u32 %v2922, 7
    %v2924 = vadd.s32 %v2923, 56
    %2925 = vset.pattern.permute.xlu0 %v2924
    %2926 = vperm.xlu0 %2925, %v2838
    %v2927 = vpop.permute.xlu0 %2926
    %v2928 = vlaneseq
    %v2929 = vshrl.u32 %v2928, 7
    %v2930 = vadd.s32 %v2929, 48
    %2931 = vset.pattern.permute.xlu0 %v2930
    %2932 = vperm.xlu0 %2931, %v2851
    %v2933 = vpop.permute.xlu0 %2932
    %v2934 = vlaneseq
    %v2935 = vshrl.u32 %v2934, 7
    %v2936 = vadd.s32 %v2935, 56
    %2937 = vset.pattern.permute.xlu0 %v2936
    %2938 = vperm.xlu0 %2937, %v2851
    %v2939 = vpop.permute.xlu0 %2938
    %v2940 = vsel %vm221, %v2897, %v2921
    %v2941 = vsel %vm221, %v2903, %v2927
    %v2942 = vsel %vm221, %v2909, %v2933
    %v2943 = vsel %vm221, %v2915, %v2939
    %v2944 = vmul.f32 %v2831, %v2800
    %v2945 = vmul.f32 %v2833, %v2801
    %v2946 = vmul.f32 %v2835, %v2802
    %v2947 = vmul.f32 %v2837, %v2803
    %v2948 = vperm.slane %v2052, 5
    %v2949 = vperm.slane %v2053, 5
    %v2950 = vmul.f32 %v2948, %v2888
    %v2951 = vmul.f32 %v2948, %v2889
    %v2952 = vmul.f32 %v2949, %v2890
    %v2953 = vmul.f32 %v2949, %v2891
    %v2954 = vadd.f32 %v2944, %v2950
    %v2955 = vadd.f32 %v2945, %v2951
    %v2956 = vadd.f32 %v2946, %v2952
    %v2957 = vadd.f32 %v2947, %v2953
    %v2958 = vmul.f32 %v2940, %v2954
    %v2959 = vmul.f32 %v2941, %v2955
    %v2960 = vmul.f32 %v2942, %v2956
    %v2961 = vmul.f32 %v2943, %v2957
    %v2962 = vadd.f32 %v2958, %v2959
    %v2963 = vrot.slane %v2962, 4
    %v2964 = vadd.f32 %v2962, %v2963
    %v2965 = vrot.slane %v2964, 2
    %v2966 = vadd.f32 %v2964, %v2965
    %v2967 = vrot.slane %v2966, 1
    %v2968 = vadd.f32 %v2966, %v2967
    %v2969 = vadd.f32 %v2960, %v2961
    %v2970 = vrot.slane %v2969, 4
    %v2971 = vadd.f32 %v2969, %v2970
    %v2972 = vrot.slane %v2971, 2
    %v2973 = vadd.f32 %v2971, %v2972
    %v2974 = vrot.slane %v2973, 1
    %v2975 = vadd.f32 %v2973, %v2974
    %2976 = vst [vmem:[#allocation2 + $0x5] sm:$0x1] %v2968
    %2977 = vst [vmem:[#allocation2 + $0xd] sm:$0x1] %v2975
    %v2978 = vperm.slane %v2047, 6
    %v2979 = vperm.slane %v2048, 6
    %v2980 = vmul.f32 %v2978, %v2050
    %v2981 = vmul.f32 %v2978, %v2051
    %v2982 = vmul.f32 %v2979, %v2050
    %v2983 = vmul.f32 %v2979, %v2051
    %v2984 = vmul.f32 %v2980, 1.442695
    %v2985 = vpow.pop %v2984
    %v2986 = vmul.f32 %v2981, 1.442695
    %v2987 = vpow.pop %v2986
    %v2988 = vmul.f32 %v2982, 1.442695
    %v2989 = vpow.pop %v2988
    %v2990 = vmul.f32 %v2983, 1.442695
    %v2991 = vpow.pop %v2990
    %v2992 = vperm.slane %v2007, 6
    %v2993 = vlaneseq
    %v2994 = vshrl.u32 %v2993, 7
    %2996 = vset.pattern.permute.xlu0 %v2994
    %2997 = vperm.xlu0 %2996, %v2992
    %v2998 = vpop.permute.xlu0 %2997
    %v2999 = vlaneseq
    %v3000 = vshrl.u32 %v2999, 7
    %v3001 = vadd.s32 %v3000, 8
    %3002 = vset.pattern.permute.xlu0 %v3001
    %3003 = vperm.xlu0 %3002, %v2992
    %v3004 = vpop.permute.xlu0 %3003
    %v3005 = vperm.slane %v2010, 6
    %v3006 = vlaneseq
    %v3007 = vshrl.u32 %v3006, 7
    %3009 = vset.pattern.permute.xlu0 %v3007
    %3010 = vperm.xlu0 %3009, %v3005
    %v3011 = vpop.permute.xlu0 %3010
    %v3012 = vlaneseq
    %v3013 = vshrl.u32 %v3012, 7
    %v3014 = vadd.s32 %v3013, 8
    %3015 = vset.pattern.permute.xlu0 %v3014
    %3016 = vperm.xlu0 %3015, %v3005
    %v3017 = vpop.permute.xlu0 %3016
    %v3018 = vlaneseq
    %v3019 = vshrl.u32 %v3018, 7
    %v3020 = vadd.s32 %v3019, 16
    %3021 = vset.pattern.permute.xlu0 %v3020
    %3022 = vperm.xlu0 %3021, %v2992
    %v3023 = vpop.permute.xlu0 %3022
    %v3024 = vlaneseq
    %v3025 = vshrl.u32 %v3024, 7
    %v3026 = vadd.s32 %v3025, 24
    %3027 = vset.pattern.permute.xlu0 %v3026
    %3028 = vperm.xlu0 %3027, %v2992
    %v3029 = vpop.permute.xlu0 %3028
    %v3030 = vlaneseq
    %v3031 = vshrl.u32 %v3030, 7
    %v3032 = vadd.s32 %v3031, 16
    %3033 = vset.pattern.permute.xlu0 %v3032
    %3034 = vperm.xlu0 %3033, %v3005
    %v3035 = vpop.permute.xlu0 %3034
    %v3036 = vlaneseq
    %v3037 = vshrl.u32 %v3036, 7
    %v3038 = vadd.s32 %v3037, 24
    %3039 = vset.pattern.permute.xlu0 %v3038
    %3040 = vperm.xlu0 %3039, %v3005
    %v3041 = vpop.permute.xlu0 %3040
    %v3042 = vsel %vm221, %v2998, %v3023
    %v3043 = vsel %vm221, %v3004, %v3029
    %v3044 = vsel %vm221, %v3011, %v3035
    %v3045 = vsel %vm221, %v3017, %v3041
    %v3046 = vlaneseq
    %v3047 = vshrl.u32 %v3046, 7
    %v3048 = vadd.s32 %v3047, 32
    %3049 = vset.pattern.permute.xlu0 %v3048
    %3050 = vperm.xlu0 %3049, %v2992
    %v3051 = vpop.permute.xlu0 %3050
    %v3052 = vlaneseq
    %v3053 = vshrl.u32 %v3052, 7
    %v3054 = vadd.s32 %v3053, 40
    %3055 = vset.pattern.permute.xlu0 %v3054
    %3056 = vperm.xlu0 %3055, %v2992
    %v3057 = vpop.permute.xlu0 %3056
    %v3058 = vlaneseq
    %v3059 = vshrl.u32 %v3058, 7
    %v3060 = vadd.s32 %v3059, 32
    %3061 = vset.pattern.permute.xlu0 %v3060
    %3062 = vperm.xlu0 %3061, %v3005
    %v3063 = vpop.permute.xlu0 %3062
    %v3064 = vlaneseq
    %v3065 = vshrl.u32 %v3064, 7
    %v3066 = vadd.s32 %v3065, 40
    %3067 = vset.pattern.permute.xlu0 %v3066
    %3068 = vperm.xlu0 %3067, %v3005
    %v3069 = vpop.permute.xlu0 %3068
    %v3070 = vlaneseq
    %v3071 = vshrl.u32 %v3070, 7
    %v3072 = vadd.s32 %v3071, 48
    %3073 = vset.pattern.permute.xlu0 %v3072
    %3074 = vperm.xlu0 %3073, %v2992
    %v3075 = vpop.permute.xlu0 %3074
    %v3076 = vlaneseq
    %v3077 = vshrl.u32 %v3076, 7
    %v3078 = vadd.s32 %v3077, 56
    %3079 = vset.pattern.permute.xlu0 %v3078
    %3080 = vperm.xlu0 %3079, %v2992
    %v3081 = vpop.permute.xlu0 %3080
    %v3082 = vlaneseq
    %v3083 = vshrl.u32 %v3082, 7
    %v3084 = vadd.s32 %v3083, 48
    %3085 = vset.pattern.permute.xlu0 %v3084
    %3086 = vperm.xlu0 %3085, %v3005
    %v3087 = vpop.permute.xlu0 %3086
    %v3088 = vlaneseq
    %v3089 = vshrl.u32 %v3088, 7
    %v3090 = vadd.s32 %v3089, 56
    %3091 = vset.pattern.permute.xlu0 %v3090
    %3092 = vperm.xlu0 %3091, %v3005
    %v3093 = vpop.permute.xlu0 %3092
    %v3094 = vsel %vm221, %v3051, %v3075
    %v3095 = vsel %vm221, %v3057, %v3081
    %v3096 = vsel %vm221, %v3063, %v3087
    %v3097 = vsel %vm221, %v3069, %v3093
    %v3098 = vmul.f32 %v2985, %v2954
    %v3099 = vmul.f32 %v2987, %v2955
    %v3100 = vmul.f32 %v2989, %v2956
    %v3101 = vmul.f32 %v2991, %v2957
    %v3102 = vperm.slane %v2052, 6
    %v3103 = vperm.slane %v2053, 6
    %v3104 = vmul.f32 %v3102, %v3042
    %v3105 = vmul.f32 %v3102, %v3043
    %v3106 = vmul.f32 %v3103, %v3044
    %v3107 = vmul.f32 %v3103, %v3045
    %v3108 = vadd.f32 %v3098, %v3104
    %v3109 = vadd.f32 %v3099, %v3105
    %v3110 = vadd.f32 %v3100, %v3106
    %v3111 = vadd.f32 %v3101, %v3107
    %v3112 = vmul.f32 %v3094, %v3108
    %v3113 = vmul.f32 %v3095, %v3109
    %v3114 = vmul.f32 %v3096, %v3110
    %v3115 = vmul.f32 %v3097, %v3111
    %v3116 = vadd.f32 %v3112, %v3113
    %v3117 = vrot.slane %v3116, 4
    %v3118 = vadd.f32 %v3116, %v3117
    %v3119 = vrot.slane %v3118, 2
    %v3120 = vadd.f32 %v3118, %v3119
    %v3121 = vrot.slane %v3120, 1
    %v3122 = vadd.f32 %v3120, %v3121
    %v3123 = vadd.f32 %v3114, %v3115
    %v3124 = vrot.slane %v3123, 4
    %v3125 = vadd.f32 %v3123, %v3124
    %v3126 = vrot.slane %v3125, 2
    %v3127 = vadd.f32 %v3125, %v3126
    %v3128 = vrot.slane %v3127, 1
    %v3129 = vadd.f32 %v3127, %v3128
    %3130 = vst [vmem:[#allocation2 + $0x6] sm:$0x1] %v3122
    %3131 = vst [vmem:[#allocation2 + $0xe] sm:$0x1] %v3129
    %v3132 = vperm.slane %v2047, 7
    %v3133 = vperm.slane %v2048, 7
    %v3134 = vmul.f32 %v3132, %v2050
    %v3135 = vmul.f32 %v3132, %v2051
    %v3136 = vmul.f32 %v3133, %v2050
    %v3137 = vmul.f32 %v3133, %v2051
    %v3138 = vmul.f32 %v3134, 1.442695
    %v3139 = vpow.pop %v3138
    %v3140 = vmul.f32 %v3135, 1.442695
    %v3141 = vpow.pop %v3140
    %v3142 = vmul.f32 %v3136, 1.442695
    %v3143 = vpow.pop %v3142
    %v3144 = vmul.f32 %v3137, 1.442695
    %v3145 = vpow.pop %v3144
    %v3146 = vperm.slane %v2007, 7
    %v3147 = vlaneseq
    %v3148 = vshrl.u32 %v3147, 7
    %3150 = vset.pattern.permute.xlu0 %v3148
    %3151 = vperm.xlu0 %3150, %v3146
    %v3152 = vpop.permute.xlu0 %3151
    %v3153 = vlaneseq
    %v3154 = vshrl.u32 %v3153, 7
    %v3155 = vadd.s32 %v3154, 8
    %3156 = vset.pattern.permute.xlu0 %v3155
    %3157 = vperm.xlu0 %3156, %v3146
    %v3158 = vpop.permute.xlu0 %3157
    %v3159 = vperm.slane %v2010, 7
    %v3160 = vlaneseq
    %v3161 = vshrl.u32 %v3160, 7
    %3163 = vset.pattern.permute.xlu0 %v3161
    %3164 = vperm.xlu0 %3163, %v3159
    %v3165 = vpop.permute.xlu0 %3164
    %v3166 = vlaneseq
    %v3167 = vshrl.u32 %v3166, 7
    %v3168 = vadd.s32 %v3167, 8
    %3169 = vset.pattern.permute.xlu0 %v3168
    %3170 = vperm.xlu0 %3169, %v3159
    %v3171 = vpop.permute.xlu0 %3170
    %v3172 = vlaneseq
    %v3173 = vshrl.u32 %v3172, 7
    %v3174 = vadd.s32 %v3173, 16
    %3175 = vset.pattern.permute.xlu0 %v3174
    %3176 = vperm.xlu0 %3175, %v3146
    %v3177 = vpop.permute.xlu0 %3176
    %v3178 = vlaneseq
    %v3179 = vshrl.u32 %v3178, 7
    %v3180 = vadd.s32 %v3179, 24
    %3181 = vset.pattern.permute.xlu0 %v3180
    %3182 = vperm.xlu0 %3181, %v3146
    %v3183 = vpop.permute.xlu0 %3182
    %v3184 = vlaneseq
    %v3185 = vshrl.u32 %v3184, 7
    %v3186 = vadd.s32 %v3185, 16
    %3187 = vset.pattern.permute.xlu0 %v3186
    %3188 = vperm.xlu0 %3187, %v3159
    %v3189 = vpop.permute.xlu0 %3188
    %v3190 = vlaneseq
    %v3191 = vshrl.u32 %v3190, 7
    %v3192 = vadd.s32 %v3191, 24
    %3193 = vset.pattern.permute.xlu0 %v3192
    %3194 = vperm.xlu0 %3193, %v3159
    %v3195 = vpop.permute.xlu0 %3194
    %v3196 = vsel %vm221, %v3152, %v3177
    %v3197 = vsel %vm221, %v3158, %v3183
    %v3198 = vsel %vm221, %v3165, %v3189
    %v3199 = vsel %vm221, %v3171, %v3195
    %v3200 = vlaneseq
    %v3201 = vshrl.u32 %v3200, 7
    %v3202 = vadd.s32 %v3201, 32
    %3203 = vset.pattern.permute.xlu0 %v3202
    %3204 = vperm.xlu0 %3203, %v3146
    %v3205 = vpop.permute.xlu0 %3204
    %v3206 = vlaneseq
    %v3207 = vshrl.u32 %v3206, 7
    %v3208 = vadd.s32 %v3207, 40
    %3209 = vset.pattern.permute.xlu0 %v3208
    %3210 = vperm.xlu0 %3209, %v3146
    %v3211 = vpop.permute.xlu0 %3210
    %v3212 = vlaneseq
    %v3213 = vshrl.u32 %v3212, 7
    %v3214 = vadd.s32 %v3213, 32
    %3215 = vset.pattern.permute.xlu0 %v3214
    %3216 = vperm.xlu0 %3215, %v3159
    %v3217 = vpop.permute.xlu0 %3216
    %v3218 = vlaneseq
    %v3219 = vshrl.u32 %v3218, 7
    %v3220 = vadd.s32 %v3219, 40
    %3221 = vset.pattern.permute.xlu0 %v3220
    %3222 = vperm.xlu0 %3221, %v3159
    %v3223 = vpop.permute.xlu0 %3222
    %v3224 = vlaneseq
    %v3225 = vshrl.u32 %v3224, 7
    %v3226 = vadd.s32 %v3225, 48
    %3227 = vset.pattern.permute.xlu0 %v3226
    %3228 = vperm.xlu0 %3227, %v3146
    %v3229 = vpop.permute.xlu0 %3228
    %v3230 = vlaneseq
    %v3231 = vshrl.u32 %v3230, 7
    %v3232 = vadd.s32 %v3231, 56
    %3233 = vset.pattern.permute.xlu0 %v3232
    %3234 = vperm.xlu0 %3233, %v3146
    %v3235 = vpop.permute.xlu0 %3234
    %v3236 = vlaneseq
    %v3237 = vshrl.u32 %v3236, 7
    %v3238 = vadd.s32 %v3237, 48
    %3239 = vset.pattern.permute.xlu0 %v3238
    %3240 = vperm.xlu0 %3239, %v3159
    %v3241 = vpop.permute.xlu0 %3240
    %v3242 = vlaneseq
    %v3243 = vshrl.u32 %v3242, 7
    %v3244 = vadd.s32 %v3243, 56
    %3245 = vset.pattern.permute.xlu0 %v3244
    %3246 = vperm.xlu0 %3245, %v3159
    %v3247 = vpop.permute.xlu0 %3246
    %v3248 = vsel %vm221, %v3205, %v3229
    %v3249 = vsel %vm221, %v3211, %v3235
    %v3250 = vsel %vm221, %v3217, %v3241
    %v3251 = vsel %vm221, %v3223, %v3247
    %v3252 = vmul.f32 %v3139, %v3108
    %v3253 = vmul.f32 %v3141, %v3109
    %v3254 = vmul.f32 %v3143, %v3110
    %v3255 = vmul.f32 %v3145, %v3111
    %v3256 = vperm.slane %v2052, 7
    %v3257 = vperm.slane %v2053, 7
    %v3258 = vmul.f32 %v3256, %v3196
    %v3259 = vmul.f32 %v3256, %v3197
    %v3260 = vmul.f32 %v3257, %v3198
    %v3261 = vmul.f32 %v3257, %v3199
    %v3262 = vadd.f32 %v3252, %v3258
    %v3263 = vadd.f32 %v3253, %v3259
    %v3264 = vadd.f32 %v3254, %v3260
    %v3265 = vadd.f32 %v3255, %v3261
    %v3266 = vmul.f32 %v3248, %v3262
    %v3267 = vmul.f32 %v3249, %v3263
    %v3268 = vmul.f32 %v3250, %v3264
    %v3269 = vmul.f32 %v3251, %v3265
    %v3270 = vadd.f32 %v3266, %v3267
    %v3271 = vrot.slane %v3270, 4
    %v3272 = vadd.f32 %v3270, %v3271
    %v3273 = vrot.slane %v3272, 2
    %v3274 = vadd.f32 %v3272, %v3273
    %v3275 = vrot.slane %v3274, 1
    %v3276 = vadd.f32 %v3274, %v3275
    %v3277 = vadd.f32 %v3268, %v3269
    %v3278 = vrot.slane %v3277, 4
    %v3279 = vadd.f32 %v3277, %v3278
    %v3280 = vrot.slane %v3279, 2
    %v3281 = vadd.f32 %v3279, %v3280
    %v3282 = vrot.slane %v3281, 1
    %v3283 = vadd.f32 %v3281, %v3282
    %3284 = vst [vmem:[#allocation2 + $0x7] sm:$0x1] %v3276
    %3285 = vst [vmem:[#allocation2 + $0xf] sm:$0x1] %v3283
    %v3286 = vld [vmem:[#allocation2] sm:$0xff]
    %v3287 = vld [vmem:[#allocation2 + $0x8] sm:$0xff]
    %s3288 = scalar_lea.vmem %s10, 1
    %v3289 = vld [vmem:[%s3288] sm:$0x1]
    %v3291 = vperm.slane %v3289, 0
    %v3293 = vmul.f32 %v1931, %v3291
    %v3294 = vmul.f32 %v1932, %v3291
    %v3295 = vadd.f32 %v3286, %v3293
    %v3296 = vadd.f32 %v3287, %v3294
    %v3299 = vrot.slane %v3295, 7
    %v3300 = vrot.slane %v3296, 7
    %v3303 = vrot.slane %v3295, 5
    %v3304 = vrot.slane %v3296, 5
    %v3307 = vrot.slane %v3295, 3
    %v3308 = vrot.slane %v3296, 3
    %v3311 = vrot.slane %v3295, 1
    %v3312 = vrot.slane %v3296, 1
    %v3315 = vsel %vm192, %v3299, %v3303
    %v3316 = vsel %vm192, %v3300, %v3304
    %v3317 = vsel %vm195, %v3315, %v3307
    %v3318 = vsel %vm195, %v3316, %v3308
    %v3319 = vsel %vm198, %v3317, %v3311
    %v3320 = vsel %vm198, %v3318, %v3312
    %v3321 = vsel %vm201, %v3319, %v3299
    %v3322 = vsel %vm201, %v3320, %v3300
    %v3323 = vsel %vm204, %v3321, %v3303
    %v3324 = vsel %vm204, %v3322, %v3304
    %v3325 = vsel %vm207, %v3323, %v3307
    %v3326 = vsel %vm207, %v3324, %v3308
    %v3327 = vsel %vm210, %v3325, %v3311
    %v3328 = vsel %vm210, %v3326, %v3312
    %v3329 = vsel %vm74, %v3295, %v3327
    %v3330 = vsel %vm74, %v3296, %v3328
    %v3331 = vsub.f32 0.0, %v1829
    %v3332 = vsub.f32 0.0, %v1832
    %v3333 = vmul.f32 %v3331, 1.442695
    %v3334 = vpow.pop %v3333
    %v3335 = vmul.f32 %v3332, 1.442695
    %v3336 = vpow.pop %v3335
    %v3337 = vadd.f32 %v3334, 1.0
    %v3338 = vadd.f32 %v3336, 1.0
    %v3339 = vrcp.pop %v3337
    %v3340 = vrcp.pop %v3338
    %v3341 = vmul.f32 %v1829, %v3339
    %v3342 = vmul.f32 %v1832, %v3340
    %3345 = vrot.lane.b32.xlu0 %v3341, 64
    %v3346 = vpop.permute.xlu0 %3345
    %3347 = vrot.lane.b32.xlu0 %v3342, 64
    %v3348 = vpop.permute.xlu0 %3347
    %v3351 = vsel %vm221, %v3346, %v3341
    %v3352 = vsel %vm221, %v3348, %v3342
    %v3353 = vmul.f32 %v3329, %v3351
    %v3354 = vmul.f32 %v3330, %v3352
    %s3355 = scalar_lea.vmem %s11, 128
    %v3356 = vld [vmem:[%s3355] sm:$0xff]
    %v3357 = vld [vmem:[%s3355 + $0x8] sm:$0xff]
    %v3358 = vld [vmem:[%s3355 + $0x10] sm:$0xff]
    %v3359 = vld [vmem:[%s3355 + $0x18] sm:$0xff]
    %v3360 = vld [vmem:[%s3355 + $0x20] sm:$0xff]
    %v3361 = vld [vmem:[%s3355 + $0x28] sm:$0xff]
    %v3362 = vld [vmem:[%s3355 + $0x30] sm:$0xff]
    %v3363 = vld [vmem:[%s3355 + $0x38] sm:$0xff]
    %v3364 = vld [vmem:[%s3355 + $0x40] sm:$0xff]
    %v3365 = vld [vmem:[%s3355 + $0x48] sm:$0xff]
    %v3366 = vld [vmem:[%s3355 + $0x50] sm:$0xff]
    %v3367 = vld [vmem:[%s3355 + $0x58] sm:$0xff]
    %v3368 = vld [vmem:[%s3355 + $0x60] sm:$0xff]
    %v3369 = vld [vmem:[%s3355 + $0x68] sm:$0xff]
    %v3370 = vld [vmem:[%s3355 + $0x70] sm:$0xff]
    %v3371 = vld [vmem:[%s3355 + $0x78] sm:$0xff]
    %3372 = vmatpush.msra.mxu0 %v3371
    %3373 = vmatpush.msra.mxu0 %v3370
    %3374 = vmatpush.msra.mxu0 %v3369
    %3375 = vmatpush.msra.mxu0 %v3368
    %3376 = vmatpush.msra.mxu0 %v3367
    %3377 = vmatpush.msra.mxu0 %v3366
    %3378 = vmatpush.msra.mxu0 %v3365
    %3379 = vmatpush.msra.mxu0 %v3364
    %3380 = vmatpush.msra.mxu0 %v3363
    %3381 = vmatpush.msra.mxu0 %v3362
    %3382 = vmatpush.msra.mxu0 %v3361
    %3383 = vmatpush.msra.mxu0 %v3360
    %3384 = vmatpush.msra.mxu0 %v3359
    %3385 = vmatpush.msra.mxu0 %v3358
    %3386 = vmatpush.msra.mxu0 %v3357
    %3387 = vmatpush.msra.mxu0 %v3356
    %3388 = vmatmul.f32.gmra.mxu0 %v3353
    %v3389 = vpop.f32.mrf.mxu0
    %v3390 = vadd.f32 %v1737, %v3389
    %3391 = vmatmul.f32.gmra.mxu0 %v3354
    %v3392 = vpop.f32.mrf.mxu0
    %v3393 = vadd.f32 %v1740, %v3392
    %3394 = vdwg.mxu0
    %v3395 = vld [vmem:[%s12] sm:$0x1]
    %v3396 = vld [vmem:[%s13] sm:$0x1]
    %v3397 = vsel %vm79, %v3390, 0.0
    %3398 = vadd.xlane.f32.xlu0 %v3397
    %v3399 = vpop.xlane.xlu0 %3398
    %v3400 = vsel %vm79, %v3393, 0.0
    %3401 = vadd.xlane.f32.xlu0 %v3400
    %v3402 = vpop.xlane.xlu0 %3401
    %v3403 = vmul.f32 %v3399, %v92
    %v3404 = vmul.f32 %v3402, %v92
    %v3405 = vsub.f32 %v3390, %v3403
    %v3406 = vsub.f32 %v3393, %v3404
    %v3407 = vmul.f32 %v3405, %v3405
    %v3408 = vmul.f32 %v3406, %v3406
    %v3409 = vsel %vm79, %v3407, 0.0
    %3410 = vadd.xlane.f32.xlu0 %v3409
    %v3411 = vpop.xlane.xlu0 %3410
    %v3412 = vsel %vm79, %v3408, 0.0
    %3413 = vadd.xlane.f32.xlu0 %v3412
    %v3414 = vpop.xlane.xlu0 %3413
    %v3415 = vmul.f32 %v3411, %v92
    %v3416 = vmul.f32 %v3414, %v92
    %v3417 = vadd.f32 %v3415, 1e-05
    %v3418 = vadd.f32 %v3416, 1e-05
    %v3419 = vrsqrt.pop %v3417
    %v3420 = vmul.f32 %v3419, %v3417
    %v3421 = vmul.f32 %v3420, %v3419
    %v3422 = vmul.f32 0.5, %v3421
    %v3423 = vsub.f32 1.5, %v3422
    %v3424 = vmul.f32 %v3419, %v3423
    %vm3425 = vweird.f32 %v3417
    %vm3426 = vweird.f32 %v3419
    %vm3427 = vmor %vm3425, %vm3426
    %v3428 = vsel %vm3427, %v3419, %v3424
    %v3429 = vrsqrt.pop %v3418
    %v3430 = vmul.f32 %v3429, %v3418
    %v3431 = vmul.f32 %v3430, %v3429
    %v3432 = vmul.f32 0.5, %v3431
    %v3433 = vsub.f32 1.5, %v3432
    %v3434 = vmul.f32 %v3429, %v3433
    %vm3435 = vweird.f32 %v3418
    %vm3436 = vweird.f32 %v3429
    %vm3437 = vmor %vm3435, %vm3436
    %v3438 = vsel %vm3437, %v3429, %v3434
    %v3439 = vmul.f32 %v3405, %v3428
    %v3440 = vmul.f32 %v3406, %v3438
    %v3442 = vperm.slane %v3395, 0
    %v3444 = vmul.f32 %v3439, %v3442
    %v3445 = vmul.f32 %v3440, %v3442
    %v3447 = vperm.slane %v3396, 0
    %v3449 = vadd.f32 %v3444, %v3447
    %v3450 = vadd.f32 %v3445, %v3447
    %3451 = vst.msk [vmem:[#allocation6] sm:$0xff] %vm79, %v3449
    %3452 = vst.msk [vmem:[#allocation6 + $0x8] sm:$0xff] %vm79, %v3450
    // Predicated region
    $region62: #{_mixer_forward.1} parent=1 // pred_check
      _
    $region63: #{_mixer_forward.1} parent=1 // pred_check_branch
      %3454 = sbr.rel (0) target = $region65
    $region64: #{_mixer_forward.1} parent=1 // pred_region
      %3456 = vsyncadd [#allocation5], 0
      %s3457 = sshll.u32 [#allocation6], 4
      %s3458 = int_to_ptr.vmem [resolvable:$true] %s3457
      %s3459 = sshll.u32 %s14, 4
      %s3460 = int_to_ptr.hbm [resolvable:$true] %s3459
      %3465 = dma.vmem_to_hbm [thread:$0]  %s3458, 256, %s3460, [#allocation5], 128, 128, 8
    $region65: #{_mixer_forward.1} parent=1 // pred_fallthru
      _
    // Predicated region
    $region66: #{_mixer_forward.1} parent=1 // pred_check
      _
    $region67: #{_mixer_forward.1} parent=1 // pred_check_branch
      %3467 = sbr.rel (0) target = $region69
    $region68: #{_mixer_forward.1} parent=1 // pred_region
      %3469 = dma.done [#allocation5], 256
    $region69: #{_mixer_forward.1} parent=1 // pred_fallthru
      _
    %3470 = vsyncpa [#allocation4], 1
    %3471 = vsyncpa [#allocation5], 1

</llo_original>
